<compile_context>
chip_gen: v7x
topology: tpu7x:2x2x1
jax: 0.10.0
libtpu: 0.0.40
codegen_flags: <defaults>
</compile_context>

<pallas_src>
import jax
import jax.numpy as jnp
from jax import lax
from jax.experimental import pallas as pl
from jax.experimental.pallas import tpu as pltpu


def _round_up(x, m):
    return ((x + m - 1) // m) * m


# ----------------------------------------------------------------------------
# Kernel factory: one (batch, H-strip) tile per grid step.
# ----------------------------------------------------------------------------
def _make_kernel(TH, W, Wp, c_mid, c_out, has_halo):
    RH = 8  # row-chunk for the 9-tap accumulation (bounds vreg pressure)
    bf16 = jnp.bfloat16

    def _bn_relu_conv1(xrows, s1, b1, b2, w1):
        # bn1 -> relu -> 1x1 conv (bn2 scale folded into w1) -> +bn2 bias -> relu
        h = jnp.maximum(xrows * s1 + b1, 0.0)                       # f32
        m = jnp.dot(h.astype(bf16), w1, preferred_element_type=jnp.float32)
        return jnp.maximum(m + b2, 0.0).astype(bf16)

    def body(x_ref, xt_ref, xb_ref, s1_ref, b1_ref, w1_ref, b2_ref, w2_ref,
             o_ref, midp_ref):
        # x_ref  : (1, TH, W, C_in)   input strip (NHWC)
        # xt/xb  : (1, 1,  W, C_in)   1-row halos (only when has_halo)
        # s1/b1  : (1, C_in)          folded BatchNorm1 affine (f32)
        # w1     : (C_in, c_mid) bf16 conv1 weight with bn2 scale folded in
        # b2     : (1, c_mid)         bn2 bias (f32)
        # w2     : (c_mid, 9*c_out) bf16  conv2 weight, tap-major columns
        # o_ref  : (1, TH, W*c_out)   lane-dense output strip
        # midp   : (TH+2, Wp, c_mid)  VMEM scratch = zero-padded bottleneck act.
        C_in = x_ref.shape[-1]
        s1 = s1_ref[0]
        b1 = b1_ref[0]
        b2 = b2_ref[0]
        w1 = w1_ref[...]

        # --- W-padding columns of the scratch. Scratch persists across grid
        #     steps and starts uninitialized, so rewrite the thin borders every
        #     step (cols >= W+2 beyond the explicit pad are also zeroed; their
        #     matmul rows are never read by the tap accumulation).
        midp_ref[:, 0:1, :] = jnp.zeros((TH + 2, 1, c_mid), bf16)
        midp_ref[:, W + 1:Wp, :] = jnp.zeros((TH + 2, Wp - W - 1, c_mid), bf16)

        # --- main strip: write the bottleneck activation straight into the
        #     scratch interior (no concatenate passes).
        xm = x_ref[0].reshape(TH * W, C_in)
        mid = _bn_relu_conv1(xm, s1, b1, b2, w1)                    # (TH*W, c_mid)
        midp_ref[1:TH + 1, 1:W + 1, :] = mid.reshape(TH, W, c_mid)

        # --- halo rows (rows 0 and TH+1 of the scratch).
        if has_halo:
            i = pl.program_id(1)
            last = pl.num_programs(1) - 1

            @pl.when(i == 0)
            def _():
                midp_ref[0:1, :, :] = jnp.zeros((1, Wp, c_mid), bf16)

            @pl.when(i != 0)
            def _():
                mt = _bn_relu_conv1(xt_ref[0, 0], s1, b1, b2, w1)   # (W, c_mid)
                midp_ref[0:1, 1:W + 1, :] = mt.reshape(1, W, c_mid)

            @pl.when(i == last)
            def _():
                midp_ref[TH + 1:TH + 2, :, :] = jnp.zeros((1, Wp, c_mid), bf16)

            @pl.when(i != last)
            def _():
                mb = _bn_relu_conv1(xb_ref[0, 0], s1, b1, b2, w1)
                midp_ref[TH + 1:TH + 2, 1:W + 1, :] = mb.reshape(1, W, c_mid)
        else:
            midp_ref[0:1, :, :] = jnp.zeros((1, Wp, c_mid), bf16)
            midp_ref[TH + 1:TH + 2, :, :] = jnp.zeros((1, Wp, c_mid), bf16)

        # --- 3x3 conv: ONE fat matmul, taps packed in the lane dim. ---------
        z = jnp.dot(midp_ref[...].reshape((TH + 2) * Wp, c_mid), w2_ref[...],
                    preferred_element_type=jnp.float32)             # (rows, 9*c_out)
        z3 = z.reshape(TH + 2, Wp, 9 * c_out)

        # 9 shifted adds, chunked over RH rows; each chunk ends in a store so
        # its live range closes (keeps vreg pressure bounded).
        r0 = 0
        while r0 < TH:
            rh = min(RH, TH - r0)
            acc = z3[r0:r0 + rh, 0:W, 0:c_out]                      # tap (0, 0)
            for t in range(1, 9):
                ky, kx = divmod(t, 3)
                acc = acc + z3[r0 + ky:r0 + ky + rh, kx:kx + W,
                               t * c_out:(t + 1) * c_out]
            o_ref[0, r0:r0 + rh, :] = acc.reshape(rh, W * c_out)
            r0 += rh

    if has_halo:
        return body

    def body_nohalo(x_ref, s1_ref, b1_ref, w1_ref, b2_ref, w2_ref, o_ref,
                    midp_ref):
        return body(x_ref, None, None, s1_ref, b1_ref, w1_ref, b2_ref, w2_ref,
                    o_ref, midp_ref)

    return body_nohalo


# ----------------------------------------------------------------------------
# Tile selection (per-generation VMEM budget)
# ----------------------------------------------------------------------------
def _vmem_capacity_bytes():
    try:
        cap = getattr(pltpu.get_tpu_info(), "vmem_capacity_bytes", None)
        if cap:
            return int(cap)
    except Exception:
        pass
    return 128 * 1024 * 1024  # conservative default (v5e/v6e size)


def _strip_vmem_bytes(th, W, Wp, C_in, c_mid, c_out):
    x_blk = th * W * C_in * 4 * 2                    # double-buffered input
    halo = 2 * W * C_in * 4 * 2
    out_blk = th * W * c_out * 4 * 2                 # double-buffered output
    midp = (th + 2) * Wp * c_mid * 2                 # bf16 scratch
    z = (th + 2) * Wp * 9 * c_out * 4                # fat-matmul result (f32)
    temps = th * W * (6 * C_in + 4 * c_mid)          # bn/relu/cast temporaries
    weights = C_in * c_mid * 2 + c_mid * 9 * c_out * 2 + (2 * C_in + c_mid) * 4
    return x_blk + halo + out_blk + midp + z + temps + weights


def _pick_tile_h(N, H, W, Wp, C_in, c_mid, c_out, budget, min_slices=2):
    # Candidates: full image (preferred; no halo, no recompute) or divisors of
    # H that are multiples of 8 (BlockSpec-friendly output strips).
    cands = [H] + sorted(
        [d for d in range(8, H) if H % d == 0 and d % 8 == 0], reverse=True)
    fitting = [d for d in cands
               if _strip_vmem_bytes(d, W, Wp, C_in, c_mid, c_out) <= budget]
    if not fitting:
        fitting = [min(cands)]
    tile_h = max(fitting)
    # v7x dual-TC: keep >= min_slices comparably-sized parallel grid slices so
    # one TensorCore does not idle (e.g. N == 1 inference).
    if N * (H // tile_h) < min_slices:
        smaller = [d for d in fitting if N * (H // d) >= min_slices]
        if smaller:
            tile_h = max(smaller)
    return tile_h


# ----------------------------------------------------------------------------
# Wrapper
# ----------------------------------------------------------------------------
def dense_layer_forward(x_nchw, params, *, tile_h=None):
    """Fused _DenseLayer forward (eval mode). x: NCHW f32 -> NCHW f32."""
    scale1, bias1, w1, scale2, bias2, w2 = params
    N, C_in, H, W = x_nchw.shape
    c_mid = w1.shape[1]
    c_out = w2.shape[-1]

    # NCHW -> NHWC once at the module boundary (see TODO at top of file).
    x = jnp.transpose(x_nchw, (0, 2, 3, 1)).astype(jnp.float32)

    Wp = _round_up(W + 2, 8)

    cap = _vmem_capacity_bytes()
    budget = int(cap * 0.70)          # ~90 MiB on v5e/v6e, ~45 MiB on v7x
    vmem_limit = int(cap * 0.85)

    if tile_h is None:
        tile_h = _pick_tile_h(N, H, W, Wp, C_in, c_mid, c_out, budget)
    assert H % tile_h == 0 and (tile_h % 8 == 0 or tile_h == H), tile_h
    n_strips = H // tile_h
    has_halo = n_strips > 1

    # Parameter prep: fold bn2 scale into conv1 weight, bf16 MXU operands,
    # tap-major 3x3 weight matrix  w2m[c, (ky*3+kx)*c_out + o] = w2[ky,kx,c,o].
    w1f = (w1 * scale2).astype(jnp.bfloat16)                    # (C_in, c_mid)
    w2m = jnp.transpose(w2, (2, 0, 1, 3)).reshape(c_mid, 9 * c_out)
    w2m = w2m.astype(jnp.bfloat16)
    s1 = scale1.reshape(1, C_in).astype(jnp.float32)
    b1 = bias1.reshape(1, C_in).astype(jnp.float32)
    b2 = bias2.reshape(1, c_mid).astype(jnp.float32)

    kernel = _make_kernel(tile_h, W, Wp, c_mid, c_out, has_halo)

    in_specs = [pl.BlockSpec((1, tile_h, W, C_in), lambda n, i: (n, i, 0, 0))]
    inputs = [x]
    if has_halo:
        # 1-row halos read straight from x via clamped element-row index maps
        # (no wrapper-side HBM gather).
        top_map = lambda n, i, th=tile_h: (n, jnp.maximum(i * th - 1, 0), 0, 0)
        bot_map = lambda n, i, th=tile_h, hh=H: (
            n, jnp.minimum((i + 1) * th, hh - 1), 0, 0)
        in_specs += [pl.BlockSpec((1, 1, W, C_in), top_map),
                     pl.BlockSpec((1, 1, W, C_in), bot_map)]
        inputs += [x, x]
    in_specs += [
        pl.BlockSpec((1, C_in), lambda n, i: (0, 0)),
        pl.BlockSpec((1, C_in), lambda n, i: (0, 0)),
        pl.BlockSpec((C_in, c_mid), lambda n, i: (0, 0)),
        pl.BlockSpec((1, c_mid), lambda n, i: (0, 0)),
        pl.BlockSpec((c_mid, 9 * c_out), lambda n, i: (0, 0)),
    ]
    inputs += [s1, b1, w1f, b2, w2m]

    flops = 2 * N * H * W * (C_in * c_mid + c_mid * 9 * c_out)
    bytes_accessed = (x.size * 4 + N * H * W * c_out * 4
                      + w1f.size * 2 + w2m.size * 2)
    cost = pl.CostEstimate(flops=int(flops), transcendentals=0,
                           bytes_accessed=int(bytes_accessed))

    out = pl.pallas_call(
        kernel,
        out_shape=jax.ShapeDtypeStruct((N, H, W * c_out), jnp.float32),
        grid_spec=pltpu.PrefetchScalarGridSpec(
            num_scalar_prefetch=0,
            grid=(N, n_strips),
            in_specs=in_specs,
            out_specs=pl.BlockSpec((1, tile_h, W * c_out),
                                   lambda n, i: (n, i, 0)),
            scratch_shapes=[pltpu.VMEM((tile_h + 2, Wp, c_mid), jnp.bfloat16)],
        ),
        compiler_params=pltpu.CompilerParams(
            dimension_semantics=("parallel", "parallel"),
            vmem_limit_bytes=vmem_limit),
        cost_estimate=cost,
    )(*inputs)

    out = out.reshape(N, H, W, c_out)
    return jnp.transpose(out, (0, 3, 1, 2))                    # NHWC -> NCHW


# ----------------------------------------------------------------------------
# Pure-JAX f32 reference (matches PyTorch eval-mode semantics)
# ----------------------------------------------------------------------------
def reference_forward(x_nchw, params):
    scale1, bias1, w1, scale2, bias2, w2 = params
    x = jnp.transpose(x_nchw, (0, 2, 3, 1))
    h = jnp.maximum(x * scale1[0] + bias1[0], 0.0)
    z = jnp.einsum('nhwc,cm->nhwm', h, w1)
    h2 = jnp.maximum(z * scale2[0] + bias2[0], 0.0)
    out = lax.conv_general_dilated(
        h2, w2, window_strides=(1, 1), padding='SAME',
        dimension_numbers=('NHWC', 'HWIO', 'NHWC'))
    return jnp.transpose(out, (0, 3, 1, 2))


if __name__ == "__main__":
    # Module hyperparameters (small, consistent with _DenseLayer __init__).
    input_c, growth_rate, bn_size = 16, 8, 4
    c_mid = bn_size * growth_rate                  # conv1 out channels = 32
    N, H, W = 2, 16, 16
    eps = 1e-5

    key = jax.random.PRNGKey(0)
    keys = jax.random.split(key, 12)

    x = jax.random.normal(keys[0], (N, input_c, H, W), jnp.float32)

    # BatchNorm1 (gamma, beta, running_mean, running_var) -> folded affine.
    g1 = jax.random.normal(keys[1], (input_c,)) * 0.1 + 1.0
    be1 = jax.random.normal(keys[2], (input_c,)) * 0.1
    rm1 = jax.random.normal(keys[3], (input_c,)) * 0.1
    rv1 = jax.random.uniform(keys[4], (input_c,), minval=0.5, maxval=1.5)
    scale1 = (g1 / jnp.sqrt(rv1 + eps)).reshape(1, input_c)
    bias1 = (be1 - rm1 * g1 / jnp.sqrt(rv1 + eps)).reshape(1, input_c)

    # Conv1: torch (c_mid, input_c, 1, 1) -> matmul weight (input_c, c_mid).
    w1 = jax.random.normal(keys[5], (input_c, c_mid)) * 0.1

    # BatchNorm2 -> folded affine.
    g2 = jax.random.normal(keys[6], (c_mid,)) * 0.1 + 1.0
    be2 = jax.random.normal(keys[7], (c_mid,)) * 0.1
    rm2 = jax.random.normal(keys[8], (c_mid,)) * 0.1
    rv2 = jax.random.uniform(keys[9], (c_mid,), minval=0.5, maxval=1.5)
    scale2 = (g2 / jnp.sqrt(rv2 + eps)).reshape(1, c_mid)
    bias2 = (be2 - rm2 * g2 / jnp.sqrt(rv2 + eps)).reshape(1, c_mid)

    # Conv2: torch (growth, c_mid, 3, 3) -> HWIO (3, 3, c_mid, growth).
    w2 = jax.random.normal(keys[10], (3, 3, c_mid, growth_rate)) * 0.1

    params = (scale1, bias1, w1, scale2, bias2, w2)
    ref = jax.block_until_ready(reference_forward(x, params))

    # 1) Default path: full-image strip per batch element (no halo path).
    out_full = jax.block_until_ready(dense_layer_forward(x, params))
    assert out_full.shape == (N, growth_rate, H, W), out_full.shape
    assert jnp.allclose(out_full, ref, rtol=2e-2, atol=2e-2), float(
        jnp.max(jnp.abs(out_full - ref)))

    # 2) Explicit tile_h=8: two H-strips per image, exercising the halo /
    #    boundary (pl.when) path.
    out_strip = jax.block_until_ready(dense_layer_forward(x, params, tile_h=8))
    assert out_strip.shape == (N, growth_rate, H, W), out_strip.shape
    assert jnp.allclose(out_strip, ref, rtol=2e-2, atol=2e-2), float(
        jnp.max(jnp.abs(out_strip - ref)))

    print("KERNEL_OK")
</pallas_src>

<mosaic_0001>
module attributes {stable_mosaic.version = 11 : i64} {
  func.func @body_nohalo(%arg0: i32, %arg1: i32, %arg2: memref<1x16x16x16xf32, #tpu.memory_space<vmem>>, %arg3: memref<1x16xf32, #tpu.memory_space<vmem>>, %arg4: memref<1x16xf32, #tpu.memory_space<vmem>>, %arg5: memref<16x32xbf16, #tpu.memory_space<vmem>>, %arg6: memref<1x32xf32, #tpu.memory_space<vmem>>, %arg7: memref<32x72xbf16, #tpu.memory_space<vmem>>, %arg8: memref<1x16x128xf32, #tpu.memory_space<vmem>>, %arg9: memref<18x24x32xbf16, #tpu.memory_space<vmem>>) attributes {dimension_semantics = [#tpu.dimension_semantics<parallel>, #tpu.dimension_semantics<parallel>], iteration_bounds = array<i64: 2, 1>, scalar_prefetch = 0 : i64, scratch_operands = 1 : i64, tpu.core_type = #tpu.core_type<tc>, window_params = [{transform_indices = @transform_0, window_bounds = array<i64: 1, 16, 16, 16>}, {pipeline_mode = #tpu.pipeline_mode<synchronous>, transform_indices = @transform_1, window_bounds = array<i64: 1, 16>}, {pipeline_mode = #tpu.pipeline_mode<synchronous>, transform_indices = @transform_2, window_bounds = array<i64: 1, 16>}, {pipeline_mode = #tpu.pipeline_mode<synchronous>, transform_indices = @transform_3, window_bounds = array<i64: 16, 32>}, {pipeline_mode = #tpu.pipeline_mode<synchronous>, transform_indices = @transform_4, window_bounds = array<i64: 1, 32>}, {pipeline_mode = #tpu.pipeline_mode<synchronous>, transform_indices = @transform_5, window_bounds = array<i64: 32, 72>}, {transform_indices = @transform_6, window_bounds = array<i64: 1, 16, 128>}]} {
    %c0 = arith.constant 0 : index
    %c0_0 = arith.constant 0 : index
    %0 = vector.load %arg3[%c0, %c0_0] : memref<1x16xf32, #tpu.memory_space<vmem>>, vector<1x16xf32>
    %1 = vector.shape_cast %0 : vector<1x16xf32> to vector<16xf32>
    %c0_1 = arith.constant 0 : index
    %c0_2 = arith.constant 0 : index
    %2 = vector.load %arg4[%c0_1, %c0_2] : memref<1x16xf32, #tpu.memory_space<vmem>>, vector<1x16xf32>
    %3 = vector.shape_cast %2 : vector<1x16xf32> to vector<16xf32>
    %c0_3 = arith.constant 0 : index
    %c0_4 = arith.constant 0 : index
    %4 = vector.load %arg6[%c0_3, %c0_4] : memref<1x32xf32, #tpu.memory_space<vmem>>, vector<1x32xf32>
    %5 = vector.shape_cast %4 : vector<1x32xf32> to vector<32xf32>
    %c0_5 = arith.constant 0 : index
    %c0_6 = arith.constant 0 : index
    %6 = vector.load %arg5[%c0_5, %c0_6] : memref<16x32xbf16, #tpu.memory_space<vmem>>, vector<16x32xbf16>
    %cst = arith.constant 0.000000e+00 : bf16
    %7 = vector.broadcast %cst : bf16 to vector<18x1x32xbf16>
    %c0_7 = arith.constant 0 : index
    %c0_8 = arith.constant 0 : index
    %c0_9 = arith.constant 0 : index
    %8 = vector.load %arg9[%c0_7, %c0_8, %c0_9] : memref<18x24x32xbf16, #tpu.memory_space<vmem>>, vector<18x1x32xbf16>
    tpu.vector_store %arg9[%c0_7, %c0_8, %c0_9], %7 {strides = array<i32>} : memref<18x24x32xbf16, #tpu.memory_space<vmem>>, vector<18x1x32xbf16>,
    %cst_10 = arith.constant 0.000000e+00 : bf16
    %9 = vector.broadcast %cst_10 : bf16 to vector<18x7x32xbf16>
    %c0_11 = arith.constant 0 : index
    %c17 = arith.constant 17 : index
    %c0_12 = arith.constant 0 : index
    %10 = vector.load %arg9[%c0_11, %c17, %c0_12] : memref<18x24x32xbf16, #tpu.memory_space<vmem>>, vector<18x7x32xbf16>
    tpu.vector_store %arg9[%c0_11, %c17, %c0_12], %9 {strides = array<i32>} : memref<18x24x32xbf16, #tpu.memory_space<vmem>>, vector<18x7x32xbf16>,
    %c0_13 = arith.constant 0 : index
    %c0_14 = arith.constant 0 : index
    %c0_15 = arith.constant 0 : index
    %c0_16 = arith.constant 0 : index
    %11 = vector.load %arg2[%c0_13, %c0_14, %c0_15, %c0_16] : memref<1x16x16x16xf32, #tpu.memory_space<vmem>>, vector<1x16x16x16xf32>
    %12 = vector.shape_cast %11 : vector<1x16x16x16xf32> to vector<16x16x16xf32>
    %13 = vector.shape_cast %12 : vector<16x16x16xf32> to vector<256x16xf32>
    %14 = vector.shape_cast %1 : vector<16xf32> to vector<1x16xf32>
    %15 = vector.broadcast %14 : vector<1x16xf32> to vector<256x16xf32>
    %16 = arith.mulf %13, %15 : vector<256x16xf32>
    %17 = vector.shape_cast %3 : vector<16xf32> to vector<1x16xf32>
    %18 = vector.broadcast %17 : vector<1x16xf32> to vector<256x16xf32>
    %19 = arith.addf %16, %18 : vector<256x16xf32>
    %cst_17 = arith.constant 0.000000e+00 : f32
    %20 = vector.broadcast %cst_17 : f32 to vector<256x16xf32>
    %21 = arith.maximumf %19, %20 : vector<256x16xf32>
    %22 = arith.truncf %21 : vector<256x16xf32> to vector<256x16xbf16>
    %cst_18 = arith.constant dense<0.000000e+00> : vector<256x32xf32>
    %23 = tpu.matmul %22, %6, %cst_18 {dimension_numbers = #tpu.dot_dimension_numbers<[1], [0], [0], [1], [0, 0, 1, 1], [], []>} : vector<256x16xbf16>, vector<16x32xbf16>, vector<256x32xf32> -> vector<256x32xf32>
    %24 = vector.shape_cast %5 : vector<32xf32> to vector<1x32xf32>
    %25 = vector.broadcast %24 : vector<1x32xf32> to vector<256x32xf32>
    %26 = arith.addf %23, %25 : vector<256x32xf32>
    %cst_19 = arith.constant 0.000000e+00 : f32
    %27 = vector.broadcast %cst_19 : f32 to vector<256x32xf32>
    %28 = arith.maximumf %26, %27 : vector<256x32xf32>
    %29 = arith.truncf %28 : vector<256x32xf32> to vector<256x32xbf16>
    %30 = vector.shape_cast %29 : vector<256x32xbf16> to vector<16x16x32xbf16>
    %c1 = arith.constant 1 : index
    %c1_20 = arith.constant 1 : index
    %c0_21 = arith.constant 0 : index
    %31 = vector.load %arg9[%c1, %c1_20, %c0_21] : memref<18x24x32xbf16, #tpu.memory_space<vmem>>, vector<16x16x32xbf16>
    tpu.vector_store %arg9[%c1, %c1_20, %c0_21], %30 {strides = array<i32>} : memref<18x24x32xbf16, #tpu.memory_space<vmem>>, vector<16x16x32xbf16>,
    %cst_22 = arith.constant 0.000000e+00 : bf16
    %32 = vector.broadcast %cst_22 : bf16 to vector<1x24x32xbf16>
    %c0_23 = arith.constant 0 : index
    %c0_24 = arith.constant 0 : index
    %c0_25 = arith.constant 0 : index
    %33 = vector.load %arg9[%c0_23, %c0_24, %c0_25] : memref<18x24x32xbf16, #tpu.memory_space<vmem>>, vector<1x24x32xbf16>
    tpu.vector_store %arg9[%c0_23, %c0_24, %c0_25], %32 {strides = array<i32>} : memref<18x24x32xbf16, #tpu.memory_space<vmem>>, vector<1x24x32xbf16>,
    %cst_26 = arith.constant 0.000000e+00 : bf16
    %34 = vector.broadcast %cst_26 : bf16 to vector<1x24x32xbf16>
    %c17_27 = arith.constant 17 : index
    %c0_28 = arith.constant 0 : index
    %c0_29 = arith.constant 0 : index
    %35 = vector.load %arg9[%c17_27, %c0_28, %c0_29] : memref<18x24x32xbf16, #tpu.memory_space<vmem>>, vector<1x24x32xbf16>
    tpu.vector_store %arg9[%c17_27, %c0_28, %c0_29], %34 {strides = array<i32>} : memref<18x24x32xbf16, #tpu.memory_space<vmem>>, vector<1x24x32xbf16>,
    %c0_30 = arith.constant 0 : index
    %c0_31 = arith.constant 0 : index
    %c0_32 = arith.constant 0 : index
    %36 = vector.load %arg9[%c0_30, %c0_31, %c0_32] : memref<18x24x32xbf16, #tpu.memory_space<vmem>>, vector<18x24x32xbf16>
    %37 = vector.shape_cast %36 : vector<18x24x32xbf16> to vector<432x32xbf16>
    %c0_33 = arith.constant 0 : index
    %c0_34 = arith.constant 0 : index
    %38 = vector.load %arg7[%c0_33, %c0_34] : memref<32x72xbf16, #tpu.memory_space<vmem>>, vector<32x72xbf16>
    %cst_35 = arith.constant dense<0.000000e+00> : vector<432x72xf32>
    %39 = tpu.matmul %37, %38, %cst_35 {dimension_numbers = #tpu.dot_dimension_numbers<[1], [0], [0], [1], [0, 0, 1, 1], [], []>} : vector<432x32xbf16>, vector<32x72xbf16>, vector<432x72xf32> -> vector<432x72xf32>
    %40 = vector.shape_cast %39 : vector<432x72xf32> to vector<18x24x72xf32>
    %41 = vector.extract_strided_slice %40 {offsets = [0, 0, 0], sizes = [8, 16, 8], strides = [1, 1, 1]} : vector<18x24x72xf32> to vector<8x16x8xf32>
    %42 = vector.extract_strided_slice %40 {offsets = [0, 1, 8], sizes = [8, 16, 8], strides = [1, 1, 1]} : vector<18x24x72xf32> to vector<8x16x8xf32>
    %43 = arith.addf %41, %42 : vector<8x16x8xf32>
    %44 = vector.extract_strided_slice %40 {offsets = [0, 2, 16], sizes = [8, 16, 8], strides = [1, 1, 1]} : vector<18x24x72xf32> to vector<8x16x8xf32>
    %45 = arith.addf %43, %44 : vector<8x16x8xf32>
    %46 = vector.extract_strided_slice %40 {offsets = [1, 0, 24], sizes = [8, 16, 8], strides = [1, 1, 1]} : vector<18x24x72xf32> to vector<8x16x8xf32>
    %47 = arith.addf %45, %46 : vector<8x16x8xf32>
    %48 = vector.extract_strided_slice %40 {offsets = [1, 1, 32], sizes = [8, 16, 8], strides = [1, 1, 1]} : vector<18x24x72xf32> to vector<8x16x8xf32>
    %49 = arith.addf %47, %48 : vector<8x16x8xf32>
    %50 = vector.extract_strided_slice %40 {offsets = [1, 2, 40], sizes = [8, 16, 8], strides = [1, 1, 1]} : vector<18x24x72xf32> to vector<8x16x8xf32>
    %51 = arith.addf %49, %50 : vector<8x16x8xf32>
    %52 = vector.extract_strided_slice %40 {offsets = [2, 0, 48], sizes = [8, 16, 8], strides = [1, 1, 1]} : vector<18x24x72xf32> to vector<8x16x8xf32>
    %53 = arith.addf %51, %52 : vector<8x16x8xf32>
    %54 = vector.extract_strided_slice %40 {offsets = [2, 1, 56], sizes = [8, 16, 8], strides = [1, 1, 1]} : vector<18x24x72xf32> to vector<8x16x8xf32>
    %55 = arith.addf %53, %54 : vector<8x16x8xf32>
    %56 = vector.extract_strided_slice %40 {offsets = [2, 2, 64], sizes = [8, 16, 8], strides = [1, 1, 1]} : vector<18x24x72xf32> to vector<8x16x8xf32>
    %57 = arith.addf %55, %56 : vector<8x16x8xf32>
    %58 = vector.shape_cast %57 : vector<8x16x8xf32> to vector<8x128xf32>
    %c0_36 = arith.constant 0 : index
    %c0_37 = arith.constant 0 : index
    %c0_38 = arith.constant 0 : index
    %59 = vector.load %arg8[%c0_36, %c0_37, %c0_38] : memref<1x16x128xf32, #tpu.memory_space<vmem>>, vector<1x8x128xf32>
    %60 = vector.shape_cast %59 : vector<1x8x128xf32> to vector<8x128xf32>
    %61 = vector.shape_cast %58 : vector<8x128xf32> to vector<1x8x128xf32>
    tpu.vector_store %arg8[%c0_36, %c0_37, %c0_38], %61 {strides = array<i32>} : memref<1x16x128xf32, #tpu.memory_space<vmem>>, vector<1x8x128xf32>,
    %62 = vector.extract_strided_slice %40 {offsets = [8, 0, 0], sizes = [8, 16, 8], strides = [1, 1, 1]} : vector<18x24x72xf32> to vector<8x16x8xf32>
    %63 = vector.extract_strided_slice %40 {offsets = [8, 1, 8], sizes = [8, 16, 8], strides = [1, 1, 1]} : vector<18x24x72xf32> to vector<8x16x8xf32>
    %64 = arith.addf %62, %63 : vector<8x16x8xf32>
    %65 = vector.extract_strided_slice %40 {offsets = [8, 2, 16], sizes = [8, 16, 8], strides = [1, 1, 1]} : vector<18x24x72xf32> to vector<8x16x8xf32>
    %66 = arith.addf %64, %65 : vector<8x16x8xf32>
    %67 = vector.extract_strided_slice %40 {offsets = [9, 0, 24], sizes = [8, 16, 8], strides = [1, 1, 1]} : vector<18x24x72xf32> to vector<8x16x8xf32>
    %68 = arith.addf %66, %67 : vector<8x16x8xf32>
    %69 = vector.extract_strided_slice %40 {offsets = [9, 1, 32], sizes = [8, 16, 8], strides = [1, 1, 1]} : vector<18x24x72xf32> to vector<8x16x8xf32>
    %70 = arith.addf %68, %69 : vector<8x16x8xf32>
    %71 = vector.extract_strided_slice %40 {offsets = [9, 2, 40], sizes = [8, 16, 8], strides = [1, 1, 1]} : vector<18x24x72xf32> to vector<8x16x8xf32>
    %72 = arith.addf %70, %71 : vector<8x16x8xf32>
    %73 = vector.extract_strided_slice %40 {offsets = [10, 0, 48], sizes = [8, 16, 8], strides = [1, 1, 1]} : vector<18x24x72xf32> to vector<8x16x8xf32>
    %74 = arith.addf %72, %73 : vector<8x16x8xf32>
    %75 = vector.extract_strided_slice %40 {offsets = [10, 1, 56], sizes = [8, 16, 8], strides = [1, 1, 1]} : vector<18x24x72xf32> to vector<8x16x8xf32>
    %76 = arith.addf %74, %75 : vector<8x16x8xf32>
    %77 = vector.extract_strided_slice %40 {offsets = [10, 2, 64], sizes = [8, 16, 8], strides = [1, 1, 1]} : vector<18x24x72xf32> to vector<8x16x8xf32>
    %78 = arith.addf %76, %77 : vector<8x16x8xf32>
    %79 = vector.shape_cast %78 : vector<8x16x8xf32> to vector<8x128xf32>
    %c0_39 = arith.constant 0 : index
    %c8 = arith.constant 8 : index
    %c0_40 = arith.constant 0 : index
    %80 = vector.load %arg8[%c0_39, %c8, %c0_40] : memref<1x16x128xf32, #tpu.memory_space<vmem>>, vector<1x8x128xf32>
    %81 = vector.shape_cast %80 : vector<1x8x128xf32> to vector<8x128xf32>
    %82 = vector.shape_cast %79 : vector<8x128xf32> to vector<1x8x128xf32>
    tpu.vector_store %arg8[%c0_39, %c8, %c0_40], %82 {strides = array<i32>} : memref<1x16x128xf32, #tpu.memory_space<vmem>>, vector<1x8x128xf32>,
    return
  }
  func.func @transform_0(%arg0: i32, %arg1: i32) -> (i32, i32, i32, i32) {
    %c0_i32 = arith.constant 0 : i32
    %c0_i32_0 = arith.constant 0 : i32
    %c0_i32_1 = arith.constant 0 : i32
    return %arg0, %arg1, %c0_i32, %c0_i32_0 : i32, i32, i32, i32
  }
  func.func @transform_1(%arg0: i32, %arg1: i32) -> (i32, i32) {
    %c0_i32 = arith.constant 0 : i32
    %c0_i32_0 = arith.constant 0 : i32
    %c0_i32_1 = arith.constant 0 : i32
    return %c0_i32, %c0_i32_0 : i32, i32
  }
  func.func @transform_2(%arg0: i32, %arg1: i32) -> (i32, i32) {
    %c0_i32 = arith.constant 0 : i32
    %c0_i32_0 = arith.constant 0 : i32
    %c0_i32_1 = arith.constant 0 : i32
    return %c0_i32, %c0_i32_0 : i32, i32
  }
  func.func @transform_3(%arg0: i32, %arg1: i32) -> (i32, i32) {
    %c0_i32 = arith.constant 0 : i32
    %c0_i32_0 = arith.constant 0 : i32
    %c0_i32_1 = arith.constant 0 : i32
    return %c0_i32, %c0_i32_0 : i32, i32
  }
  func.func @transform_4(%arg0: i32, %arg1: i32) -> (i32, i32) {
    %c0_i32 = arith.constant 0 : i32
    %c0_i32_0 = arith.constant 0 : i32
    %c0_i32_1 = arith.constant 0 : i32
    return %c0_i32, %c0_i32_0 : i32, i32
  }
  func.func @transform_5(%arg0: i32, %arg1: i32) -> (i32, i32) {
    %c0_i32 = arith.constant 0 : i32
    %c0_i32_0 = arith.constant 0 : i32
    %c0_i32_1 = arith.constant 0 : i32
    return %c0_i32, %c0_i32_0 : i32, i32
  }
  func.func @transform_6(%arg0: i32, %arg1: i32) -> (i32, i32, i32) {
    %c0_i32 = arith.constant 0 : i32
    %c0_i32_0 = arith.constant 0 : i32
    return %arg0, %arg1, %c0_i32 : i32, i32, i32
  }
}

</mosaic_0001>

<llo_original>
// kernel: tpu_custom_call.1
$region0: #{tpu_custom_call.1}
  #allocation0 [shape = 'u32[]', space=smem, size = 0x4, offset = 0x4, fixed_abs, tag = 'smem constant byte address 0x4 - core index']
  #allocation1 [shape = 'u32[144,128]{1,0:T(1,128)}', space=vmem, size = 0x12000, scoped, tag = 'internal scratch']
  #allocation2 [shape = 'bf16[18,24,32]{2,1,0:T(8,128)(2,1)}', space=vmem, size = 0x1b000, scoped, tag = 'scratch operand']
  %s0 = inlined_call_operand.hbm [shape: f32[2,16,16,16], index: 0, kind: input, shape index: {}]
  %s1 = inlined_call_operand.hbm [shape: f32[1,16], index: 1, kind: input, shape index: {}]
  %s2 = inlined_call_operand.hbm [shape: f32[1,16], index: 2, kind: input, shape index: {}]
  %s3 = inlined_call_operand.hbm [shape: bf16[16,32], index: 3, kind: input, shape index: {}]
  %s4 = inlined_call_operand.hbm [shape: f32[1,32], index: 4, kind: input, shape index: {}]
  %s5 = inlined_call_operand.hbm [shape: bf16[32,72], index: 5, kind: input, shape index: {}]
  %s6 = inlined_call_operand.hbm [shape: f32[2,16,128], index: 6, kind: output, shape index: {}]
  %s7 = sld [smem:[#allocation0]]
  $region81: #{tpu_custom_call.1} parent=0
    _
  %s9 = ssub.s32 1, %s7
  %s10 = scalar_select 0, %s9, %s7
  $region1: #{tpu_custom_call.1} parent=0
    #allocation3 [shape = 'u8[262144]{0}', space=vmem, size = 0x40000, scoped, tag = 'input window, operand 0']
    #allocation4 [shape = 's32[2]{0}', space=sflag, size = 0x8, scoped, tag = 'scoped memory for tpu_custom_call.1']
    #allocation5 [shape = 's32[2]{0}', space=sflag, size = 0x8, scoped, tag = 'scoped memory for tpu_custom_call.1']
    #allocation6 [shape = 'u8[512]{0}', space=vmem, size = 0x400, scoped, tag = 'input window, operand 1, single buffered']
    #allocation7 [shape = 's32[1]{0}', space=sflag, size = 0x4, scoped, tag = 'scoped memory for tpu_custom_call.1']
    #allocation8 [shape = 'u8[512]{0}', space=vmem, size = 0x400, scoped, tag = 'input window, operand 2, single buffered']
    #allocation9 [shape = 'u8[4096]{0}', space=vmem, size = 0x1000, scoped, tag = 'input window, operand 3, single buffered']
    #allocation10 [shape = 's32[1]{0}', space=sflag, size = 0x4, scoped, tag = 'scoped memory for tpu_custom_call.1']
    #allocation11 [shape = 'u8[512]{0}', space=vmem, size = 0x400, scoped, tag = 'input window, operand 4, single buffered']
    #allocation12 [shape = 'u8[8192]{0}', space=vmem, size = 0x2000, scoped, tag = 'input window, operand 5, single buffered']
    #allocation13 [shape = 's32[1]{0}', space=sflag, size = 0x4, scoped, tag = 'scoped memory for tpu_custom_call.1']
    #allocation14 [shape = 'u8[16384]{0}', space=vmem, size = 0x4000, scoped, tag = 'output window, operand 0']
    %11 = vsyncpa [#allocation4], 0
    %s12 = scalar_lea.sflag [#allocation4], 1
    %13 = vsyncpa %s12, 0
    %14 = vsyncpa [#allocation7], 0
    %15 = vsyncpa [#allocation10], 0
    %16 = vsyncpa [#allocation13], 0
    %17 = vsyncpa [#allocation5], 0
    %s18 = scalar_lea.sflag [#allocation5], 1
    %19 = vsyncpa %s18, 0
    loop: start=0, step=1, limit=4
    $region2: #{tpu_custom_call.1} parent=1 // loop_pre_header
      _
    $region3: #{tpu_custom_call.1} parent=1 // loop_header
      %s21 = sphi 0, %s25
      %p22 = scmp.ge.s32.totalorder %s21, 4
      %s28 = sphi 0, %s40
      %s29 = sphi 0, %s36
      %s30 = sphi 0, %s28
      %s31 = sphi 0, %s29
      %s32 = sphi 0, %s30
      %s33 = sphi 0, %s31
      %s45 = sphi 0, %s47
      %s48 = sphi 0, %s45
      %s49 = sphi 0, %s48
      %s65 = sphi 0, %s49
      %s69 = sphi 0, %s69
      %s71 = sphi 0, %s69
      %s72 = sphi 0, %s71
      %s86 = sphi 0, %s72
      %s90 = sphi 0, %s90
      %s92 = sphi 0, %s90
      %s93 = sphi 0, %s92
      %s107 = sphi 0, %s93
      %s111 = sphi 0, %s111
      %s113 = sphi 0, %s111
      %s114 = sphi 0, %s113
      %s128 = sphi 0, %s114
      %s132 = sphi 0, %s132
      %s134 = sphi 0, %s132
      %s135 = sphi 0, %s134
      %s149 = sphi 0, %s135
      %s153 = sphi 0, %s153
      %s155 = sphi 0, %s153
      %s156 = sphi 0, %s155
      %s170 = sphi 0, %s156
      %s178 = sphi 0, %s180
      %s181 = sphi 0, %s178
      %s182 = sphi 0, %s181
      %s198 = sphi 0, %s182
    $region4: #{tpu_custom_call.1} parent=1 // loop_header_branch
      %24 = sbr.rel (%p22) target = $region8
    $region5: #{tpu_custom_call.1} parent=1 // loop_body
      %s26 = ssub.s32 %s21, 1
      %s27 = ssub.s32 %s21, 2
      %s34 = sadd.s32 1, %s29
      %p35 = scmp.ge.s32.totalorder %s34, 1
      %s36 = scalar_select %p35, 0, %s34
      %s37 = sadd.s32 1, %s28
      %s38 = scalar_select %p35, %s37, %s28
      %p39 = scmp.ge.s32.totalorder %s38, 2
      %s40 = scalar_select %p39, 0, %s38
      %s41 = ssub.s32 %s28, %s40
      %s42 = ssub.s32 %s29, %s36
      %s43 = sor.u32 %s41, %s42
      %p44 = scmp.eq.s32.totalorder %s43, 0
      %s46 = sadd.s32 %s45, 1
      %s47 = scalar_select %p44, %s45, %s46
      %p50 = pneg %p44
      %p51 = scmp.eq.s32.totalorder %s21, 1
      %p52 = por %p50, %p51
      %p53 = scmp.ne.s32.totalorder %s45, %s48
      %p54 = scmp.eq.s32.totalorder %s21, 0
      %p55 = por %p53, %p54
      %p56 = scmp.ne.s32.totalorder %s45, %s48
      %p57 = scmp.eq.s32.totalorder %s26, 1
      %p58 = por %p56, %p57
      %p59 = scmp.ne.s32.totalorder %s48, %s49
      %p60 = scmp.eq.s32.totalorder %s26, 0
      %p61 = por %p59, %p60
      %p62 = scmp.ne.s32.totalorder %s48, %s49
      %p63 = scmp.eq.s32.totalorder %s27, 1
      %p64 = por %p62, %p63
      %p66 = scmp.ne.s32.totalorder %s49, %s65
      %p67 = scmp.eq.s32.totalorder %s27, 0
      %p68 = por %p66, %p67
      %s70 = sadd.s32 %s69, 1
      %p73 = scmp.eq.s32.totalorder %s21, 1
      %p74 = scmp.ne.s32.totalorder %s69, %s71
      %p75 = scmp.eq.s32.totalorder %s21, 0
      %p76 = por %p74, %p75
      %p77 = scmp.ne.s32.totalorder %s69, %s71
      %p78 = scmp.eq.s32.totalorder %s26, 1
      %p79 = por %p77, %p78
      %p80 = scmp.ne.s32.totalorder %s71, %s72
      %p81 = scmp.eq.s32.totalorder %s26, 0
      %p82 = por %p80, %p81
      %p83 = scmp.ne.s32.totalorder %s71, %s72
      %p84 = scmp.eq.s32.totalorder %s27, 1
      %p85 = por %p83, %p84
      %p87 = scmp.ne.s32.totalorder %s72, %s86
      %p88 = scmp.eq.s32.totalorder %s27, 0
      %p89 = por %p87, %p88
      %s91 = sadd.s32 %s90, 1
      %p94 = scmp.eq.s32.totalorder %s21, 1
      %p95 = scmp.ne.s32.totalorder %s90, %s92
      %p96 = scmp.eq.s32.totalorder %s21, 0
      %p97 = por %p95, %p96
      %p98 = scmp.ne.s32.totalorder %s90, %s92
      %p99 = scmp.eq.s32.totalorder %s26, 1
      %p100 = por %p98, %p99
      %p101 = scmp.ne.s32.totalorder %s92, %s93
      %p102 = scmp.eq.s32.totalorder %s26, 0
      %p103 = por %p101, %p102
      %p104 = scmp.ne.s32.totalorder %s92, %s93
      %p105 = scmp.eq.s32.totalorder %s27, 1
      %p106 = por %p104, %p105
      %p108 = scmp.ne.s32.totalorder %s93, %s107
      %p109 = scmp.eq.s32.totalorder %s27, 0
      %p110 = por %p108, %p109
      %s112 = sadd.s32 %s111, 1
      %p115 = scmp.eq.s32.totalorder %s21, 1
      %p116 = scmp.ne.s32.totalorder %s111, %s113
      %p117 = scmp.eq.s32.totalorder %s21, 0
      %p118 = por %p116, %p117
      %p119 = scmp.ne.s32.totalorder %s111, %s113
      %p120 = scmp.eq.s32.totalorder %s26, 1
      %p121 = por %p119, %p120
      %p122 = scmp.ne.s32.totalorder %s113, %s114
      %p123 = scmp.eq.s32.totalorder %s26, 0
      %p124 = por %p122, %p123
      %p125 = scmp.ne.s32.totalorder %s113, %s114
      %p126 = scmp.eq.s32.totalorder %s27, 1
      %p127 = por %p125, %p126
      %p129 = scmp.ne.s32.totalorder %s114, %s128
      %p130 = scmp.eq.s32.totalorder %s27, 0
      %p131 = por %p129, %p130
      %s133 = sadd.s32 %s132, 1
      %p136 = scmp.eq.s32.totalorder %s21, 1
      %p137 = scmp.ne.s32.totalorder %s132, %s134
      %p138 = scmp.eq.s32.totalorder %s21, 0
      %p139 = por %p137, %p138
      %p140 = scmp.ne.s32.totalorder %s132, %s134
      %p141 = scmp.eq.s32.totalorder %s26, 1
      %p142 = por %p140, %p141
      %p143 = scmp.ne.s32.totalorder %s134, %s135
      %p144 = scmp.eq.s32.totalorder %s26, 0
      %p145 = por %p143, %p144
      %p146 = scmp.ne.s32.totalorder %s134, %s135
      %p147 = scmp.eq.s32.totalorder %s27, 1
      %p148 = por %p146, %p147
      %p150 = scmp.ne.s32.totalorder %s135, %s149
      %p151 = scmp.eq.s32.totalorder %s27, 0
      %p152 = por %p150, %p151
      %s154 = sadd.s32 %s153, 1
      %p157 = scmp.eq.s32.totalorder %s21, 1
      %p158 = scmp.ne.s32.totalorder %s153, %s155
      %p159 = scmp.eq.s32.totalorder %s21, 0
      %p160 = por %p158, %p159
      %p161 = scmp.ne.s32.totalorder %s153, %s155
      %p162 = scmp.eq.s32.totalorder %s26, 1
      %p163 = por %p161, %p162
      %p164 = scmp.ne.s32.totalorder %s155, %s156
      %p165 = scmp.eq.s32.totalorder %s26, 0
      %p166 = por %p164, %p165
      %p167 = scmp.ne.s32.totalorder %s155, %s156
      %p168 = scmp.eq.s32.totalorder %s27, 1
      %p169 = por %p167, %p168
      %p171 = scmp.ne.s32.totalorder %s156, %s170
      %p172 = scmp.eq.s32.totalorder %s27, 0
      %p173 = por %p171, %p172
      %s174 = ssub.s32 %s28, %s40
      %s175 = ssub.s32 %s29, %s36
      %s176 = sor.u32 %s174, %s175
      %p177 = scmp.eq.s32.totalorder %s176, 0
      %s179 = sadd.s32 %s178, 1
      %s180 = scalar_select %p177, %s178, %s179
      %p183 = pneg %p177
      %p184 = scmp.eq.s32.totalorder %s21, 1
      %p185 = por %p183, %p184
      %p186 = scmp.ne.s32.totalorder %s178, %s181
      %p187 = scmp.eq.s32.totalorder %s21, 0
      %p188 = por %p186, %p187
      %p189 = scmp.ne.s32.totalorder %s178, %s181
      %p190 = scmp.eq.s32.totalorder %s26, 1
      %p191 = por %p189, %p190
      %p192 = scmp.ne.s32.totalorder %s181, %s182
      %p193 = scmp.eq.s32.totalorder %s26, 0
      %p194 = por %p192, %p193
      %p195 = scmp.ne.s32.totalorder %s181, %s182
      %p196 = scmp.eq.s32.totalorder %s27, 1
      %p197 = por %p195, %p196
      %p199 = scmp.ne.s32.totalorder %s182, %s198
      %p200 = scmp.eq.s32.totalorder %s27, 0
      %p201 = por %p199, %p200
      %p202 = scmp.le.s32.totalorder 1, %s21
      %p203 = scmp.lt.s32.totalorder %s21, 3
      %p204 = pnand %p202, %p203
      %p205 = pneg %p204
      // Predicated region
      $region9: #{tpu_custom_call.1} parent=5 // pred_check
        _
      $region10: #{tpu_custom_call.1} parent=5 // pred_check_branch
        %207 = sbr.rel (%p204) target = $region12
      $region11: #{tpu_custom_call.1} parent=5 // pred_region
        %s208 = ssub.s32 %s21, 1
        // Predicated region
        $region13: #{tpu_custom_call.1} parent=11 // pred_check
          %p209 = pneg %p82
        $region14: #{tpu_custom_call.1} parent=11 // pred_check_branch
          %211 = sbr.rel (%p209) target = $region16
        $region15: #{tpu_custom_call.1} parent=11 // pred_region
          %s213 = ssub.s32 16, 16
          %214 = vsyncadd [#allocation7], %s213
          %s216 = sshll.u32 [#allocation6], 4
          %s217 = int_to_ptr.vmem [resolvable:$true] %s216
          %219 = dma.hbm_to_vmem [thread:$0]  %s1, 16, %s217, [#allocation7]
        $region16: #{tpu_custom_call.1} parent=11 // pred_fallthru
          _
        // Predicated region
        $region17: #{tpu_custom_call.1} parent=11 // pred_check
          %p220 = pneg %p103
        $region18: #{tpu_custom_call.1} parent=11 // pred_check_branch
          %222 = sbr.rel (%p220) target = $region20
        $region19: #{tpu_custom_call.1} parent=11 // pred_region
          %s224 = ssub.s32 16, 16
          %225 = vsyncadd [#allocation7], %s224
          %s227 = sshll.u32 [#allocation8], 4
          %s228 = int_to_ptr.vmem [resolvable:$true] %s227
          %230 = dma.hbm_to_vmem [thread:$0]  %s2, 16, %s228, [#allocation7]
        $region20: #{tpu_custom_call.1} parent=11 // pred_fallthru
          _
        // Predicated region
        $region21: #{tpu_custom_call.1} parent=11 // pred_check
          %p231 = pneg %p124
        $region22: #{tpu_custom_call.1} parent=11 // pred_check_branch
          %233 = sbr.rel (%p231) target = $region24
        $region23: #{tpu_custom_call.1} parent=11 // pred_region
          %s235 = ssub.s32 128, 128
          %236 = vsyncadd [#allocation10], %s235
          %s237 = sshll.u32 [#allocation9], 4
          %s238 = int_to_ptr.vmem [resolvable:$true] %s237
          %243 = dma.hbm_to_vmem [thread:$0]  %s3, 128, %s238, [#allocation10], 64, 64, 4
        $region24: #{tpu_custom_call.1} parent=11 // pred_fallthru
          _
        // Predicated region
        $region25: #{tpu_custom_call.1} parent=11 // pred_check
          %p244 = pneg %p145
        $region26: #{tpu_custom_call.1} parent=11 // pred_check_branch
          %246 = sbr.rel (%p244) target = $region28
        $region27: #{tpu_custom_call.1} parent=11 // pred_region
          %s248 = ssub.s32 16, 16
          %249 = vsyncadd [#allocation10], %s248
          %s251 = sshll.u32 [#allocation11], 4
          %s252 = int_to_ptr.vmem [resolvable:$true] %s251
          %254 = dma.hbm_to_vmem [thread:$0]  %s4, 16, %s252, [#allocation10]
        $region28: #{tpu_custom_call.1} parent=11 // pred_fallthru
          _
        // Predicated region
        $region29: #{tpu_custom_call.1} parent=11 // pred_check
          %p255 = pneg %p166
        $region30: #{tpu_custom_call.1} parent=11 // pred_check_branch
          %257 = sbr.rel (%p255) target = $region32
        $region31: #{tpu_custom_call.1} parent=11 // pred_region
          %s259 = ssub.s32 256, 256
          %260 = vsyncadd [#allocation13], %s259
          %s261 = sshll.u32 [#allocation12], 4
          %s262 = int_to_ptr.vmem [resolvable:$true] %s261
          %267 = dma.hbm_to_vmem [thread:$0]  %s5, 256, %s262, [#allocation13], 64, 64, 4
        $region32: #{tpu_custom_call.1} parent=11 // pred_fallthru
          _
      $region12: #{tpu_custom_call.1} parent=5 // pred_fallthru
        _
      %p268 = scmp.lt.s32.totalorder %s21, 2
      // Predicated region
      $region33: #{tpu_custom_call.1} parent=5 // pred_check
        %p269 = pneg %p268
      $region34: #{tpu_custom_call.1} parent=5 // pred_check_branch
        %271 = sbr.rel (%p269) target = $region36
      $region35: #{tpu_custom_call.1} parent=5 // pred_region
        // Predicated region
        $region37: #{tpu_custom_call.1} parent=35 // pred_check
          %p272 = pneg %p55
        $region38: #{tpu_custom_call.1} parent=35 // pred_check_branch
          %274 = sbr.rel (%p272) target = $region40
        $region39: #{tpu_custom_call.1} parent=35 // pred_region
          %s275 = sand.u32 %s45, 1
          %s276 = scalar_lea.sflag [#allocation4], %s275
          %s277 = sand.u32 %s45, 1
          %s278 = smul.addr %s277, 256
          %s279 = scalar_lea.vmem [#allocation3], %s278
          %s280 = smul.u32 16, %s29
          %s282 = ssub.s32 4096, 4096
          %283 = vsyncadd %s276, %s282
          %s284 = smul.addr %s280, 2
          %s285 = smul.addr %s28, 32
          %s286 = sadd.s32 %s284, %s285
          %s287 = smul.addr %s286, 128
          %s288 = scalar_lea.hbm %s0, %s287
          %s289 = sshll.u32 %s279, 4
          %s290 = int_to_ptr.vmem [resolvable:$true] %s289
          %295 = dma.hbm_to_vmem [thread:$0]  %s288, 4096, %s290, %s276, 128, 128, 8
        $region40: #{tpu_custom_call.1} parent=35 // pred_fallthru
          _
      $region36: #{tpu_custom_call.1} parent=5 // pred_fallthru
        _
      %p296 = scmp.le.s32.totalorder 1, %s21
      %p297 = scmp.lt.s32.totalorder %s21, 3
      %p298 = pnand %p296, %p297
      %p299 = pneg %p298
      // Predicated region
      $region41: #{tpu_custom_call.1} parent=5 // pred_check
        _
      $region42: #{tpu_custom_call.1} parent=5 // pred_check_branch
        %301 = sbr.rel (%p298) target = $region44
      $region43: #{tpu_custom_call.1} parent=5 // pred_region
        %s302 = ssub.s32 %s21, 1
        %s303 = sand.u32 %s48, 1
        %s304 = scalar_lea.sflag [#allocation4], %s303
        %s305 = sand.u32 %s48, 1
        %s306 = smul.addr %s305, 256
        %s307 = scalar_lea.vmem [#allocation3], %s306
        // Predicated region
        $region45: #{tpu_custom_call.1} parent=43 // pred_check
          %p308 = pneg %p61
        $region46: #{tpu_custom_call.1} parent=43 // pred_check_branch
          %310 = sbr.rel (%p308) target = $region48
        $region47: #{tpu_custom_call.1} parent=43 // pred_region
          %311 = dma.done %s304, 4096
        $region48: #{tpu_custom_call.1} parent=43 // pred_fallthru
          _
        // Predicated region
        $region49: #{tpu_custom_call.1} parent=43 // pred_check
          %p312 = pneg %p82
        $region50: #{tpu_custom_call.1} parent=43 // pred_check_branch
          %314 = sbr.rel (%p312) target = $region52
        $region51: #{tpu_custom_call.1} parent=43 // pred_region
          %315 = dma.done [#allocation7], 16
        $region52: #{tpu_custom_call.1} parent=43 // pred_fallthru
          _
        // Predicated region
        $region53: #{tpu_custom_call.1} parent=43 // pred_check
          %p316 = pneg %p103
        $region54: #{tpu_custom_call.1} parent=43 // pred_check_branch
          %318 = sbr.rel (%p316) target = $region56
        $region55: #{tpu_custom_call.1} parent=43 // pred_region
          %319 = dma.done [#allocation7], 16
        $region56: #{tpu_custom_call.1} parent=43 // pred_fallthru
          _
        // Predicated region
        $region57: #{tpu_custom_call.1} parent=43 // pred_check
          %p320 = pneg %p124
        $region58: #{tpu_custom_call.1} parent=43 // pred_check_branch
          %322 = sbr.rel (%p320) target = $region60
        $region59: #{tpu_custom_call.1} parent=43 // pred_region
          %323 = dma.done [#allocation10], 128
        $region60: #{tpu_custom_call.1} parent=43 // pred_fallthru
          _
        // Predicated region
        $region61: #{tpu_custom_call.1} parent=43 // pred_check
          %p324 = pneg %p145
        $region62: #{tpu_custom_call.1} parent=43 // pred_check_branch
          %326 = sbr.rel (%p324) target = $region64
        $region63: #{tpu_custom_call.1} parent=43 // pred_region
          %327 = dma.done [#allocation10], 16
        $region64: #{tpu_custom_call.1} parent=43 // pred_fallthru
          _
        // Predicated region
        $region65: #{tpu_custom_call.1} parent=43 // pred_check
          %p328 = pneg %p166
        $region66: #{tpu_custom_call.1} parent=43 // pred_check_branch
          %330 = sbr.rel (%p328) target = $region68
        $region67: #{tpu_custom_call.1} parent=43 // pred_region
          %331 = dma.done [#allocation13], 256
        $region68: #{tpu_custom_call.1} parent=43 // pred_fallthru
          _
        %s332 = sand.u32 %s48, 1
        %s333 = scalar_lea.sflag [#allocation4], %s332
        %s334 = sand.u32 %s48, 1
        %s335 = smul.addr %s334, 256
        %s336 = scalar_lea.vmem [#allocation3], %s335
        %p337 = pneg %p61
        %p338 = pneg %p58
        %p339 = pneg %p82
        %p340 = pneg %p79
        %p341 = pneg %p103
        %p342 = pneg %p100
        %p343 = pneg %p124
        %p344 = pneg %p121
        %p345 = pneg %p145
        %p346 = pneg %p142
        %p347 = pneg %p166
        %p348 = pneg %p163
        %p349 = pneg %p194
        %p350 = pneg %p191
        %s351 = sand.u32 %s181, 1
        %s352 = scalar_lea.sflag [#allocation5], %s351
        %s353 = sand.u32 %s181, 1
        %s354 = smul.addr %s353, 16
        %s355 = scalar_lea.vmem [#allocation14], %s354
        %s356 = smul.u32 16, %s31
        %s357 = smul.u32 2, %s31
        %v359 = vld [vmem:[#allocation6] sm:$0x1]
        %v360 = vld [vmem:[#allocation8] sm:$0x1]
        %v361 = vld [vmem:[#allocation11] sm:$0x1]
        %v362 = vld [vmem:[#allocation9] sm:$0xf]
        %v363 = vld [vmem:[#allocation9 + $0x4] sm:$0xf]
        %vm364 = vcmask 253952
        %vm365 = vsmask.f32 256
        %vm366 = vmand %vm364, %vm365
        %v367 = vld [vmem:[#allocation2] sm:$0x1]
        %v368 = vsel %vm366, 0, %v367
        %369 = vst [vmem:[#allocation2] sm:$0x1] %v368
        %v370 = vld [vmem:[#allocation2 + $0xc] sm:$0x1]
        %v371 = vsel %vm366, 0, %v370
        %372 = vst [vmem:[#allocation2 + $0xc] sm:$0x1] %v371
        %v373 = vld [vmem:[#allocation2 + $0x18] sm:$0x1]
        %v374 = vsel %vm366, 0, %v373
        %375 = vst [vmem:[#allocation2 + $0x18] sm:$0x1] %v374
        %v376 = vld [vmem:[#allocation2 + $0x24] sm:$0x1]
        %v377 = vsel %vm366, 0, %v376
        %378 = vst [vmem:[#allocation2 + $0x24] sm:$0x1] %v377
        %v379 = vld [vmem:[#allocation2 + $0x30] sm:$0x1]
        %v380 = vsel %vm366, 0, %v379
        %381 = vst [vmem:[#allocation2 + $0x30] sm:$0x1] %v380
        %v382 = vld [vmem:[#allocation2 + $0x3c] sm:$0x1]
        %v383 = vsel %vm366, 0, %v382
        %384 = vst [vmem:[#allocation2 + $0x3c] sm:$0x1] %v383
        %v385 = vld [vmem:[#allocation2 + $0x48] sm:$0x1]
        %v386 = vsel %vm366, 0, %v385
        %387 = vst [vmem:[#allocation2 + $0x48] sm:$0x1] %v386
        %v388 = vld [vmem:[#allocation2 + $0x54] sm:$0x1]
        %v389 = vsel %vm366, 0, %v388
        %390 = vst [vmem:[#allocation2 + $0x54] sm:$0x1] %v389
        %v391 = vld [vmem:[#allocation2 + $0x60] sm:$0x1]
        %v392 = vsel %vm366, 0, %v391
        %393 = vst [vmem:[#allocation2 + $0x60] sm:$0x1] %v392
        %v394 = vld [vmem:[#allocation2 + $0x6c] sm:$0x1]
        %v395 = vsel %vm366, 0, %v394
        %396 = vst [vmem:[#allocation2 + $0x6c] sm:$0x1] %v395
        %v397 = vld [vmem:[#allocation2 + $0x78] sm:$0x1]
        %v398 = vsel %vm366, 0, %v397
        %399 = vst [vmem:[#allocation2 + $0x78] sm:$0x1] %v398
        %v400 = vld [vmem:[#allocation2 + $0x84] sm:$0x1]
        %v401 = vsel %vm366, 0, %v400
        %402 = vst [vmem:[#allocation2 + $0x84] sm:$0x1] %v401
        %v403 = vld [vmem:[#allocation2 + $0x90] sm:$0x1]
        %v404 = vsel %vm366, 0, %v403
        %405 = vst [vmem:[#allocation2 + $0x90] sm:$0x1] %v404
        %v406 = vld [vmem:[#allocation2 + $0x9c] sm:$0x1]
        %v407 = vsel %vm366, 0, %v406
        %408 = vst [vmem:[#allocation2 + $0x9c] sm:$0x1] %v407
        %v409 = vld [vmem:[#allocation2 + $0xa8] sm:$0x1]
        %v410 = vsel %vm366, 0, %v409
        %411 = vst [vmem:[#allocation2 + $0xa8] sm:$0x1] %v410
        %v412 = vld [vmem:[#allocation2 + $0xb4] sm:$0x1]
        %v413 = vsel %vm366, 0, %v412
        %414 = vst [vmem:[#allocation2 + $0xb4] sm:$0x1] %v413
        %v415 = vld [vmem:[#allocation2 + $0xc0] sm:$0x1]
        %v416 = vsel %vm366, 0, %v415
        %417 = vst [vmem:[#allocation2 + $0xc0] sm:$0x1] %v416
        %v418 = vld [vmem:[#allocation2 + $0xcc] sm:$0x1]
        %v419 = vsel %vm366, 0, %v418
        %420 = vst [vmem:[#allocation2 + $0xcc] sm:$0x1] %v419
        %vm421 = vcmask 257024
        %vm422 = vsmask.f32 7938
        %vm423 = vmand %vm421, %vm422
        %v424 = vld [vmem:[#allocation2 + $0x8] sm:$0xf]
        %v425 = vsel %vm423, 0, %v424
        %426 = vst [vmem:[#allocation2 + $0x8] sm:$0xf] %v425
        %v427 = vld [vmem:[#allocation2 + $0x14] sm:$0xf]
        %v428 = vsel %vm423, 0, %v427
        %429 = vst [vmem:[#allocation2 + $0x14] sm:$0xf] %v428
        %v430 = vld [vmem:[#allocation2 + $0x20] sm:$0xf]
        %v431 = vsel %vm423, 0, %v430
        %432 = vst [vmem:[#allocation2 + $0x20] sm:$0xf] %v431
        %v433 = vld [vmem:[#allocation2 + $0x2c] sm:$0xf]
        %v434 = vsel %vm423, 0, %v433
        %435 = vst [vmem:[#allocation2 + $0x2c] sm:$0xf] %v434
        %v436 = vld [vmem:[#allocation2 + $0x38] sm:$0xf]
        %v437 = vsel %vm423, 0, %v436
        %438 = vst [vmem:[#allocation2 + $0x38] sm:$0xf] %v437
        %v439 = vld [vmem:[#allocation2 + $0x44] sm:$0xf]
        %v440 = vsel %vm423, 0, %v439
        %441 = vst [vmem:[#allocation2 + $0x44] sm:$0xf] %v440
        %v442 = vld [vmem:[#allocation2 + $0x50] sm:$0xf]
        %v443 = vsel %vm423, 0, %v442
        %444 = vst [vmem:[#allocation2 + $0x50] sm:$0xf] %v443
        %v445 = vld [vmem:[#allocation2 + $0x5c] sm:$0xf]
        %v446 = vsel %vm423, 0, %v445
        %447 = vst [vmem:[#allocation2 + $0x5c] sm:$0xf] %v446
        %v448 = vld [vmem:[#allocation2 + $0x68] sm:$0xf]
        %v449 = vsel %vm423, 0, %v448
        %450 = vst [vmem:[#allocation2 + $0x68] sm:$0xf] %v449
        %v451 = vld [vmem:[#allocation2 + $0x74] sm:$0xf]
        %v452 = vsel %vm423, 0, %v451
        %453 = vst [vmem:[#allocation2 + $0x74] sm:$0xf] %v452
        %v454 = vld [vmem:[#allocation2 + $0x80] sm:$0xf]
        %v455 = vsel %vm423, 0, %v454
        %456 = vst [vmem:[#allocation2 + $0x80] sm:$0xf] %v455
        %v457 = vld [vmem:[#allocation2 + $0x8c] sm:$0xf]
        %v458 = vsel %vm423, 0, %v457
        %459 = vst [vmem:[#allocation2 + $0x8c] sm:$0xf] %v458
        %v460 = vld [vmem:[#allocation2 + $0x98] sm:$0xf]
        %v461 = vsel %vm423, 0, %v460
        %462 = vst [vmem:[#allocation2 + $0x98] sm:$0xf] %v461
        %v463 = vld [vmem:[#allocation2 + $0xa4] sm:$0xf]
        %v464 = vsel %vm423, 0, %v463
        %465 = vst [vmem:[#allocation2 + $0xa4] sm:$0xf] %v464
        %v466 = vld [vmem:[#allocation2 + $0xb0] sm:$0xf]
        %v467 = vsel %vm423, 0, %v466
        %468 = vst [vmem:[#allocation2 + $0xb0] sm:$0xf] %v467
        %v469 = vld [vmem:[#allocation2 + $0xbc] sm:$0xf]
        %v470 = vsel %vm423, 0, %v469
        %471 = vst [vmem:[#allocation2 + $0xbc] sm:$0xf] %v470
        %v472 = vld [vmem:[#allocation2 + $0xc8] sm:$0xf]
        %v473 = vsel %vm423, 0, %v472
        %474 = vst [vmem:[#allocation2 + $0xc8] sm:$0xf] %v473
        %v475 = vld [vmem:[#allocation2 + $0xd4] sm:$0xf]
        %v476 = vsel %vm423, 0, %v475
        %477 = vst [vmem:[#allocation2 + $0xd4] sm:$0xf] %v476
        %v478 = vld [vmem:[%s307] sm:$0xff]
        %v479 = vld [vmem:[%s307 + $0x8] sm:$0xff]
        %v480 = vld [vmem:[%s307 + $0x10] sm:$0xff]
        %v481 = vld [vmem:[%s307 + $0x18] sm:$0xff]
        %v482 = vld [vmem:[%s307 + $0x20] sm:$0xff]
        %v483 = vld [vmem:[%s307 + $0x28] sm:$0xff]
        %v484 = vld [vmem:[%s307 + $0x30] sm:$0xff]
        %v485 = vld [vmem:[%s307 + $0x38] sm:$0xff]
        %v486 = vld [vmem:[%s307 + $0x40] sm:$0xff]
        %v487 = vld [vmem:[%s307 + $0x48] sm:$0xff]
        %v488 = vld [vmem:[%s307 + $0x50] sm:$0xff]
        %v489 = vld [vmem:[%s307 + $0x58] sm:$0xff]
        %v490 = vld [vmem:[%s307 + $0x60] sm:$0xff]
        %v491 = vld [vmem:[%s307 + $0x68] sm:$0xff]
        %v492 = vld [vmem:[%s307 + $0x70] sm:$0xff]
        %v493 = vld [vmem:[%s307 + $0x78] sm:$0xff]
        %v494 = vld [vmem:[%s307 + $0x80] sm:$0xff]
        %v495 = vld [vmem:[%s307 + $0x88] sm:$0xff]
        %v496 = vld [vmem:[%s307 + $0x90] sm:$0xff]
        %v497 = vld [vmem:[%s307 + $0x98] sm:$0xff]
        %v498 = vld [vmem:[%s307 + $0xa0] sm:$0xff]
        %v499 = vld [vmem:[%s307 + $0xa8] sm:$0xff]
        %v500 = vld [vmem:[%s307 + $0xb0] sm:$0xff]
        %v501 = vld [vmem:[%s307 + $0xb8] sm:$0xff]
        %v502 = vld [vmem:[%s307 + $0xc0] sm:$0xff]
        %v503 = vld [vmem:[%s307 + $0xc8] sm:$0xff]
        %v504 = vld [vmem:[%s307 + $0xd0] sm:$0xff]
        %v505 = vld [vmem:[%s307 + $0xd8] sm:$0xff]
        %v506 = vld [vmem:[%s307 + $0xe0] sm:$0xff]
        %v507 = vld [vmem:[%s307 + $0xe8] sm:$0xff]
        %v508 = vld [vmem:[%s307 + $0xf0] sm:$0xff]
        %v509 = vld [vmem:[%s307 + $0xf8] sm:$0xff]
        %v511 = vlaneseq
        %v512 = vshrl.u32 %v511, 7
        %v513 = vsub.s32 0, %v512
        %v514 = vrot.slane %v359, %v513
        %v516 = vmul.f32 %v478, %v514
        %v517 = vmul.f32 %v479, %v514
        %v518 = vmul.f32 %v480, %v514
        %v519 = vmul.f32 %v481, %v514
        %v520 = vmul.f32 %v482, %v514
        %v521 = vmul.f32 %v483, %v514
        %v522 = vmul.f32 %v484, %v514
        %v523 = vmul.f32 %v485, %v514
        %v524 = vmul.f32 %v486, %v514
        %v525 = vmul.f32 %v487, %v514
        %v526 = vmul.f32 %v488, %v514
        %v527 = vmul.f32 %v489, %v514
        %v528 = vmul.f32 %v490, %v514
        %v529 = vmul.f32 %v491, %v514
        %v530 = vmul.f32 %v492, %v514
        %v531 = vmul.f32 %v493, %v514
        %v532 = vmul.f32 %v494, %v514
        %v533 = vmul.f32 %v495, %v514
        %v534 = vmul.f32 %v496, %v514
        %v535 = vmul.f32 %v497, %v514
        %v536 = vmul.f32 %v498, %v514
        %v537 = vmul.f32 %v499, %v514
        %v538 = vmul.f32 %v500, %v514
        %v539 = vmul.f32 %v501, %v514
        %v540 = vmul.f32 %v502, %v514
        %v541 = vmul.f32 %v503, %v514
        %v542 = vmul.f32 %v504, %v514
        %v543 = vmul.f32 %v505, %v514
        %v544 = vmul.f32 %v506, %v514
        %v545 = vmul.f32 %v507, %v514
        %v546 = vmul.f32 %v508, %v514
        %v547 = vmul.f32 %v509, %v514
        %v549 = vlaneseq
        %v550 = vshrl.u32 %v549, 7
        %v551 = vsub.s32 0, %v550
        %v552 = vrot.slane %v360, %v551
        %v554 = vadd.f32 %v516, %v552
        %v555 = vadd.f32 %v517, %v552
        %v556 = vadd.f32 %v518, %v552
        %v557 = vadd.f32 %v519, %v552
        %v558 = vadd.f32 %v520, %v552
        %v559 = vadd.f32 %v521, %v552
        %v560 = vadd.f32 %v522, %v552
        %v561 = vadd.f32 %v523, %v552
        %v562 = vadd.f32 %v524, %v552
        %v563 = vadd.f32 %v525, %v552
        %v564 = vadd.f32 %v526, %v552
        %v565 = vadd.f32 %v527, %v552
        %v566 = vadd.f32 %v528, %v552
        %v567 = vadd.f32 %v529, %v552
        %v568 = vadd.f32 %v530, %v552
        %v569 = vadd.f32 %v531, %v552
        %v570 = vadd.f32 %v532, %v552
        %v571 = vadd.f32 %v533, %v552
        %v572 = vadd.f32 %v534, %v552
        %v573 = vadd.f32 %v535, %v552
        %v574 = vadd.f32 %v536, %v552
        %v575 = vadd.f32 %v537, %v552
        %v576 = vadd.f32 %v538, %v552
        %v577 = vadd.f32 %v539, %v552
        %v578 = vadd.f32 %v540, %v552
        %v579 = vadd.f32 %v541, %v552
        %v580 = vadd.f32 %v542, %v552
        %v581 = vadd.f32 %v543, %v552
        %v582 = vadd.f32 %v544, %v552
        %v583 = vadd.f32 %v545, %v552
        %v584 = vadd.f32 %v546, %v552
        %v585 = vadd.f32 %v547, %v552
        %v586 = vmax.f32 %v554, 0.0
        %v587 = vmax.f32 %v555, 0.0
        %v588 = vmax.f32 %v556, 0.0
        %v589 = vmax.f32 %v557, 0.0
        %v590 = vmax.f32 %v558, 0.0
        %v591 = vmax.f32 %v559, 0.0
        %v592 = vmax.f32 %v560, 0.0
        %v593 = vmax.f32 %v561, 0.0
        %v594 = vmax.f32 %v562, 0.0
        %v595 = vmax.f32 %v563, 0.0
        %v596 = vmax.f32 %v564, 0.0
        %v597 = vmax.f32 %v565, 0.0
        %v598 = vmax.f32 %v566, 0.0
        %v599 = vmax.f32 %v567, 0.0
        %v600 = vmax.f32 %v568, 0.0
        %v601 = vmax.f32 %v569, 0.0
        %v602 = vmax.f32 %v570, 0.0
        %v603 = vmax.f32 %v571, 0.0
        %v604 = vmax.f32 %v572, 0.0
        %v605 = vmax.f32 %v573, 0.0
        %v606 = vmax.f32 %v574, 0.0
        %v607 = vmax.f32 %v575, 0.0
        %v608 = vmax.f32 %v576, 0.0
        %v609 = vmax.f32 %v577, 0.0
        %v610 = vmax.f32 %v578, 0.0
        %v611 = vmax.f32 %v579, 0.0
        %v612 = vmax.f32 %v580, 0.0
        %v613 = vmax.f32 %v581, 0.0
        %v614 = vmax.f32 %v582, 0.0
        %v615 = vmax.f32 %v583, 0.0
        %v616 = vmax.f32 %v584, 0.0
        %v617 = vmax.f32 %v585, 0.0
        %v618 = vpack.c.bf16 %v587, %v586
        %v619 = vpack.c.bf16 %v589, %v588
        %v620 = vpack.c.bf16 %v591, %v590
        %v621 = vpack.c.bf16 %v593, %v592
        %v622 = vpack.c.bf16 %v595, %v594
        %v623 = vpack.c.bf16 %v597, %v596
        %v624 = vpack.c.bf16 %v599, %v598
        %v625 = vpack.c.bf16 %v601, %v600
        %v626 = vpack.c.bf16 %v603, %v602
        %v627 = vpack.c.bf16 %v605, %v604
        %v628 = vpack.c.bf16 %v607, %v606
        %v629 = vpack.c.bf16 %v609, %v608
        %v630 = vpack.c.bf16 %v611, %v610
        %v631 = vpack.c.bf16 %v613, %v612
        %v632 = vpack.c.bf16 %v615, %v614
        %v633 = vpack.c.bf16 %v617, %v616
        %v635 = vlaneseq
        %v636 = vshrl.u32 %v635, 7
        %v637 = vsub.s32 0, %v636
        %v638 = vrot.slane %v361, %v637
        %v642 = vunpack.c.l.b16 %v362
        %v643 = vunpack.c.l.b16 %v363
        %v644 = vpack.c.b16 %v643, %v642
        %vm646 = vcmask 130048
        %v648 = vsel %vm646, %v618, 0
        %v651 = vsel %vm646, %v619, 0
        %v654 = vsel %vm646, %v620, 0
        %v657 = vsel %vm646, %v621, 0
        %v660 = vsel %vm646, %v622, 0
        %v663 = vsel %vm646, %v623, 0
        %v666 = vsel %vm646, %v624, 0
        %v669 = vsel %vm646, %v625, 0
        %v672 = vsel %vm646, %v626, 0
        %v675 = vsel %vm646, %v627, 0
        %v678 = vsel %vm646, %v628, 0
        %v681 = vsel %vm646, %v629, 0
        %v684 = vsel %vm646, %v630, 0
        %v687 = vsel %vm646, %v631, 0
        %v690 = vsel %vm646, %v632, 0
        %v693 = vsel %vm646, %v633, 0
        %695 = vmatprep.subr.bf16.mxu0 0
        %696 = vmatpush1.bf16.msra.mxu0 %v644
        %697 = vmatprep.subr.bf16.mxu0 0
        %698 = vmatpush1.bf16.msra.mxu0 0
        %699 = vmatprep.subr.bf16.mxu0 0
        %700 = vmatpush1.bf16.msra.mxu0 0
        %701 = vmatprep.subr.bf16.mxu0 0
        %702 = vmatpush1.bf16.msra.mxu0 0
        %703 = vmatprep.subr.bf16.mxu0 0
        %704 = vmatpush1.bf16.msra.mxu0 0
        %705 = vmatprep.subr.bf16.mxu0 0
        %706 = vmatpush1.bf16.msra.mxu0 0
        %707 = vmatprep.subr.bf16.mxu0 0
        %708 = vmatpush1.bf16.msra.mxu0 0
        %709 = vmatprep.subr.bf16.mxu0 0
        %710 = vmatpush1.bf16.msra.mxu0 0
        %711 = vmatprep.subr.bf16.mxu0 0
        %712 = vmatpush1.bf16.msra.mxu0 0
        %713 = vmatprep.subr.bf16.mxu0 0
        %714 = vmatpush1.bf16.msra.mxu0 0
        %715 = vmatprep.subr.bf16.mxu0 0
        %716 = vmatpush1.bf16.msra.mxu0 0
        %717 = vmatprep.subr.bf16.mxu0 0
        %718 = vmatpush1.bf16.msra.mxu0 0
        %719 = vmatprep.subr.bf16.mxu0 0
        %720 = vmatpush1.bf16.msra.mxu0 0
        %721 = vmatprep.subr.bf16.mxu0 0
        %722 = vmatpush1.bf16.msra.mxu0 0
        %723 = vmatprep.subr.bf16.mxu0 0
        %724 = vmatpush1.bf16.msra.mxu0 0
        %725 = vmatprep.subr.bf16.mxu0 0
        %726 = vmatpush1.bf16.msra.mxu0 0
        %727 = vmatprep.mubr.bf16.mxu0 0
        %728 = vmatmul.mubr.bf16.gmra.mrb[0].mxu0 %v648
        %v729 = vpop.f32.mrb[0].mxu0
        %v730 = vadd.f32 %v638, %v729
        %v731 = vpop.f32.mrb[0].mxu0
        %v732 = vpop.f32.mrb[0].mxu0
        %v733 = vadd.f32 %v638, %v732
        %v734 = vpop.f32.mrb[0].mxu0
        %735 = vmatprep.mubr.bf16.mxu0 0
        %736 = vmatmul.mubr.bf16.gmra.mrb[0].mxu0 %v651
        %v737 = vpop.f32.mrb[0].mxu0
        %v738 = vadd.f32 %v638, %v737
        %v739 = vpop.f32.mrb[0].mxu0
        %v740 = vpop.f32.mrb[0].mxu0
        %v741 = vadd.f32 %v638, %v740
        %v742 = vpop.f32.mrb[0].mxu0
        %743 = vmatprep.mubr.bf16.mxu0 0
        %744 = vmatmul.mubr.bf16.gmra.mrb[0].mxu0 %v654
        %v745 = vpop.f32.mrb[0].mxu0
        %v746 = vadd.f32 %v638, %v745
        %v747 = vpop.f32.mrb[0].mxu0
        %v748 = vpop.f32.mrb[0].mxu0
        %v749 = vadd.f32 %v638, %v748
        %v750 = vpop.f32.mrb[0].mxu0
        %751 = vmatprep.mubr.bf16.mxu0 0
        %752 = vmatmul.mubr.bf16.gmra.mrb[0].mxu0 %v657
        %v753 = vpop.f32.mrb[0].mxu0
        %v754 = vadd.f32 %v638, %v753
        %v755 = vpop.f32.mrb[0].mxu0
        %v756 = vpop.f32.mrb[0].mxu0
        %v757 = vadd.f32 %v638, %v756
        %v758 = vpop.f32.mrb[0].mxu0
        %759 = vmatprep.mubr.bf16.mxu0 0
        %760 = vmatmul.mubr.bf16.gmra.mrb[0].mxu0 %v660
        %v761 = vpop.f32.mrb[0].mxu0
        %v762 = vadd.f32 %v638, %v761
        %v763 = vpop.f32.mrb[0].mxu0
        %v764 = vpop.f32.mrb[0].mxu0
        %v765 = vadd.f32 %v638, %v764
        %v766 = vpop.f32.mrb[0].mxu0
        %767 = vmatprep.mubr.bf16.mxu0 0
        %768 = vmatmul.mubr.bf16.gmra.mrb[0].mxu0 %v663
        %v769 = vpop.f32.mrb[0].mxu0
        %v770 = vadd.f32 %v638, %v769
        %v771 = vpop.f32.mrb[0].mxu0
        %v772 = vpop.f32.mrb[0].mxu0
        %v773 = vadd.f32 %v638, %v772
        %v774 = vpop.f32.mrb[0].mxu0
        %775 = vmatprep.mubr.bf16.mxu0 0
        %776 = vmatmul.mubr.bf16.gmra.mrb[0].mxu0 %v666
        %v777 = vpop.f32.mrb[0].mxu0
        %v778 = vadd.f32 %v638, %v777
        %v779 = vpop.f32.mrb[0].mxu0
        %v780 = vpop.f32.mrb[0].mxu0
        %v781 = vadd.f32 %v638, %v780
        %v782 = vpop.f32.mrb[0].mxu0
        %783 = vmatprep.mubr.bf16.mxu0 0
        %784 = vmatmul.mubr.bf16.gmra.mrb[0].mxu0 %v669
        %v785 = vpop.f32.mrb[0].mxu0
        %v786 = vadd.f32 %v638, %v785
        %v787 = vpop.f32.mrb[0].mxu0
        %v788 = vpop.f32.mrb[0].mxu0
        %v789 = vadd.f32 %v638, %v788
        %v790 = vpop.f32.mrb[0].mxu0
        %791 = vmatprep.mubr.bf16.mxu0 0
        %792 = vmatmul.mubr.bf16.gmra.mrb[0].mxu0 %v672
        %v793 = vpop.f32.mrb[0].mxu0
        %v794 = vadd.f32 %v638, %v793
        %v795 = vpop.f32.mrb[0].mxu0
        %v796 = vpop.f32.mrb[0].mxu0
        %v797 = vadd.f32 %v638, %v796
        %v798 = vpop.f32.mrb[0].mxu0
        %799 = vmatprep.mubr.bf16.mxu0 0
        %800 = vmatmul.mubr.bf16.gmra.mrb[0].mxu0 %v675
        %v801 = vpop.f32.mrb[0].mxu0
        %v802 = vadd.f32 %v638, %v801
        %v803 = vpop.f32.mrb[0].mxu0
        %v804 = vpop.f32.mrb[0].mxu0
        %v805 = vadd.f32 %v638, %v804
        %v806 = vpop.f32.mrb[0].mxu0
        %807 = vmatprep.mubr.bf16.mxu0 0
        %808 = vmatmul.mubr.bf16.gmra.mrb[0].mxu0 %v678
        %v809 = vpop.f32.mrb[0].mxu0
        %v810 = vadd.f32 %v638, %v809
        %v811 = vpop.f32.mrb[0].mxu0
        %v812 = vpop.f32.mrb[0].mxu0
        %v813 = vadd.f32 %v638, %v812
        %v814 = vpop.f32.mrb[0].mxu0
        %815 = vmatprep.mubr.bf16.mxu0 0
        %816 = vmatmul.mubr.bf16.gmra.mrb[0].mxu0 %v681
        %v817 = vpop.f32.mrb[0].mxu0
        %v818 = vadd.f32 %v638, %v817
        %v819 = vpop.f32.mrb[0].mxu0
        %v820 = vpop.f32.mrb[0].mxu0
        %v821 = vadd.f32 %v638, %v820
        %v822 = vpop.f32.mrb[0].mxu0
        %823 = vmatprep.mubr.bf16.mxu0 0
        %824 = vmatmul.mubr.bf16.gmra.mrb[0].mxu0 %v684
        %v825 = vpop.f32.mrb[0].mxu0
        %v826 = vadd.f32 %v638, %v825
        %v827 = vpop.f32.mrb[0].mxu0
        %v828 = vpop.f32.mrb[0].mxu0
        %v829 = vadd.f32 %v638, %v828
        %v830 = vpop.f32.mrb[0].mxu0
        %831 = vmatprep.mubr.bf16.mxu0 0
        %832 = vmatmul.mubr.bf16.gmra.mrb[0].mxu0 %v687
        %v833 = vpop.f32.mrb[0].mxu0
        %v834 = vadd.f32 %v638, %v833
        %v835 = vpop.f32.mrb[0].mxu0
        %v836 = vpop.f32.mrb[0].mxu0
        %v837 = vadd.f32 %v638, %v836
        %v838 = vpop.f32.mrb[0].mxu0
        %839 = vmatprep.mubr.bf16.mxu0 0
        %840 = vmatmul.mubr.bf16.gmra.mrb[0].mxu0 %v690
        %v841 = vpop.f32.mrb[0].mxu0
        %v842 = vadd.f32 %v638, %v841
        %v843 = vpop.f32.mrb[0].mxu0
        %v844 = vpop.f32.mrb[0].mxu0
        %v845 = vadd.f32 %v638, %v844
        %v846 = vpop.f32.mrb[0].mxu0
        %847 = vmatprep.mubr.bf16.mxu0 0
        %848 = vmatmul.mubr.bf16.gmra.mrb[0].mxu0 %v693
        %v849 = vpop.f32.mrb[0].mxu0
        %v850 = vadd.f32 %v638, %v849
        %v851 = vpop.f32.mrb[0].mxu0
        %v852 = vpop.f32.mrb[0].mxu0
        %v853 = vadd.f32 %v638, %v852
        %v854 = vpop.f32.mrb[0].mxu0
        %855 = vdwg.mxu0
        %v856 = vmax.f32 %v730, 0.0
        %v857 = vmax.f32 %v733, 0.0
        %v858 = vmax.f32 %v738, 0.0
        %v859 = vmax.f32 %v741, 0.0
        %v860 = vmax.f32 %v746, 0.0
        %v861 = vmax.f32 %v749, 0.0
        %v862 = vmax.f32 %v754, 0.0
        %v863 = vmax.f32 %v757, 0.0
        %v864 = vmax.f32 %v762, 0.0
        %v865 = vmax.f32 %v765, 0.0
        %v866 = vmax.f32 %v770, 0.0
        %v867 = vmax.f32 %v773, 0.0
        %v868 = vmax.f32 %v778, 0.0
        %v869 = vmax.f32 %v781, 0.0
        %v870 = vmax.f32 %v786, 0.0
        %v871 = vmax.f32 %v789, 0.0
        %v872 = vmax.f32 %v794, 0.0
        %v873 = vmax.f32 %v797, 0.0
        %v874 = vmax.f32 %v802, 0.0
        %v875 = vmax.f32 %v805, 0.0
        %v876 = vmax.f32 %v810, 0.0
        %v877 = vmax.f32 %v813, 0.0
        %v878 = vmax.f32 %v818, 0.0
        %v879 = vmax.f32 %v821, 0.0
        %v880 = vmax.f32 %v826, 0.0
        %v881 = vmax.f32 %v829, 0.0
        %v882 = vmax.f32 %v834, 0.0
        %v883 = vmax.f32 %v837, 0.0
        %v884 = vmax.f32 %v842, 0.0
        %v885 = vmax.f32 %v845, 0.0
        %v886 = vmax.f32 %v850, 0.0
        %v887 = vmax.f32 %v853, 0.0
        %v888 = vpack.c.bf16 %v857, %v856
        %v889 = vpack.c.bf16 %v859, %v858
        %v890 = vpack.c.bf16 %v861, %v860
        %v891 = vpack.c.bf16 %v863, %v862
        %v892 = vpack.c.bf16 %v865, %v864
        %v893 = vpack.c.bf16 %v867, %v866
        %v894 = vpack.c.bf16 %v869, %v868
        %v895 = vpack.c.bf16 %v871, %v870
        %v896 = vpack.c.bf16 %v873, %v872
        %v897 = vpack.c.bf16 %v875, %v874
        %v898 = vpack.c.bf16 %v877, %v876
        %v899 = vpack.c.bf16 %v879, %v878
        %v900 = vpack.c.bf16 %v881, %v880
        %v901 = vpack.c.bf16 %v883, %v882
        %v902 = vpack.c.bf16 %v885, %v884
        %v903 = vpack.c.bf16 %v887, %v886
        %v920 = vunpack.c.l.b16 %v888
        %v921 = vunpack.c.h.b16 %v888
        %v922 = vunpack.c.l.b16 %v889
        %v923 = vunpack.c.h.b16 %v889
        %v924 = vunpack.c.l.b16 %v890
        %v925 = vunpack.c.h.b16 %v890
        %v926 = vunpack.c.l.b16 %v891
        %v927 = vunpack.c.h.b16 %v891
        %v928 = vunpack.c.l.b16 %v892
        %v929 = vunpack.c.h.b16 %v892
        %v930 = vunpack.c.l.b16 %v893
        %v931 = vunpack.c.h.b16 %v893
        %v932 = vunpack.c.l.b16 %v894
        %v933 = vunpack.c.h.b16 %v894
        %v934 = vunpack.c.l.b16 %v895
        %v935 = vunpack.c.h.b16 %v895
        %v936 = vunpack.c.l.b16 %v896
        %v937 = vunpack.c.h.b16 %v896
        %v938 = vunpack.c.l.b16 %v897
        %v939 = vunpack.c.h.b16 %v897
        %v940 = vunpack.c.l.b16 %v898
        %v941 = vunpack.c.h.b16 %v898
        %v942 = vunpack.c.l.b16 %v899
        %v943 = vunpack.c.h.b16 %v899
        %v944 = vunpack.c.l.b16 %v900
        %v945 = vunpack.c.h.b16 %v900
        %v946 = vunpack.c.l.b16 %v901
        %v947 = vunpack.c.h.b16 %v901
        %v948 = vunpack.c.l.b16 %v902
        %v949 = vunpack.c.h.b16 %v902
        %v950 = vunpack.c.l.b16 %v903
        %v951 = vunpack.c.h.b16 %v903
        %v952 = vpack.c.b16 %v920, %v920
        %v953 = vpack.c.b16 %v921, %v921
        %v954 = vpack.c.b16 %v922, %v922
        %v955 = vpack.c.b16 %v923, %v923
        %v956 = vpack.c.b16 %v924, %v924
        %v957 = vpack.c.b16 %v925, %v925
        %v958 = vpack.c.b16 %v926, %v926
        %v959 = vpack.c.b16 %v927, %v927
        %v960 = vpack.c.b16 %v928, %v928
        %v961 = vpack.c.b16 %v929, %v929
        %v962 = vpack.c.b16 %v930, %v930
        %v963 = vpack.c.b16 %v931, %v931
        %v964 = vpack.c.b16 %v932, %v932
        %v965 = vpack.c.b16 %v933, %v933
        %v966 = vpack.c.b16 %v934, %v934
        %v967 = vpack.c.b16 %v935, %v935
        %v968 = vpack.c.b16 %v936, %v936
        %v969 = vpack.c.b16 %v937, %v937
        %v970 = vpack.c.b16 %v938, %v938
        %v971 = vpack.c.b16 %v939, %v939
        %v972 = vpack.c.b16 %v940, %v940
        %v973 = vpack.c.b16 %v941, %v941
        %v974 = vpack.c.b16 %v942, %v942
        %v975 = vpack.c.b16 %v943, %v943
        %v976 = vpack.c.b16 %v944, %v944
        %v977 = vpack.c.b16 %v945, %v945
        %v978 = vpack.c.b16 %v946, %v946
        %v979 = vpack.c.b16 %v947, %v947
        %v980 = vpack.c.b16 %v948, %v948
        %v981 = vpack.c.b16 %v949, %v949
        %v982 = vpack.c.b16 %v950, %v950
        %v983 = vpack.c.b16 %v951, %v951
        %vm984 = vsmask.f32 4368
        %vm985 = vmor %vm365, %vm984
        %v987 = vshrl.u32 %v952, 16
        %v989 = vrot.slane %v987, 7
        %v990 = vshll.u32 %v952, 16
        %v992 = vor.u32 %v989, %v990
        %v993 = vrot.slane %v989, 4
        %v995 = vshrl.u32 %v953, 16
        %v997 = vrot.slane %v995, 7
        %v998 = vshll.u32 %v953, 16
        %v1000 = vor.u32 %v997, %v998
        %v1001 = vsel %vm985, %v993, %v1000
        %v1002 = vrot.slane %v997, 4
        %v1004 = vshrl.u32 %v954, 16
        %v1006 = vrot.slane %v1004, 7
        %v1007 = vshll.u32 %v954, 16
        %v1009 = vor.u32 %v1006, %v1007
        %v1010 = vrot.slane %v1006, 4
        %v1012 = vshrl.u32 %v955, 16
        %v1014 = vrot.slane %v1012, 7
        %v1015 = vshll.u32 %v955, 16
        %v1017 = vor.u32 %v1014, %v1015
        %v1018 = vsel %vm985, %v1010, %v1017
        %v1019 = vrot.slane %v1014, 4
        %v1021 = vshrl.u32 %v956, 16
        %v1023 = vrot.slane %v1021, 7
        %v1024 = vshll.u32 %v956, 16
        %v1026 = vor.u32 %v1023, %v1024
        %v1027 = vrot.slane %v1023, 4
        %v1029 = vshrl.u32 %v957, 16
        %v1031 = vrot.slane %v1029, 7
        %v1032 = vshll.u32 %v957, 16
        %v1034 = vor.u32 %v1031, %v1032
        %v1035 = vsel %vm985, %v1027, %v1034
        %v1036 = vrot.slane %v1031, 4
        %v1038 = vshrl.u32 %v958, 16
        %v1040 = vrot.slane %v1038, 7
        %v1041 = vshll.u32 %v958, 16
        %v1043 = vor.u32 %v1040, %v1041
        %v1044 = vrot.slane %v1040, 4
        %v1046 = vshrl.u32 %v959, 16
        %v1048 = vrot.slane %v1046, 7
        %v1049 = vshll.u32 %v959, 16
        %v1051 = vor.u32 %v1048, %v1049
        %v1052 = vsel %vm985, %v1044, %v1051
        %v1053 = vrot.slane %v1048, 4
        %v1055 = vshrl.u32 %v960, 16
        %v1057 = vrot.slane %v1055, 7
        %v1058 = vshll.u32 %v960, 16
        %v1060 = vor.u32 %v1057, %v1058
        %v1061 = vrot.slane %v1057, 4
        %v1063 = vshrl.u32 %v961, 16
        %v1065 = vrot.slane %v1063, 7
        %v1066 = vshll.u32 %v961, 16
        %v1068 = vor.u32 %v1065, %v1066
        %v1069 = vsel %vm985, %v1061, %v1068
        %v1070 = vrot.slane %v1065, 4
        %v1072 = vshrl.u32 %v962, 16
        %v1074 = vrot.slane %v1072, 7
        %v1075 = vshll.u32 %v962, 16
        %v1077 = vor.u32 %v1074, %v1075
        %v1078 = vrot.slane %v1074, 4
        %v1080 = vshrl.u32 %v963, 16
        %v1082 = vrot.slane %v1080, 7
        %v1083 = vshll.u32 %v963, 16
        %v1085 = vor.u32 %v1082, %v1083
        %v1086 = vsel %vm985, %v1078, %v1085
        %v1087 = vrot.slane %v1082, 4
        %v1089 = vshrl.u32 %v964, 16
        %v1091 = vrot.slane %v1089, 7
        %v1092 = vshll.u32 %v964, 16
        %v1094 = vor.u32 %v1091, %v1092
        %v1095 = vrot.slane %v1091, 4
        %v1097 = vshrl.u32 %v965, 16
        %v1099 = vrot.slane %v1097, 7
        %v1100 = vshll.u32 %v965, 16
        %v1102 = vor.u32 %v1099, %v1100
        %v1103 = vsel %vm985, %v1095, %v1102
        %v1104 = vrot.slane %v1099, 4
        %v1106 = vshrl.u32 %v966, 16
        %v1108 = vrot.slane %v1106, 7
        %v1109 = vshll.u32 %v966, 16
        %v1111 = vor.u32 %v1108, %v1109
        %v1112 = vrot.slane %v1108, 4
        %v1114 = vshrl.u32 %v967, 16
        %v1116 = vrot.slane %v1114, 7
        %v1117 = vshll.u32 %v967, 16
        %v1119 = vor.u32 %v1116, %v1117
        %v1120 = vsel %vm985, %v1112, %v1119
        %v1121 = vrot.slane %v1116, 4
        %v1123 = vshrl.u32 %v968, 16
        %v1125 = vrot.slane %v1123, 7
        %v1126 = vshll.u32 %v968, 16
        %v1128 = vor.u32 %v1125, %v1126
        %v1129 = vrot.slane %v1125, 4
        %v1131 = vshrl.u32 %v969, 16
        %v1133 = vrot.slane %v1131, 7
        %v1134 = vshll.u32 %v969, 16
        %v1136 = vor.u32 %v1133, %v1134
        %v1137 = vsel %vm985, %v1129, %v1136
        %v1138 = vrot.slane %v1133, 4
        %v1140 = vshrl.u32 %v970, 16
        %v1142 = vrot.slane %v1140, 7
        %v1143 = vshll.u32 %v970, 16
        %v1145 = vor.u32 %v1142, %v1143
        %v1146 = vrot.slane %v1142, 4
        %v1148 = vshrl.u32 %v971, 16
        %v1150 = vrot.slane %v1148, 7
        %v1151 = vshll.u32 %v971, 16
        %v1153 = vor.u32 %v1150, %v1151
        %v1154 = vsel %vm985, %v1146, %v1153
        %v1155 = vrot.slane %v1150, 4
        %v1157 = vshrl.u32 %v972, 16
        %v1159 = vrot.slane %v1157, 7
        %v1160 = vshll.u32 %v972, 16
        %v1162 = vor.u32 %v1159, %v1160
        %v1163 = vrot.slane %v1159, 4
        %v1165 = vshrl.u32 %v973, 16
        %v1167 = vrot.slane %v1165, 7
        %v1168 = vshll.u32 %v973, 16
        %v1170 = vor.u32 %v1167, %v1168
        %v1171 = vsel %vm985, %v1163, %v1170
        %v1172 = vrot.slane %v1167, 4
        %v1174 = vshrl.u32 %v974, 16
        %v1176 = vrot.slane %v1174, 7
        %v1177 = vshll.u32 %v974, 16
        %v1179 = vor.u32 %v1176, %v1177
        %v1180 = vrot.slane %v1176, 4
        %v1182 = vshrl.u32 %v975, 16
        %v1184 = vrot.slane %v1182, 7
        %v1185 = vshll.u32 %v975, 16
        %v1187 = vor.u32 %v1184, %v1185
        %v1188 = vsel %vm985, %v1180, %v1187
        %v1189 = vrot.slane %v1184, 4
        %v1191 = vshrl.u32 %v976, 16
        %v1193 = vrot.slane %v1191, 7
        %v1194 = vshll.u32 %v976, 16
        %v1196 = vor.u32 %v1193, %v1194
        %v1197 = vrot.slane %v1193, 4
        %v1199 = vshrl.u32 %v977, 16
        %v1201 = vrot.slane %v1199, 7
        %v1202 = vshll.u32 %v977, 16
        %v1204 = vor.u32 %v1201, %v1202
        %v1205 = vsel %vm985, %v1197, %v1204
        %v1206 = vrot.slane %v1201, 4
        %v1208 = vshrl.u32 %v978, 16
        %v1210 = vrot.slane %v1208, 7
        %v1211 = vshll.u32 %v978, 16
        %v1213 = vor.u32 %v1210, %v1211
        %v1214 = vrot.slane %v1210, 4
        %v1216 = vshrl.u32 %v979, 16
        %v1218 = vrot.slane %v1216, 7
        %v1219 = vshll.u32 %v979, 16
        %v1221 = vor.u32 %v1218, %v1219
        %v1222 = vsel %vm985, %v1214, %v1221
        %v1223 = vrot.slane %v1218, 4
        %v1225 = vshrl.u32 %v980, 16
        %v1227 = vrot.slane %v1225, 7
        %v1228 = vshll.u32 %v980, 16
        %v1230 = vor.u32 %v1227, %v1228
        %v1231 = vrot.slane %v1227, 4
        %v1233 = vshrl.u32 %v981, 16
        %v1235 = vrot.slane %v1233, 7
        %v1236 = vshll.u32 %v981, 16
        %v1238 = vor.u32 %v1235, %v1236
        %v1239 = vsel %vm985, %v1231, %v1238
        %v1240 = vrot.slane %v1235, 4
        %v1242 = vshrl.u32 %v982, 16
        %v1244 = vrot.slane %v1242, 7
        %v1245 = vshll.u32 %v982, 16
        %v1247 = vor.u32 %v1244, %v1245
        %v1248 = vrot.slane %v1244, 4
        %v1250 = vshrl.u32 %v983, 16
        %v1252 = vrot.slane %v1250, 7
        %v1253 = vshll.u32 %v983, 16
        %v1255 = vor.u32 %v1252, %v1253
        %v1256 = vsel %vm985, %v1248, %v1255
        %v1257 = vrot.slane %v1252, 4
        %s1306 = scalar_lea.vmem [#allocation2], 12
        %v1307 = vld [vmem:[%s1306] sm:$0xf]
        %v1308 = vsel %vm423, %v992, %v1307
        %1309 = vst [vmem:[%s1306] sm:$0xf] %v1308
        %vm1310 = vcmask 257024
        %1311 = vst.msk [vmem:[%s1306 + $0x4] sm:$0xf] %vm1310, %v1001
        %v1312 = vld [vmem:[%s1306 + $0x8] sm:$0x1]
        %v1313 = vsel %vm366, %v1002, %v1312
        %1314 = vst [vmem:[%s1306 + $0x8] sm:$0x1] %v1313
        %v1315 = vld [vmem:[%s1306 + $0xc] sm:$0xf]
        %v1316 = vsel %vm423, %v1009, %v1315
        %1317 = vst [vmem:[%s1306 + $0xc] sm:$0xf] %v1316
        %1318 = vst.msk [vmem:[%s1306 + $0x10] sm:$0xf] %vm1310, %v1018
        %v1319 = vld [vmem:[%s1306 + $0x14] sm:$0x1]
        %v1320 = vsel %vm366, %v1019, %v1319
        %1321 = vst [vmem:[%s1306 + $0x14] sm:$0x1] %v1320
        %v1322 = vld [vmem:[%s1306 + $0x18] sm:$0xf]
        %v1323 = vsel %vm423, %v1026, %v1322
        %1324 = vst [vmem:[%s1306 + $0x18] sm:$0xf] %v1323
        %1325 = vst.msk [vmem:[%s1306 + $0x1c] sm:$0xf] %vm1310, %v1035
        %v1326 = vld [vmem:[%s1306 + $0x20] sm:$0x1]
        %v1327 = vsel %vm366, %v1036, %v1326
        %1328 = vst [vmem:[%s1306 + $0x20] sm:$0x1] %v1327
        %v1329 = vld [vmem:[%s1306 + $0x24] sm:$0xf]
        %v1330 = vsel %vm423, %v1043, %v1329
        %1331 = vst [vmem:[%s1306 + $0x24] sm:$0xf] %v1330
        %1332 = vst.msk [vmem:[%s1306 + $0x28] sm:$0xf] %vm1310, %v1052
        %v1333 = vld [vmem:[%s1306 + $0x2c] sm:$0x1]
        %v1334 = vsel %vm366, %v1053, %v1333
        %1335 = vst [vmem:[%s1306 + $0x2c] sm:$0x1] %v1334
        %v1336 = vld [vmem:[%s1306 + $0x30] sm:$0xf]
        %v1337 = vsel %vm423, %v1060, %v1336
        %1338 = vst [vmem:[%s1306 + $0x30] sm:$0xf] %v1337
        %1339 = vst.msk [vmem:[%s1306 + $0x34] sm:$0xf] %vm1310, %v1069
        %v1340 = vld [vmem:[%s1306 + $0x38] sm:$0x1]
        %v1341 = vsel %vm366, %v1070, %v1340
        %1342 = vst [vmem:[%s1306 + $0x38] sm:$0x1] %v1341
        %v1343 = vld [vmem:[%s1306 + $0x3c] sm:$0xf]
        %v1344 = vsel %vm423, %v1077, %v1343
        %1345 = vst [vmem:[%s1306 + $0x3c] sm:$0xf] %v1344
        %1346 = vst.msk [vmem:[%s1306 + $0x40] sm:$0xf] %vm1310, %v1086
        %v1347 = vld [vmem:[%s1306 + $0x44] sm:$0x1]
        %v1348 = vsel %vm366, %v1087, %v1347
        %1349 = vst [vmem:[%s1306 + $0x44] sm:$0x1] %v1348
        %v1350 = vld [vmem:[%s1306 + $0x48] sm:$0xf]
        %v1351 = vsel %vm423, %v1094, %v1350
        %1352 = vst [vmem:[%s1306 + $0x48] sm:$0xf] %v1351
        %1353 = vst.msk [vmem:[%s1306 + $0x4c] sm:$0xf] %vm1310, %v1103
        %v1354 = vld [vmem:[%s1306 + $0x50] sm:$0x1]
        %v1355 = vsel %vm366, %v1104, %v1354
        %1356 = vst [vmem:[%s1306 + $0x50] sm:$0x1] %v1355
        %v1357 = vld [vmem:[%s1306 + $0x54] sm:$0xf]
        %v1358 = vsel %vm423, %v1111, %v1357
        %1359 = vst [vmem:[%s1306 + $0x54] sm:$0xf] %v1358
        %1360 = vst.msk [vmem:[%s1306 + $0x58] sm:$0xf] %vm1310, %v1120
        %v1361 = vld [vmem:[%s1306 + $0x5c] sm:$0x1]
        %v1362 = vsel %vm366, %v1121, %v1361
        %1363 = vst [vmem:[%s1306 + $0x5c] sm:$0x1] %v1362
        %v1364 = vld [vmem:[%s1306 + $0x60] sm:$0xf]
        %v1365 = vsel %vm423, %v1128, %v1364
        %1366 = vst [vmem:[%s1306 + $0x60] sm:$0xf] %v1365
        %1367 = vst.msk [vmem:[%s1306 + $0x64] sm:$0xf] %vm1310, %v1137
        %v1368 = vld [vmem:[%s1306 + $0x68] sm:$0x1]
        %v1369 = vsel %vm366, %v1138, %v1368
        %1370 = vst [vmem:[%s1306 + $0x68] sm:$0x1] %v1369
        %v1371 = vld [vmem:[%s1306 + $0x6c] sm:$0xf]
        %v1372 = vsel %vm423, %v1145, %v1371
        %1373 = vst [vmem:[%s1306 + $0x6c] sm:$0xf] %v1372
        %1374 = vst.msk [vmem:[%s1306 + $0x70] sm:$0xf] %vm1310, %v1154
        %v1375 = vld [vmem:[%s1306 + $0x74] sm:$0x1]
        %v1376 = vsel %vm366, %v1155, %v1375
        %1377 = vst [vmem:[%s1306 + $0x74] sm:$0x1] %v1376
        %v1378 = vld [vmem:[%s1306 + $0x78] sm:$0xf]
        %v1379 = vsel %vm423, %v1162, %v1378
        %1380 = vst [vmem:[%s1306 + $0x78] sm:$0xf] %v1379
        %1381 = vst.msk [vmem:[%s1306 + $0x7c] sm:$0xf] %vm1310, %v1171
        %v1382 = vld [vmem:[%s1306 + $0x80] sm:$0x1]
        %v1383 = vsel %vm366, %v1172, %v1382
        %1384 = vst [vmem:[%s1306 + $0x80] sm:$0x1] %v1383
        %v1385 = vld [vmem:[%s1306 + $0x84] sm:$0xf]
        %v1386 = vsel %vm423, %v1179, %v1385
        %1387 = vst [vmem:[%s1306 + $0x84] sm:$0xf] %v1386
        %1388 = vst.msk [vmem:[%s1306 + $0x88] sm:$0xf] %vm1310, %v1188
        %v1389 = vld [vmem:[%s1306 + $0x8c] sm:$0x1]
        %v1390 = vsel %vm366, %v1189, %v1389
        %1391 = vst [vmem:[%s1306 + $0x8c] sm:$0x1] %v1390
        %v1392 = vld [vmem:[%s1306 + $0x90] sm:$0xf]
        %v1393 = vsel %vm423, %v1196, %v1392
        %1394 = vst [vmem:[%s1306 + $0x90] sm:$0xf] %v1393
        %1395 = vst.msk [vmem:[%s1306 + $0x94] sm:$0xf] %vm1310, %v1205
        %v1396 = vld [vmem:[%s1306 + $0x98] sm:$0x1]
        %v1397 = vsel %vm366, %v1206, %v1396
        %1398 = vst [vmem:[%s1306 + $0x98] sm:$0x1] %v1397
        %v1399 = vld [vmem:[%s1306 + $0x9c] sm:$0xf]
        %v1400 = vsel %vm423, %v1213, %v1399
        %1401 = vst [vmem:[%s1306 + $0x9c] sm:$0xf] %v1400
        %1402 = vst.msk [vmem:[%s1306 + $0xa0] sm:$0xf] %vm1310, %v1222
        %v1403 = vld [vmem:[%s1306 + $0xa4] sm:$0x1]
        %v1404 = vsel %vm366, %v1223, %v1403
        %1405 = vst [vmem:[%s1306 + $0xa4] sm:$0x1] %v1404
        %v1406 = vld [vmem:[%s1306 + $0xa8] sm:$0xf]
        %v1407 = vsel %vm423, %v1230, %v1406
        %1408 = vst [vmem:[%s1306 + $0xa8] sm:$0xf] %v1407
        %1409 = vst.msk [vmem:[%s1306 + $0xac] sm:$0xf] %vm1310, %v1239
        %v1410 = vld [vmem:[%s1306 + $0xb0] sm:$0x1]
        %v1411 = vsel %vm366, %v1240, %v1410
        %1412 = vst [vmem:[%s1306 + $0xb0] sm:$0x1] %v1411
        %v1413 = vld [vmem:[%s1306 + $0xb4] sm:$0xf]
        %v1414 = vsel %vm423, %v1247, %v1413
        %1415 = vst [vmem:[%s1306 + $0xb4] sm:$0xf] %v1414
        %1416 = vst.msk [vmem:[%s1306 + $0xb8] sm:$0xf] %vm1310, %v1256
        %v1417 = vld [vmem:[%s1306 + $0xbc] sm:$0x1]
        %v1418 = vsel %vm366, %v1257, %v1417
        %1419 = vst [vmem:[%s1306 + $0xbc] sm:$0x1] %v1418
        %1420 = vst.msk [vmem:[#allocation2] sm:$0xf] %vm1310, 0
        %1421 = vst.msk [vmem:[#allocation2 + $0x4] sm:$0xf] %vm1310, 0
        %1422 = vst.msk [vmem:[#allocation2 + $0x8] sm:$0xf] %vm1310, 0
        %s1423 = scalar_lea.vmem [#allocation2], 204
        %1424 = vst.msk [vmem:[%s1423] sm:$0xf] %vm1310, 0
        %1425 = vst.msk [vmem:[%s1423 + $0x4] sm:$0xf] %vm1310, 0
        %1426 = vst.msk [vmem:[%s1423 + $0x8] sm:$0xf] %vm1310, 0
        %v1427 = vld [vmem:[#allocation2] sm:$0xf]
        %v1428 = vld [vmem:[#allocation2 + $0x4] sm:$0xf]
        %v1429 = vld [vmem:[#allocation2 + $0x8] sm:$0xf]
        %v1430 = vld [vmem:[#allocation2 + $0xc] sm:$0xf]
        %v1431 = vld [vmem:[#allocation2 + $0x10] sm:$0xf]
        %v1432 = vld [vmem:[#allocation2 + $0x14] sm:$0xf]
        %v1433 = vld [vmem:[#allocation2 + $0x18] sm:$0xf]
        %v1434 = vld [vmem:[#allocation2 + $0x1c] sm:$0xf]
        %v1435 = vld [vmem:[#allocation2 + $0x20] sm:$0xf]
        %v1436 = vld [vmem:[#allocation2 + $0x24] sm:$0xf]
        %v1437 = vld [vmem:[#allocation2 + $0x28] sm:$0xf]
        %v1438 = vld [vmem:[#allocation2 + $0x2c] sm:$0xf]
        %v1439 = vld [vmem:[#allocation2 + $0x30] sm:$0xf]
        %v1440 = vld [vmem:[#allocation2 + $0x34] sm:$0xf]
        %v1441 = vld [vmem:[#allocation2 + $0x38] sm:$0xf]
        %v1442 = vld [vmem:[#allocation2 + $0x3c] sm:$0xf]
        %v1443 = vld [vmem:[#allocation2 + $0x40] sm:$0xf]
        %v1444 = vld [vmem:[#allocation2 + $0x44] sm:$0xf]
        %v1445 = vld [vmem:[#allocation2 + $0x48] sm:$0xf]
        %v1446 = vld [vmem:[#allocation2 + $0x4c] sm:$0xf]
        %v1447 = vld [vmem:[#allocation2 + $0x50] sm:$0xf]
        %v1448 = vld [vmem:[#allocation2 + $0x54] sm:$0xf]
        %v1449 = vld [vmem:[#allocation2 + $0x58] sm:$0xf]
        %v1450 = vld [vmem:[#allocation2 + $0x5c] sm:$0xf]
        %v1451 = vld [vmem:[#allocation2 + $0x60] sm:$0xf]
        %v1452 = vld [vmem:[#allocation2 + $0x64] sm:$0xf]
        %v1453 = vld [vmem:[#allocation2 + $0x68] sm:$0xf]
        %v1454 = vld [vmem:[#allocation2 + $0x6c] sm:$0xf]
        %v1455 = vld [vmem:[#allocation2 + $0x70] sm:$0xf]
        %v1456 = vld [vmem:[#allocation2 + $0x74] sm:$0xf]
        %v1457 = vld [vmem:[#allocation2 + $0x78] sm:$0xf]
        %v1458 = vld [vmem:[#allocation2 + $0x7c] sm:$0xf]
        %v1459 = vld [vmem:[#allocation2 + $0x80] sm:$0xf]
        %v1460 = vld [vmem:[#allocation2 + $0x84] sm:$0xf]
        %v1461 = vld [vmem:[#allocation2 + $0x88] sm:$0xf]
        %v1462 = vld [vmem:[#allocation2 + $0x8c] sm:$0xf]
        %v1463 = vld [vmem:[#allocation2 + $0x90] sm:$0xf]
        %v1464 = vld [vmem:[#allocation2 + $0x94] sm:$0xf]
        %v1465 = vld [vmem:[#allocation2 + $0x98] sm:$0xf]
        %v1466 = vld [vmem:[#allocation2 + $0x9c] sm:$0xf]
        %v1467 = vld [vmem:[#allocation2 + $0xa0] sm:$0xf]
        %v1468 = vld [vmem:[#allocation2 + $0xa4] sm:$0xf]
        %v1469 = vld [vmem:[#allocation2 + $0xa8] sm:$0xf]
        %v1470 = vld [vmem:[#allocation2 + $0xac] sm:$0xf]
        %v1471 = vld [vmem:[#allocation2 + $0xb0] sm:$0xf]
        %v1472 = vld [vmem:[#allocation2 + $0xb4] sm:$0xf]
        %v1473 = vld [vmem:[#allocation2 + $0xb8] sm:$0xf]
        %v1474 = vld [vmem:[#allocation2 + $0xbc] sm:$0xf]
        %v1475 = vld [vmem:[#allocation2 + $0xc0] sm:$0xf]
        %v1476 = vld [vmem:[#allocation2 + $0xc4] sm:$0xf]
        %v1477 = vld [vmem:[#allocation2 + $0xc8] sm:$0xf]
        %v1478 = vld [vmem:[#allocation2 + $0xcc] sm:$0xf]
        %v1479 = vld [vmem:[#allocation2 + $0xd0] sm:$0xf]
        %v1480 = vld [vmem:[#allocation2 + $0xd4] sm:$0xf]
        %v1481 = vld [vmem:[#allocation12] sm:$0xf]
        %v1482 = vld [vmem:[#allocation12 + $0x4] sm:$0xf]
        %v1483 = vld [vmem:[#allocation12 + $0x8] sm:$0xf]
        %v1484 = vld [vmem:[#allocation12 + $0xc] sm:$0xf]
        %v1539 = vunpack.c.l.b16 %v1427
        %v1540 = vunpack.c.l.b16 %v1428
        %v1541 = vunpack.c.l.b16 %v1429
        %v1542 = vunpack.c.l.b16 %v1430
        %v1543 = vunpack.c.l.b16 %v1431
        %v1544 = vunpack.c.l.b16 %v1432
        %v1545 = vunpack.c.l.b16 %v1433
        %v1546 = vunpack.c.l.b16 %v1434
        %v1547 = vunpack.c.l.b16 %v1435
        %v1548 = vunpack.c.l.b16 %v1436
        %v1549 = vunpack.c.l.b16 %v1437
        %v1550 = vunpack.c.l.b16 %v1438
        %v1551 = vunpack.c.l.b16 %v1439
        %v1552 = vunpack.c.l.b16 %v1440
        %v1553 = vunpack.c.l.b16 %v1441
        %v1554 = vunpack.c.l.b16 %v1442
        %v1555 = vunpack.c.l.b16 %v1443
        %v1556 = vunpack.c.l.b16 %v1444
        %v1557 = vunpack.c.l.b16 %v1445
        %v1558 = vunpack.c.l.b16 %v1446
        %v1559 = vunpack.c.l.b16 %v1447
        %v1560 = vunpack.c.l.b16 %v1448
        %v1561 = vunpack.c.l.b16 %v1449
        %v1562 = vunpack.c.l.b16 %v1450
        %v1563 = vunpack.c.l.b16 %v1451
        %v1564 = vunpack.c.l.b16 %v1452
        %v1565 = vunpack.c.l.b16 %v1453
        %v1566 = vunpack.c.l.b16 %v1454
        %v1567 = vunpack.c.l.b16 %v1455
        %v1568 = vunpack.c.l.b16 %v1456
        %v1569 = vunpack.c.l.b16 %v1457
        %v1570 = vunpack.c.l.b16 %v1458
        %v1571 = vunpack.c.l.b16 %v1459
        %v1572 = vunpack.c.l.b16 %v1460
        %v1573 = vunpack.c.l.b16 %v1461
        %v1574 = vunpack.c.l.b16 %v1462
        %v1575 = vunpack.c.l.b16 %v1463
        %v1576 = vunpack.c.l.b16 %v1464
        %v1577 = vunpack.c.l.b16 %v1465
        %v1578 = vunpack.c.l.b16 %v1466
        %v1579 = vunpack.c.l.b16 %v1467
        %v1580 = vunpack.c.l.b16 %v1468
        %v1581 = vunpack.c.l.b16 %v1469
        %v1582 = vunpack.c.l.b16 %v1470
        %v1583 = vunpack.c.l.b16 %v1471
        %v1584 = vunpack.c.l.b16 %v1472
        %v1585 = vunpack.c.l.b16 %v1473
        %v1586 = vunpack.c.l.b16 %v1474
        %v1587 = vunpack.c.l.b16 %v1475
        %v1588 = vunpack.c.l.b16 %v1476
        %v1589 = vunpack.c.l.b16 %v1477
        %v1590 = vunpack.c.l.b16 %v1478
        %v1591 = vunpack.c.l.b16 %v1479
        %v1592 = vunpack.c.l.b16 %v1480
        %v1593 = vpack.c.b16 %v1540, %v1539
        %v1594 = vpack.c.b16 %v1542, %v1541
        %v1595 = vpack.c.b16 %v1544, %v1543
        %v1596 = vpack.c.b16 %v1546, %v1545
        %v1597 = vpack.c.b16 %v1548, %v1547
        %v1598 = vpack.c.b16 %v1550, %v1549
        %v1599 = vpack.c.b16 %v1552, %v1551
        %v1600 = vpack.c.b16 %v1554, %v1553
        %v1601 = vpack.c.b16 %v1556, %v1555
        %v1602 = vpack.c.b16 %v1558, %v1557
        %v1603 = vpack.c.b16 %v1560, %v1559
        %v1604 = vpack.c.b16 %v1562, %v1561
        %v1605 = vpack.c.b16 %v1564, %v1563
        %v1606 = vpack.c.b16 %v1566, %v1565
        %v1607 = vpack.c.b16 %v1568, %v1567
        %v1608 = vpack.c.b16 %v1570, %v1569
        %v1609 = vpack.c.b16 %v1572, %v1571
        %v1610 = vpack.c.b16 %v1574, %v1573
        %v1611 = vpack.c.b16 %v1576, %v1575
        %v1612 = vpack.c.b16 %v1578, %v1577
        %v1613 = vpack.c.b16 %v1580, %v1579
        %v1614 = vpack.c.b16 %v1582, %v1581
        %v1615 = vpack.c.b16 %v1584, %v1583
        %v1616 = vpack.c.b16 %v1586, %v1585
        %v1617 = vpack.c.b16 %v1588, %v1587
        %v1618 = vpack.c.b16 %v1590, %v1589
        %v1619 = vpack.c.b16 %v1592, %v1591
        %v1624 = vunpack.c.l.b16 %v1481
        %v1625 = vunpack.c.l.b16 %v1482
        %v1626 = vunpack.c.l.b16 %v1483
        %v1627 = vunpack.c.l.b16 %v1484
        %v1628 = vpack.c.b16 %v1625, %v1624
        %v1629 = vpack.c.b16 %v1627, %v1626
        %vm1632 = vcmask 261120
        %v1634 = vsel %vm1632, %v1593, 0
        %v1637 = vsel %vm1632, %v1594, 0
        %v1640 = vsel %vm1632, %v1595, 0
        %v1643 = vsel %vm1632, %v1596, 0
        %v1646 = vsel %vm1632, %v1597, 0
        %v1649 = vsel %vm1632, %v1598, 0
        %v1652 = vsel %vm1632, %v1599, 0
        %v1655 = vsel %vm1632, %v1600, 0
        %v1658 = vsel %vm1632, %v1601, 0
        %v1661 = vsel %vm1632, %v1602, 0
        %v1664 = vsel %vm1632, %v1603, 0
        %v1667 = vsel %vm1632, %v1604, 0
        %v1670 = vsel %vm1632, %v1605, 0
        %v1673 = vsel %vm1632, %v1606, 0
        %v1676 = vsel %vm1632, %v1607, 0
        %v1679 = vsel %vm1632, %v1608, 0
        %v1682 = vsel %vm1632, %v1609, 0
        %v1685 = vsel %vm1632, %v1610, 0
        %v1688 = vsel %vm1632, %v1611, 0
        %v1691 = vsel %vm1632, %v1612, 0
        %v1694 = vsel %vm1632, %v1613, 0
        %v1697 = vsel %vm1632, %v1614, 0
        %v1700 = vsel %vm1632, %v1615, 0
        %v1703 = vsel %vm1632, %v1616, 0
        %v1706 = vsel %vm1632, %v1617, 0
        %v1709 = vsel %vm1632, %v1618, 0
        %v1712 = vsel %vm1632, %v1619, 0
        %1714 = vmatprep.subr.bf16.mxu0 0
        %1715 = vmatpush1.bf16.msra.mxu0 %v1628
        %1716 = vmatprep.subr.bf16.mxu0 0
        %1717 = vmatpush1.bf16.msra.mxu0 %v1629
        %1718 = vmatprep.subr.bf16.mxu0 0
        %1719 = vmatpush1.bf16.msra.mxu0 0
        %1720 = vmatprep.subr.bf16.mxu0 0
        %1721 = vmatpush1.bf16.msra.mxu0 0
        %1722 = vmatprep.subr.bf16.mxu0 0
        %1723 = vmatpush1.bf16.msra.mxu0 0
        %1724 = vmatprep.subr.bf16.mxu0 0
        %1725 = vmatpush1.bf16.msra.mxu0 0
        %1726 = vmatprep.subr.bf16.mxu0 0
        %1727 = vmatpush1.bf16.msra.mxu0 0
        %1728 = vmatprep.subr.bf16.mxu0 0
        %1729 = vmatpush1.bf16.msra.mxu0 0
        %1730 = vmatprep.subr.bf16.mxu0 0
        %1731 = vmatpush1.bf16.msra.mxu0 0
        %1732 = vmatprep.subr.bf16.mxu0 0
        %1733 = vmatpush1.bf16.msra.mxu0 0
        %1734 = vmatprep.subr.bf16.mxu0 0
        %1735 = vmatpush1.bf16.msra.mxu0 0
        %1736 = vmatprep.subr.bf16.mxu0 0
        %1737 = vmatpush1.bf16.msra.mxu0 0
        %1738 = vmatprep.subr.bf16.mxu0 0
        %1739 = vmatpush1.bf16.msra.mxu0 0
        %1740 = vmatprep.subr.bf16.mxu0 0
        %1741 = vmatpush1.bf16.msra.mxu0 0
        %1742 = vmatprep.subr.bf16.mxu0 0
        %1743 = vmatpush1.bf16.msra.mxu0 0
        %1744 = vmatprep.subr.bf16.mxu0 0
        %1745 = vmatpush1.bf16.msra.mxu0 0
        %1746 = vmatprep.mubr.bf16.mxu0 0
        %1747 = vmatmul.mubr.bf16.gmra.mrb[0].mxu0 %v1634
        %v1748 = vpop.f32.mrb[0].mxu0
        %v1749 = vadd.f32 0.0, %v1748
        %v1750 = vpop.f32.mrb[0].mxu0
        %v1751 = vpop.f32.mrb[0].mxu0
        %v1752 = vadd.f32 0.0, %v1751
        %v1753 = vpop.f32.mrb[0].mxu0
        %1754 = vmatprep.mubr.bf16.mxu0 0
        %1755 = vmatmul.mubr.bf16.gmra.mrb[0].mxu0 %v1637
        %v1756 = vpop.f32.mrb[0].mxu0
        %v1757 = vadd.f32 0.0, %v1756
        %v1758 = vpop.f32.mrb[0].mxu0
        %v1759 = vpop.f32.mrb[0].mxu0
        %v1760 = vadd.f32 0.0, %v1759
        %v1761 = vpop.f32.mrb[0].mxu0
        %1762 = vmatprep.mubr.bf16.mxu0 0
        %1763 = vmatmul.mubr.bf16.gmra.mrb[0].mxu0 %v1640
        %v1764 = vpop.f32.mrb[0].mxu0
        %v1765 = vadd.f32 0.0, %v1764
        %v1766 = vpop.f32.mrb[0].mxu0
        %v1767 = vpop.f32.mrb[0].mxu0
        %v1768 = vadd.f32 0.0, %v1767
        %v1769 = vpop.f32.mrb[0].mxu0
        %1770 = vmatprep.mubr.bf16.mxu0 0
        %1771 = vmatmul.mubr.bf16.gmra.mrb[0].mxu0 %v1643
        %v1772 = vpop.f32.mrb[0].mxu0
        %v1773 = vadd.f32 0.0, %v1772
        %v1774 = vpop.f32.mrb[0].mxu0
        %v1775 = vpop.f32.mrb[0].mxu0
        %v1776 = vadd.f32 0.0, %v1775
        %v1777 = vpop.f32.mrb[0].mxu0
        %1778 = vmatprep.mubr.bf16.mxu0 0
        %1779 = vmatmul.mubr.bf16.gmra.mrb[0].mxu0 %v1646
        %v1780 = vpop.f32.mrb[0].mxu0
        %v1781 = vadd.f32 0.0, %v1780
        %v1782 = vpop.f32.mrb[0].mxu0
        %v1783 = vpop.f32.mrb[0].mxu0
        %v1784 = vadd.f32 0.0, %v1783
        %v1785 = vpop.f32.mrb[0].mxu0
        %1786 = vmatprep.mubr.bf16.mxu0 0
        %1787 = vmatmul.mubr.bf16.gmra.mrb[0].mxu0 %v1649
        %v1788 = vpop.f32.mrb[0].mxu0
        %v1789 = vadd.f32 0.0, %v1788
        %v1790 = vpop.f32.mrb[0].mxu0
        %v1791 = vpop.f32.mrb[0].mxu0
        %v1792 = vadd.f32 0.0, %v1791
        %v1793 = vpop.f32.mrb[0].mxu0
        %1794 = vmatprep.mubr.bf16.mxu0 0
        %1795 = vmatmul.mubr.bf16.gmra.mrb[0].mxu0 %v1652
        %v1796 = vpop.f32.mrb[0].mxu0
        %v1797 = vadd.f32 0.0, %v1796
        %v1798 = vpop.f32.mrb[0].mxu0
        %v1799 = vpop.f32.mrb[0].mxu0
        %v1800 = vadd.f32 0.0, %v1799
        %v1801 = vpop.f32.mrb[0].mxu0
        %1802 = vmatprep.mubr.bf16.mxu0 0
        %1803 = vmatmul.mubr.bf16.gmra.mrb[0].mxu0 %v1655
        %v1804 = vpop.f32.mrb[0].mxu0
        %v1805 = vadd.f32 0.0, %v1804
        %v1806 = vpop.f32.mrb[0].mxu0
        %v1807 = vpop.f32.mrb[0].mxu0
        %v1808 = vadd.f32 0.0, %v1807
        %v1809 = vpop.f32.mrb[0].mxu0
        %1810 = vmatprep.mubr.bf16.mxu0 0
        %1811 = vmatmul.mubr.bf16.gmra.mrb[0].mxu0 %v1658
        %v1812 = vpop.f32.mrb[0].mxu0
        %v1813 = vadd.f32 0.0, %v1812
        %v1814 = vpop.f32.mrb[0].mxu0
        %v1815 = vpop.f32.mrb[0].mxu0
        %v1816 = vadd.f32 0.0, %v1815
        %v1817 = vpop.f32.mrb[0].mxu0
        %1818 = vmatprep.mubr.bf16.mxu0 0
        %1819 = vmatmul.mubr.bf16.gmra.mrb[0].mxu0 %v1661
        %v1820 = vpop.f32.mrb[0].mxu0
        %v1821 = vadd.f32 0.0, %v1820
        %v1822 = vpop.f32.mrb[0].mxu0
        %v1823 = vpop.f32.mrb[0].mxu0
        %v1824 = vadd.f32 0.0, %v1823
        %v1825 = vpop.f32.mrb[0].mxu0
        %1826 = vmatprep.mubr.bf16.mxu0 0
        %1827 = vmatmul.mubr.bf16.gmra.mrb[0].mxu0 %v1664
        %v1828 = vpop.f32.mrb[0].mxu0
        %v1829 = vadd.f32 0.0, %v1828
        %v1830 = vpop.f32.mrb[0].mxu0
        %v1831 = vpop.f32.mrb[0].mxu0
        %v1832 = vadd.f32 0.0, %v1831
        %v1833 = vpop.f32.mrb[0].mxu0
        %1834 = vmatprep.mubr.bf16.mxu0 0
        %1835 = vmatmul.mubr.bf16.gmra.mrb[0].mxu0 %v1667
        %v1836 = vpop.f32.mrb[0].mxu0
        %v1837 = vadd.f32 0.0, %v1836
        %v1838 = vpop.f32.mrb[0].mxu0
        %v1839 = vpop.f32.mrb[0].mxu0
        %v1840 = vadd.f32 0.0, %v1839
        %v1841 = vpop.f32.mrb[0].mxu0
        %1842 = vmatprep.mubr.bf16.mxu0 0
        %1843 = vmatmul.mubr.bf16.gmra.mrb[0].mxu0 %v1670
        %v1844 = vpop.f32.mrb[0].mxu0
        %v1845 = vadd.f32 0.0, %v1844
        %v1846 = vpop.f32.mrb[0].mxu0
        %v1847 = vpop.f32.mrb[0].mxu0
        %v1848 = vadd.f32 0.0, %v1847
        %v1849 = vpop.f32.mrb[0].mxu0
        %1850 = vmatprep.mubr.bf16.mxu0 0
        %1851 = vmatmul.mubr.bf16.gmra.mrb[0].mxu0 %v1673
        %v1852 = vpop.f32.mrb[0].mxu0
        %v1853 = vadd.f32 0.0, %v1852
        %v1854 = vpop.f32.mrb[0].mxu0
        %v1855 = vpop.f32.mrb[0].mxu0
        %v1856 = vadd.f32 0.0, %v1855
        %v1857 = vpop.f32.mrb[0].mxu0
        %1858 = vmatprep.mubr.bf16.mxu0 0
        %1859 = vmatmul.mubr.bf16.gmra.mrb[0].mxu0 %v1676
        %v1860 = vpop.f32.mrb[0].mxu0
        %v1861 = vadd.f32 0.0, %v1860
        %v1862 = vpop.f32.mrb[0].mxu0
        %v1863 = vpop.f32.mrb[0].mxu0
        %v1864 = vadd.f32 0.0, %v1863
        %v1865 = vpop.f32.mrb[0].mxu0
        %1866 = vmatprep.mubr.bf16.mxu0 0
        %1867 = vmatmul.mubr.bf16.gmra.mrb[0].mxu0 %v1679
        %v1868 = vpop.f32.mrb[0].mxu0
        %v1869 = vadd.f32 0.0, %v1868
        %v1870 = vpop.f32.mrb[0].mxu0
        %v1871 = vpop.f32.mrb[0].mxu0
        %v1872 = vadd.f32 0.0, %v1871
        %v1873 = vpop.f32.mrb[0].mxu0
        %1874 = vmatprep.mubr.bf16.mxu0 0
        %1875 = vmatmul.mubr.bf16.gmra.mrb[0].mxu0 %v1682
        %v1876 = vpop.f32.mrb[0].mxu0
        %v1877 = vadd.f32 0.0, %v1876
        %v1878 = vpop.f32.mrb[0].mxu0
        %v1879 = vpop.f32.mrb[0].mxu0
        %v1880 = vadd.f32 0.0, %v1879
        %v1881 = vpop.f32.mrb[0].mxu0
        %1882 = vmatprep.mubr.bf16.mxu0 0
        %1883 = vmatmul.mubr.bf16.gmra.mrb[0].mxu0 %v1685
        %v1884 = vpop.f32.mrb[0].mxu0
        %v1885 = vadd.f32 0.0, %v1884
        %v1886 = vpop.f32.mrb[0].mxu0
        %v1887 = vpop.f32.mrb[0].mxu0
        %v1888 = vadd.f32 0.0, %v1887
        %v1889 = vpop.f32.mrb[0].mxu0
        %1890 = vmatprep.mubr.bf16.mxu0 0
        %1891 = vmatmul.mubr.bf16.gmra.mrb[0].mxu0 %v1688
        %v1892 = vpop.f32.mrb[0].mxu0
        %v1893 = vadd.f32 0.0, %v1892
        %v1894 = vpop.f32.mrb[0].mxu0
        %v1895 = vpop.f32.mrb[0].mxu0
        %v1896 = vadd.f32 0.0, %v1895
        %v1897 = vpop.f32.mrb[0].mxu0
        %1898 = vmatprep.mubr.bf16.mxu0 0
        %1899 = vmatmul.mubr.bf16.gmra.mrb[0].mxu0 %v1691
        %v1900 = vpop.f32.mrb[0].mxu0
        %v1901 = vadd.f32 0.0, %v1900
        %v1902 = vpop.f32.mrb[0].mxu0
        %v1903 = vpop.f32.mrb[0].mxu0
        %v1904 = vadd.f32 0.0, %v1903
        %v1905 = vpop.f32.mrb[0].mxu0
        %1906 = vmatprep.mubr.bf16.mxu0 0
        %1907 = vmatmul.mubr.bf16.gmra.mrb[0].mxu0 %v1694
        %v1908 = vpop.f32.mrb[0].mxu0
        %v1909 = vadd.f32 0.0, %v1908
        %v1910 = vpop.f32.mrb[0].mxu0
        %v1911 = vpop.f32.mrb[0].mxu0
        %v1912 = vadd.f32 0.0, %v1911
        %v1913 = vpop.f32.mrb[0].mxu0
        %1914 = vmatprep.mubr.bf16.mxu0 0
        %1915 = vmatmul.mubr.bf16.gmra.mrb[0].mxu0 %v1697
        %v1916 = vpop.f32.mrb[0].mxu0
        %v1917 = vadd.f32 0.0, %v1916
        %v1918 = vpop.f32.mrb[0].mxu0
        %v1919 = vpop.f32.mrb[0].mxu0
        %v1920 = vadd.f32 0.0, %v1919
        %v1921 = vpop.f32.mrb[0].mxu0
        %1922 = vmatprep.mubr.bf16.mxu0 0
        %1923 = vmatmul.mubr.bf16.gmra.mrb[0].mxu0 %v1700
        %v1924 = vpop.f32.mrb[0].mxu0
        %v1925 = vadd.f32 0.0, %v1924
        %v1926 = vpop.f32.mrb[0].mxu0
        %v1927 = vpop.f32.mrb[0].mxu0
        %v1928 = vadd.f32 0.0, %v1927
        %v1929 = vpop.f32.mrb[0].mxu0
        %1930 = vmatprep.mubr.bf16.mxu0 0
        %1931 = vmatmul.mubr.bf16.gmra.mrb[0].mxu0 %v1703
        %v1932 = vpop.f32.mrb[0].mxu0
        %v1933 = vadd.f32 0.0, %v1932
        %v1934 = vpop.f32.mrb[0].mxu0
        %v1935 = vpop.f32.mrb[0].mxu0
        %v1936 = vadd.f32 0.0, %v1935
        %v1937 = vpop.f32.mrb[0].mxu0
        %1938 = vmatprep.mubr.bf16.mxu0 0
        %1939 = vmatmul.mubr.bf16.gmra.mrb[0].mxu0 %v1706
        %v1940 = vpop.f32.mrb[0].mxu0
        %v1941 = vadd.f32 0.0, %v1940
        %v1942 = vpop.f32.mrb[0].mxu0
        %v1943 = vpop.f32.mrb[0].mxu0
        %v1944 = vadd.f32 0.0, %v1943
        %v1945 = vpop.f32.mrb[0].mxu0
        %1946 = vmatprep.mubr.bf16.mxu0 0
        %1947 = vmatmul.mubr.bf16.gmra.mrb[0].mxu0 %v1709
        %v1948 = vpop.f32.mrb[0].mxu0
        %v1949 = vadd.f32 0.0, %v1948
        %v1950 = vpop.f32.mrb[0].mxu0
        %v1951 = vpop.f32.mrb[0].mxu0
        %v1952 = vadd.f32 0.0, %v1951
        %v1953 = vpop.f32.mrb[0].mxu0
        %1954 = vmatprep.mubr.bf16.mxu0 0
        %1955 = vmatmul.mubr.bf16.gmra.mrb[0].mxu0 %v1712
        %v1956 = vpop.f32.mrb[0].mxu0
        %v1957 = vadd.f32 0.0, %v1956
        %v1958 = vpop.f32.mrb[0].mxu0
        %v1959 = vpop.f32.mrb[0].mxu0
        %v1960 = vadd.f32 0.0, %v1959
        %v1961 = vpop.f32.mrb[0].mxu0
        %1962 = vdwg.mxu0
        %vm1987 = vcmask 1046528
        %v1988 = vrot.slane %v1749, 1
        %v1989 = vrot.slane %v1752, 1
        %v1990 = vsel %vm1987, %v1988, %v1989
        %v1991 = vrot.slane %v1757, 1
        %v1992 = vsel %vm1987, %v1989, %v1991
        %v1993 = vrot.slane %v1760, 1
        %v1994 = vrot.slane %v1765, 1
        %v1995 = vsel %vm1987, %v1993, %v1994
        %v1996 = vrot.slane %v1768, 1
        %v1997 = vsel %vm1987, %v1994, %v1996
        %v1998 = vrot.slane %v1773, 1
        %v1999 = vrot.slane %v1776, 1
        %v2000 = vsel %vm1987, %v1998, %v1999
        %v2001 = vrot.slane %v1781, 1
        %v2002 = vsel %vm1987, %v1999, %v2001
        %v2003 = vrot.slane %v1784, 1
        %v2004 = vrot.slane %v1789, 1
        %v2005 = vsel %vm1987, %v2003, %v2004
        %v2006 = vrot.slane %v1792, 1
        %v2007 = vsel %vm1987, %v2004, %v2006
        %v2008 = vrot.slane %v1797, 1
        %v2009 = vrot.slane %v1800, 1
        %v2010 = vsel %vm1987, %v2008, %v2009
        %v2011 = vrot.slane %v1805, 1
        %v2012 = vsel %vm1987, %v2009, %v2011
        %v2013 = vrot.slane %v1808, 1
        %v2014 = vrot.slane %v1813, 1
        %v2015 = vsel %vm1987, %v2013, %v2014
        %v2016 = vrot.slane %v1816, 1
        %v2017 = vsel %vm1987, %v2014, %v2016
        %v2018 = vrot.slane %v1821, 1
        %v2019 = vrot.slane %v1824, 1
        %v2020 = vsel %vm1987, %v2018, %v2019
        %v2021 = vrot.slane %v1829, 1
        %v2022 = vsel %vm1987, %v2019, %v2021
        %v2023 = vrot.slane %v1832, 1
        %v2024 = vrot.slane %v1837, 1
        %v2025 = vsel %vm1987, %v2023, %v2024
        %v2026 = vrot.slane %v1840, 1
        %v2027 = vsel %vm1987, %v2024, %v2026
        %2028 = vrot.lane.b32.xlu0 %v1990, 120
        %v2029 = vpop.permute.xlu0 %2028
        %2030 = vrot.lane.b32.xlu0 %v1992, 120
        %v2031 = vpop.permute.xlu0 %2030
        %2032 = vrot.lane.b32.xlu0 %v1995, 120
        %v2033 = vpop.permute.xlu0 %2032
        %2034 = vrot.lane.b32.xlu0 %v1997, 120
        %v2035 = vpop.permute.xlu0 %2034
        %2036 = vrot.lane.b32.xlu0 %v2000, 120
        %v2037 = vpop.permute.xlu0 %2036
        %2038 = vrot.lane.b32.xlu0 %v2002, 120
        %v2039 = vpop.permute.xlu0 %2038
        %2040 = vrot.lane.b32.xlu0 %v2005, 120
        %v2041 = vpop.permute.xlu0 %2040
        %2042 = vrot.lane.b32.xlu0 %v2007, 120
        %v2043 = vpop.permute.xlu0 %2042
        %2044 = vrot.lane.b32.xlu0 %v2010, 120
        %v2045 = vpop.permute.xlu0 %2044
        %2046 = vrot.lane.b32.xlu0 %v2012, 120
        %v2047 = vpop.permute.xlu0 %2046
        %2048 = vrot.lane.b32.xlu0 %v2015, 120
        %v2049 = vpop.permute.xlu0 %2048
        %2050 = vrot.lane.b32.xlu0 %v2017, 120
        %v2051 = vpop.permute.xlu0 %2050
        %2052 = vrot.lane.b32.xlu0 %v2020, 120
        %v2053 = vpop.permute.xlu0 %2052
        %2054 = vrot.lane.b32.xlu0 %v2022, 120
        %v2055 = vpop.permute.xlu0 %2054
        %2056 = vrot.lane.b32.xlu0 %v2025, 120
        %v2057 = vpop.permute.xlu0 %2056
        %2058 = vrot.lane.b32.xlu0 %v2027, 120
        %v2059 = vpop.permute.xlu0 %2058
        %v2076 = vadd.f32 %v1749, %v2029
        %v2077 = vadd.f32 %v1752, %v2031
        %v2078 = vadd.f32 %v1760, %v2033
        %v2079 = vadd.f32 %v1765, %v2035
        %v2080 = vadd.f32 %v1773, %v2037
        %v2081 = vadd.f32 %v1776, %v2039
        %v2082 = vadd.f32 %v1784, %v2041
        %v2083 = vadd.f32 %v1789, %v2043
        %v2084 = vadd.f32 %v1797, %v2045
        %v2085 = vadd.f32 %v1800, %v2047
        %v2086 = vadd.f32 %v1808, %v2049
        %v2087 = vadd.f32 %v1813, %v2051
        %v2088 = vadd.f32 %v1821, %v2053
        %v2089 = vadd.f32 %v1824, %v2055
        %v2090 = vadd.f32 %v1832, %v2057
        %v2091 = vadd.f32 %v1837, %v2059
        %vm2092 = vcmask 1045504
        %v2093 = vrot.slane %v1749, 2
        %v2094 = vrot.slane %v1752, 2
        %v2095 = vsel %vm2092, %v2093, %v2094
        %v2096 = vrot.slane %v1757, 2
        %v2097 = vsel %vm2092, %v2094, %v2096
        %v2098 = vrot.slane %v1760, 2
        %v2099 = vrot.slane %v1765, 2
        %v2100 = vsel %vm2092, %v2098, %v2099
        %v2101 = vrot.slane %v1768, 2
        %v2102 = vsel %vm2092, %v2099, %v2101
        %v2103 = vrot.slane %v1773, 2
        %v2104 = vrot.slane %v1776, 2
        %v2105 = vsel %vm2092, %v2103, %v2104
        %v2106 = vrot.slane %v1781, 2
        %v2107 = vsel %vm2092, %v2104, %v2106
        %v2108 = vrot.slane %v1784, 2
        %v2109 = vrot.slane %v1789, 2
        %v2110 = vsel %vm2092, %v2108, %v2109
        %v2111 = vrot.slane %v1792, 2
        %v2112 = vsel %vm2092, %v2109, %v2111
        %v2113 = vrot.slane %v1797, 2
        %v2114 = vrot.slane %v1800, 2
        %v2115 = vsel %vm2092, %v2113, %v2114
        %v2116 = vrot.slane %v1805, 2
        %v2117 = vsel %vm2092, %v2114, %v2116
        %v2118 = vrot.slane %v1808, 2
        %v2119 = vrot.slane %v1813, 2
        %v2120 = vsel %vm2092, %v2118, %v2119
        %v2121 = vrot.slane %v1816, 2
        %v2122 = vsel %vm2092, %v2119, %v2121
        %v2123 = vrot.slane %v1821, 2
        %v2124 = vrot.slane %v1824, 2
        %v2125 = vsel %vm2092, %v2123, %v2124
        %v2126 = vrot.slane %v1829, 2
        %v2127 = vsel %vm2092, %v2124, %v2126
        %v2128 = vrot.slane %v1832, 2
        %v2129 = vrot.slane %v1837, 2
        %v2130 = vsel %vm2092, %v2128, %v2129
        %v2131 = vrot.slane %v1840, 2
        %v2132 = vsel %vm2092, %v2129, %v2131
        %2133 = vrot.lane.b32.xlu0 %v2095, 112
        %v2134 = vpop.permute.xlu0 %2133
        %2135 = vrot.lane.b32.xlu0 %v2097, 112
        %v2136 = vpop.permute.xlu0 %2135
        %2137 = vrot.lane.b32.xlu0 %v2100, 112
        %v2138 = vpop.permute.xlu0 %2137
        %2139 = vrot.lane.b32.xlu0 %v2102, 112
        %v2140 = vpop.permute.xlu0 %2139
        %2141 = vrot.lane.b32.xlu0 %v2105, 112
        %v2142 = vpop.permute.xlu0 %2141
        %2143 = vrot.lane.b32.xlu0 %v2107, 112
        %v2144 = vpop.permute.xlu0 %2143
        %2145 = vrot.lane.b32.xlu0 %v2110, 112
        %v2146 = vpop.permute.xlu0 %2145
        %2147 = vrot.lane.b32.xlu0 %v2112, 112
        %v2148 = vpop.permute.xlu0 %2147
        %2149 = vrot.lane.b32.xlu0 %v2115, 112
        %v2150 = vpop.permute.xlu0 %2149
        %2151 = vrot.lane.b32.xlu0 %v2117, 112
        %v2152 = vpop.permute.xlu0 %2151
        %2153 = vrot.lane.b32.xlu0 %v2120, 112
        %v2154 = vpop.permute.xlu0 %2153
        %2155 = vrot.lane.b32.xlu0 %v2122, 112
        %v2156 = vpop.permute.xlu0 %2155
        %2157 = vrot.lane.b32.xlu0 %v2125, 112
        %v2158 = vpop.permute.xlu0 %2157
        %2159 = vrot.lane.b32.xlu0 %v2127, 112
        %v2160 = vpop.permute.xlu0 %2159
        %2161 = vrot.lane.b32.xlu0 %v2130, 112
        %v2162 = vpop.permute.xlu0 %2161
        %2163 = vrot.lane.b32.xlu0 %v2132, 112
        %v2164 = vpop.permute.xlu0 %2163
        %v2181 = vadd.f32 %v2076, %v2134
        %v2182 = vadd.f32 %v2077, %v2136
        %v2183 = vadd.f32 %v2078, %v2138
        %v2184 = vadd.f32 %v2079, %v2140
        %v2185 = vadd.f32 %v2080, %v2142
        %v2186 = vadd.f32 %v2081, %v2144
        %v2187 = vadd.f32 %v2082, %v2146
        %v2188 = vadd.f32 %v2083, %v2148
        %v2189 = vadd.f32 %v2084, %v2150
        %v2190 = vadd.f32 %v2085, %v2152
        %v2191 = vadd.f32 %v2086, %v2154
        %v2192 = vadd.f32 %v2087, %v2156
        %v2193 = vadd.f32 %v2088, %v2158
        %v2194 = vadd.f32 %v2089, %v2160
        %v2195 = vadd.f32 %v2090, %v2162
        %v2196 = vadd.f32 %v2091, %v2164
        %2199 = vrot.lane.b32.xlu0 %v1760, 104
        %v2200 = vpop.permute.xlu0 %2199
        %2201 = vrot.lane.b32.xlu0 %v1765, 104
        %v2202 = vpop.permute.xlu0 %2201
        %2203 = vrot.lane.b32.xlu0 %v1773, 104
        %v2204 = vpop.permute.xlu0 %2203
        %2205 = vrot.lane.b32.xlu0 %v1776, 104
        %v2206 = vpop.permute.xlu0 %2205
        %2207 = vrot.lane.b32.xlu0 %v1784, 104
        %v2208 = vpop.permute.xlu0 %2207
        %2209 = vrot.lane.b32.xlu0 %v1789, 104
        %v2210 = vpop.permute.xlu0 %2209
        %2211 = vrot.lane.b32.xlu0 %v1797, 104
        %v2212 = vpop.permute.xlu0 %2211
        %2213 = vrot.lane.b32.xlu0 %v1800, 104
        %v2214 = vpop.permute.xlu0 %2213
        %2215 = vrot.lane.b32.xlu0 %v1808, 104
        %v2216 = vpop.permute.xlu0 %2215
        %2217 = vrot.lane.b32.xlu0 %v1813, 104
        %v2218 = vpop.permute.xlu0 %2217
        %2219 = vrot.lane.b32.xlu0 %v1821, 104
        %v2220 = vpop.permute.xlu0 %2219
        %2221 = vrot.lane.b32.xlu0 %v1824, 104
        %v2222 = vpop.permute.xlu0 %2221
        %2223 = vrot.lane.b32.xlu0 %v1832, 104
        %v2224 = vpop.permute.xlu0 %2223
        %2225 = vrot.lane.b32.xlu0 %v1837, 104
        %v2226 = vpop.permute.xlu0 %2225
        %2227 = vrot.lane.b32.xlu0 %v1845, 104
        %v2228 = vpop.permute.xlu0 %2227
        %2229 = vrot.lane.b32.xlu0 %v1848, 104
        %v2230 = vpop.permute.xlu0 %2229
        %v2247 = vadd.f32 %v2181, %v2200
        %v2248 = vadd.f32 %v2182, %v2202
        %v2249 = vadd.f32 %v2183, %v2204
        %v2250 = vadd.f32 %v2184, %v2206
        %v2251 = vadd.f32 %v2185, %v2208
        %v2252 = vadd.f32 %v2186, %v2210
        %v2253 = vadd.f32 %v2187, %v2212
        %v2254 = vadd.f32 %v2188, %v2214
        %v2255 = vadd.f32 %v2189, %v2216
        %v2256 = vadd.f32 %v2190, %v2218
        %v2257 = vadd.f32 %v2191, %v2220
        %v2258 = vadd.f32 %v2192, %v2222
        %v2259 = vadd.f32 %v2193, %v2224
        %v2260 = vadd.f32 %v2194, %v2226
        %v2261 = vadd.f32 %v2195, %v2228
        %v2262 = vadd.f32 %v2196, %v2230
        %v2264 = vrot.slane %v1845, 1
        %v2265 = vrot.slane %v1848, 1
        %v2266 = vsel %vm1987, %v2264, %v2265
        %v2267 = vrot.slane %v1853, 1
        %v2268 = vsel %vm1987, %v2265, %v2267
        %2269 = vrot.lane.b32.xlu0 %v1995, 96
        %v2270 = vpop.permute.xlu0 %2269
        %2271 = vrot.lane.b32.xlu0 %v1997, 96
        %v2272 = vpop.permute.xlu0 %2271
        %2273 = vrot.lane.b32.xlu0 %v2000, 96
        %v2274 = vpop.permute.xlu0 %2273
        %2275 = vrot.lane.b32.xlu0 %v2002, 96
        %v2276 = vpop.permute.xlu0 %2275
        %2277 = vrot.lane.b32.xlu0 %v2005, 96
        %v2278 = vpop.permute.xlu0 %2277
        %2279 = vrot.lane.b32.xlu0 %v2007, 96
        %v2280 = vpop.permute.xlu0 %2279
        %2281 = vrot.lane.b32.xlu0 %v2010, 96
        %v2282 = vpop.permute.xlu0 %2281
        %2283 = vrot.lane.b32.xlu0 %v2012, 96
        %v2284 = vpop.permute.xlu0 %2283
        %2285 = vrot.lane.b32.xlu0 %v2015, 96
        %v2286 = vpop.permute.xlu0 %2285
        %2287 = vrot.lane.b32.xlu0 %v2017, 96
        %v2288 = vpop.permute.xlu0 %2287
        %2289 = vrot.lane.b32.xlu0 %v2020, 96
        %v2290 = vpop.permute.xlu0 %2289
        %2291 = vrot.lane.b32.xlu0 %v2022, 96
        %v2292 = vpop.permute.xlu0 %2291
        %2293 = vrot.lane.b32.xlu0 %v2025, 96
        %v2294 = vpop.permute.xlu0 %2293
        %2295 = vrot.lane.b32.xlu0 %v2027, 96
        %v2296 = vpop.permute.xlu0 %2295
        %2297 = vrot.lane.b32.xlu0 %v2266, 96
        %v2298 = vpop.permute.xlu0 %2297
        %2299 = vrot.lane.b32.xlu0 %v2268, 96
        %v2300 = vpop.permute.xlu0 %2299
        %v2317 = vadd.f32 %v2247, %v2270
        %v2318 = vadd.f32 %v2248, %v2272
        %v2319 = vadd.f32 %v2249, %v2274
        %v2320 = vadd.f32 %v2250, %v2276
        %v2321 = vadd.f32 %v2251, %v2278
        %v2322 = vadd.f32 %v2252, %v2280
        %v2323 = vadd.f32 %v2253, %v2282
        %v2324 = vadd.f32 %v2254, %v2284
        %v2325 = vadd.f32 %v2255, %v2286
        %v2326 = vadd.f32 %v2256, %v2288
        %v2327 = vadd.f32 %v2257, %v2290
        %v2328 = vadd.f32 %v2258, %v2292
        %v2329 = vadd.f32 %v2259, %v2294
        %v2330 = vadd.f32 %v2260, %v2296
        %v2331 = vadd.f32 %v2261, %v2298
        %v2332 = vadd.f32 %v2262, %v2300
        %v2333 = vrot.slane %v1845, 2
        %v2334 = vrot.slane %v1848, 2
        %v2335 = vsel %vm2092, %v2333, %v2334
        %v2336 = vrot.slane %v1853, 2
        %v2337 = vsel %vm2092, %v2334, %v2336
        %2338 = vrot.lane.b32.xlu0 %v2100, 88
        %v2339 = vpop.permute.xlu0 %2338
        %2340 = vrot.lane.b32.xlu0 %v2102, 88
        %v2341 = vpop.permute.xlu0 %2340
        %2342 = vrot.lane.b32.xlu0 %v2105, 88
        %v2343 = vpop.permute.xlu0 %2342
        %2344 = vrot.lane.b32.xlu0 %v2107, 88
        %v2345 = vpop.permute.xlu0 %2344
        %2346 = vrot.lane.b32.xlu0 %v2110, 88
        %v2347 = vpop.permute.xlu0 %2346
        %2348 = vrot.lane.b32.xlu0 %v2112, 88
        %v2349 = vpop.permute.xlu0 %2348
        %2350 = vrot.lane.b32.xlu0 %v2115, 88
        %v2351 = vpop.permute.xlu0 %2350
        %2352 = vrot.lane.b32.xlu0 %v2117, 88
        %v2353 = vpop.permute.xlu0 %2352
        %2354 = vrot.lane.b32.xlu0 %v2120, 88
        %v2355 = vpop.permute.xlu0 %2354
        %2356 = vrot.lane.b32.xlu0 %v2122, 88
        %v2357 = vpop.permute.xlu0 %2356
        %2358 = vrot.lane.b32.xlu0 %v2125, 88
        %v2359 = vpop.permute.xlu0 %2358
        %2360 = vrot.lane.b32.xlu0 %v2127, 88
        %v2361 = vpop.permute.xlu0 %2360
        %2362 = vrot.lane.b32.xlu0 %v2130, 88
        %v2363 = vpop.permute.xlu0 %2362
        %2364 = vrot.lane.b32.xlu0 %v2132, 88
        %v2365 = vpop.permute.xlu0 %2364
        %2366 = vrot.lane.b32.xlu0 %v2335, 88
        %v2367 = vpop.permute.xlu0 %2366
        %2368 = vrot.lane.b32.xlu0 %v2337, 88
        %v2369 = vpop.permute.xlu0 %2368
        %v2386 = vadd.f32 %v2317, %v2339
        %v2387 = vadd.f32 %v2318, %v2341
        %v2388 = vadd.f32 %v2319, %v2343
        %v2389 = vadd.f32 %v2320, %v2345
        %v2390 = vadd.f32 %v2321, %v2347
        %v2391 = vadd.f32 %v2322, %v2349
        %v2392 = vadd.f32 %v2323, %v2351
        %v2393 = vadd.f32 %v2324, %v2353
        %v2394 = vadd.f32 %v2325, %v2355
        %v2395 = vadd.f32 %v2326, %v2357
        %v2396 = vadd.f32 %v2327, %v2359
        %v2397 = vadd.f32 %v2328, %v2361
        %v2398 = vadd.f32 %v2329, %v2363
        %v2399 = vadd.f32 %v2330, %v2365
        %v2400 = vadd.f32 %v2331, %v2367
        %v2401 = vadd.f32 %v2332, %v2369
        %2404 = vrot.lane.b32.xlu0 %v1773, 80
        %v2405 = vpop.permute.xlu0 %2404
        %2406 = vrot.lane.b32.xlu0 %v1776, 80
        %v2407 = vpop.permute.xlu0 %2406
        %2408 = vrot.lane.b32.xlu0 %v1784, 80
        %v2409 = vpop.permute.xlu0 %2408
        %2410 = vrot.lane.b32.xlu0 %v1789, 80
        %v2411 = vpop.permute.xlu0 %2410
        %2412 = vrot.lane.b32.xlu0 %v1797, 80
        %v2413 = vpop.permute.xlu0 %2412
        %2414 = vrot.lane.b32.xlu0 %v1800, 80
        %v2415 = vpop.permute.xlu0 %2414
        %2416 = vrot.lane.b32.xlu0 %v1808, 80
        %v2417 = vpop.permute.xlu0 %2416
        %2418 = vrot.lane.b32.xlu0 %v1813, 80
        %v2419 = vpop.permute.xlu0 %2418
        %2420 = vrot.lane.b32.xlu0 %v1821, 80
        %v2421 = vpop.permute.xlu0 %2420
        %2422 = vrot.lane.b32.xlu0 %v1824, 80
        %v2423 = vpop.permute.xlu0 %2422
        %2424 = vrot.lane.b32.xlu0 %v1832, 80
        %v2425 = vpop.permute.xlu0 %2424
        %2426 = vrot.lane.b32.xlu0 %v1837, 80
        %v2427 = vpop.permute.xlu0 %2426
        %2428 = vrot.lane.b32.xlu0 %v1845, 80
        %v2429 = vpop.permute.xlu0 %2428
        %2430 = vrot.lane.b32.xlu0 %v1848, 80
        %v2431 = vpop.permute.xlu0 %2430
        %2432 = vrot.lane.b32.xlu0 %v1856, 80
        %v2433 = vpop.permute.xlu0 %2432
        %2434 = vrot.lane.b32.xlu0 %v1861, 80
        %v2435 = vpop.permute.xlu0 %2434
        %v2452 = vadd.f32 %v2386, %v2405
        %v2453 = vadd.f32 %v2387, %v2407
        %v2454 = vadd.f32 %v2388, %v2409
        %v2455 = vadd.f32 %v2389, %v2411
        %v2456 = vadd.f32 %v2390, %v2413
        %v2457 = vadd.f32 %v2391, %v2415
        %v2458 = vadd.f32 %v2392, %v2417
        %v2459 = vadd.f32 %v2393, %v2419
        %v2460 = vadd.f32 %v2394, %v2421
        %v2461 = vadd.f32 %v2395, %v2423
        %v2462 = vadd.f32 %v2396, %v2425
        %v2463 = vadd.f32 %v2397, %v2427
        %v2464 = vadd.f32 %v2398, %v2429
        %v2465 = vadd.f32 %v2399, %v2431
        %v2466 = vadd.f32 %v2400, %v2433
        %v2467 = vadd.f32 %v2401, %v2435
        %v2469 = vrot.slane %v1856, 1
        %v2470 = vrot.slane %v1861, 1
        %v2471 = vsel %vm1987, %v2469, %v2470
        %v2472 = vrot.slane %v1864, 1
        %v2473 = vsel %vm1987, %v2470, %v2472
        %2474 = vrot.lane.b32.xlu0 %v2000, 72
        %v2475 = vpop.permute.xlu0 %2474
        %2476 = vrot.lane.b32.xlu0 %v2002, 72
        %v2477 = vpop.permute.xlu0 %2476
        %2478 = vrot.lane.b32.xlu0 %v2005, 72
        %v2479 = vpop.permute.xlu0 %2478
        %2480 = vrot.lane.b32.xlu0 %v2007, 72
        %v2481 = vpop.permute.xlu0 %2480
        %2482 = vrot.lane.b32.xlu0 %v2010, 72
        %v2483 = vpop.permute.xlu0 %2482
        %2484 = vrot.lane.b32.xlu0 %v2012, 72
        %v2485 = vpop.permute.xlu0 %2484
        %2486 = vrot.lane.b32.xlu0 %v2015, 72
        %v2487 = vpop.permute.xlu0 %2486
        %2488 = vrot.lane.b32.xlu0 %v2017, 72
        %v2489 = vpop.permute.xlu0 %2488
        %2490 = vrot.lane.b32.xlu0 %v2020, 72
        %v2491 = vpop.permute.xlu0 %2490
        %2492 = vrot.lane.b32.xlu0 %v2022, 72
        %v2493 = vpop.permute.xlu0 %2492
        %2494 = vrot.lane.b32.xlu0 %v2025, 72
        %v2495 = vpop.permute.xlu0 %2494
        %2496 = vrot.lane.b32.xlu0 %v2027, 72
        %v2497 = vpop.permute.xlu0 %2496
        %2498 = vrot.lane.b32.xlu0 %v2266, 72
        %v2499 = vpop.permute.xlu0 %2498
        %2500 = vrot.lane.b32.xlu0 %v2268, 72
        %v2501 = vpop.permute.xlu0 %2500
        %2502 = vrot.lane.b32.xlu0 %v2471, 72
        %v2503 = vpop.permute.xlu0 %2502
        %2504 = vrot.lane.b32.xlu0 %v2473, 72
        %v2505 = vpop.permute.xlu0 %2504
        %v2522 = vadd.f32 %v2452, %v2475
        %v2523 = vadd.f32 %v2453, %v2477
        %v2524 = vadd.f32 %v2454, %v2479
        %v2525 = vadd.f32 %v2455, %v2481
        %v2526 = vadd.f32 %v2456, %v2483
        %v2527 = vadd.f32 %v2457, %v2485
        %v2528 = vadd.f32 %v2458, %v2487
        %v2529 = vadd.f32 %v2459, %v2489
        %v2530 = vadd.f32 %v2460, %v2491
        %v2531 = vadd.f32 %v2461, %v2493
        %v2532 = vadd.f32 %v2462, %v2495
        %v2533 = vadd.f32 %v2463, %v2497
        %v2534 = vadd.f32 %v2464, %v2499
        %v2535 = vadd.f32 %v2465, %v2501
        %v2536 = vadd.f32 %v2466, %v2503
        %v2537 = vadd.f32 %v2467, %v2505
        %v2538 = vrot.slane %v1856, 2
        %v2539 = vrot.slane %v1861, 2
        %v2540 = vsel %vm2092, %v2538, %v2539
        %v2541 = vrot.slane %v1864, 2
        %v2542 = vsel %vm2092, %v2539, %v2541
        %2543 = vrot.lane.b32.xlu0 %v2105, 64
        %v2544 = vpop.permute.xlu0 %2543
        %2545 = vrot.lane.b32.xlu0 %v2107, 64
        %v2546 = vpop.permute.xlu0 %2545
        %2547 = vrot.lane.b32.xlu0 %v2110, 64
        %v2548 = vpop.permute.xlu0 %2547
        %2549 = vrot.lane.b32.xlu0 %v2112, 64
        %v2550 = vpop.permute.xlu0 %2549
        %2551 = vrot.lane.b32.xlu0 %v2115, 64
        %v2552 = vpop.permute.xlu0 %2551
        %2553 = vrot.lane.b32.xlu0 %v2117, 64
        %v2554 = vpop.permute.xlu0 %2553
        %2555 = vrot.lane.b32.xlu0 %v2120, 64
        %v2556 = vpop.permute.xlu0 %2555
        %2557 = vrot.lane.b32.xlu0 %v2122, 64
        %v2558 = vpop.permute.xlu0 %2557
        %2559 = vrot.lane.b32.xlu0 %v2125, 64
        %v2560 = vpop.permute.xlu0 %2559
        %2561 = vrot.lane.b32.xlu0 %v2127, 64
        %v2562 = vpop.permute.xlu0 %2561
        %2563 = vrot.lane.b32.xlu0 %v2130, 64
        %v2564 = vpop.permute.xlu0 %2563
        %2565 = vrot.lane.b32.xlu0 %v2132, 64
        %v2566 = vpop.permute.xlu0 %2565
        %2567 = vrot.lane.b32.xlu0 %v2335, 64
        %v2568 = vpop.permute.xlu0 %2567
        %2569 = vrot.lane.b32.xlu0 %v2337, 64
        %v2570 = vpop.permute.xlu0 %2569
        %2571 = vrot.lane.b32.xlu0 %v2540, 64
        %v2572 = vpop.permute.xlu0 %2571
        %2573 = vrot.lane.b32.xlu0 %v2542, 64
        %v2574 = vpop.permute.xlu0 %2573
        %v2591 = vadd.f32 %v2522, %v2544
        %v2592 = vadd.f32 %v2523, %v2546
        %v2593 = vadd.f32 %v2524, %v2548
        %v2594 = vadd.f32 %v2525, %v2550
        %v2595 = vadd.f32 %v2526, %v2552
        %v2596 = vadd.f32 %v2527, %v2554
        %v2597 = vadd.f32 %v2528, %v2556
        %v2598 = vadd.f32 %v2529, %v2558
        %v2599 = vadd.f32 %v2530, %v2560
        %v2600 = vadd.f32 %v2531, %v2562
        %v2601 = vadd.f32 %v2532, %v2564
        %v2602 = vadd.f32 %v2533, %v2566
        %v2603 = vadd.f32 %v2534, %v2568
        %v2604 = vadd.f32 %v2535, %v2570
        %v2605 = vadd.f32 %v2536, %v2572
        %v2606 = vadd.f32 %v2537, %v2574
        %v2607 = vcombine.low %v2591, %v2595
        %v2608 = vcombine.high %v2591, %v2595
        %v2610 = vunpack.c.l.s4 1983009808
        %v2611 = vunpack.c.0.s8 %v2610
        %v2612 = vlaneseq
        %v2613 = vshrl.u32 %v2612, 7
        %v2614 = vsub.s32 %v2611, %v2613
        %v2615 = vrot.slane %v2607, %v2614
        %v2617 = vunpack.c.l.s4 1983009808
        %v2618 = vunpack.c.0.s8 %v2617
        %v2619 = vlaneseq
        %v2620 = vshrl.u32 %v2619, 7
        %v2621 = vsub.s32 %v2618, %v2620
        %v2622 = vrot.slane %v2608, %v2621
        %v2623 = vcombine.low %v2593, %v2597
        %v2624 = vcombine.high %v2593, %v2597
        %v2626 = vunpack.c.l.s4 1983009808
        %v2627 = vunpack.c.0.s8 %v2626
        %v2628 = vlaneseq
        %v2629 = vshrl.u32 %v2628, 7
        %v2630 = vsub.s32 %v2627, %v2629
        %v2631 = vrot.slane %v2623, %v2630
        %v2633 = vunpack.c.l.s4 1983009808
        %v2634 = vunpack.c.0.s8 %v2633
        %v2635 = vlaneseq
        %v2636 = vshrl.u32 %v2635, 7
        %v2637 = vsub.s32 %v2634, %v2636
        %v2638 = vrot.slane %v2624, %v2637
        %v2639 = vcombine.low %v2599, %v2603
        %v2640 = vcombine.high %v2599, %v2603
        %v2642 = vunpack.c.l.s4 1983009808
        %v2643 = vunpack.c.0.s8 %v2642
        %v2644 = vlaneseq
        %v2645 = vshrl.u32 %v2644, 7
        %v2646 = vsub.s32 %v2643, %v2645
        %v2647 = vrot.slane %v2639, %v2646
        %v2649 = vunpack.c.l.s4 1983009808
        %v2650 = vunpack.c.0.s8 %v2649
        %v2651 = vlaneseq
        %v2652 = vshrl.u32 %v2651, 7
        %v2653 = vsub.s32 %v2650, %v2652
        %v2654 = vrot.slane %v2640, %v2653
        %v2655 = vcombine.low %v2601, %v2605
        %v2656 = vcombine.high %v2601, %v2605
        %v2658 = vunpack.c.l.s4 1983009808
        %v2659 = vunpack.c.0.s8 %v2658
        %v2660 = vlaneseq
        %v2661 = vshrl.u32 %v2660, 7
        %v2662 = vsub.s32 %v2659, %v2661
        %v2663 = vrot.slane %v2655, %v2662
        %v2665 = vunpack.c.l.s4 1983009808
        %v2666 = vunpack.c.0.s8 %v2665
        %v2667 = vlaneseq
        %v2668 = vshrl.u32 %v2667, 7
        %v2669 = vsub.s32 %v2666, %v2668
        %v2670 = vrot.slane %v2656, %v2669
        %v2671 = vcombine.low %v2615, %v2631
        %v2672 = vcombine.high %v2615, %v2631
        %v2674 = vunpack.c.l.s4 1934713408
        %v2675 = vunpack.c.0.s8 %v2674
        %v2676 = vlaneseq
        %v2677 = vshrl.u32 %v2676, 7
        %v2678 = vsub.s32 %v2675, %v2677
        %v2679 = vrot.slane %v2671, %v2678
        %v2681 = vunpack.c.l.s4 1934713408
        %v2682 = vunpack.c.0.s8 %v2681
        %v2683 = vlaneseq
        %v2684 = vshrl.u32 %v2683, 7
        %v2685 = vsub.s32 %v2682, %v2684
        %v2686 = vrot.slane %v2672, %v2685
        %v2687 = vcombine.low %v2622, %v2638
        %v2688 = vcombine.high %v2622, %v2638
        %v2690 = vunpack.c.l.s4 1934713408
        %v2691 = vunpack.c.0.s8 %v2690
        %v2692 = vlaneseq
        %v2693 = vshrl.u32 %v2692, 7
        %v2694 = vsub.s32 %v2691, %v2693
        %v2695 = vrot.slane %v2687, %v2694
        %v2697 = vunpack.c.l.s4 1934713408
        %v2698 = vunpack.c.0.s8 %v2697
        %v2699 = vlaneseq
        %v2700 = vshrl.u32 %v2699, 7
        %v2701 = vsub.s32 %v2698, %v2700
        %v2702 = vrot.slane %v2688, %v2701
        %v2703 = vcombine.low %v2647, %v2663
        %v2704 = vcombine.high %v2647, %v2663
        %v2706 = vunpack.c.l.s4 1934713408
        %v2707 = vunpack.c.0.s8 %v2706
        %v2708 = vlaneseq
        %v2709 = vshrl.u32 %v2708, 7
        %v2710 = vsub.s32 %v2707, %v2709
        %v2711 = vrot.slane %v2703, %v2710
        %v2713 = vunpack.c.l.s4 1934713408
        %v2714 = vunpack.c.0.s8 %v2713
        %v2715 = vlaneseq
        %v2716 = vshrl.u32 %v2715, 7
        %v2717 = vsub.s32 %v2714, %v2716
        %v2718 = vrot.slane %v2704, %v2717
        %v2719 = vcombine.low %v2654, %v2670
        %v2720 = vcombine.high %v2654, %v2670
        %v2722 = vunpack.c.l.s4 1934713408
        %v2723 = vunpack.c.0.s8 %v2722
        %v2724 = vlaneseq
        %v2725 = vshrl.u32 %v2724, 7
        %v2726 = vsub.s32 %v2723, %v2725
        %v2727 = vrot.slane %v2719, %v2726
        %v2729 = vunpack.c.l.s4 1934713408
        %v2730 = vunpack.c.0.s8 %v2729
        %v2731 = vlaneseq
        %v2732 = vshrl.u32 %v2731, 7
        %v2733 = vsub.s32 %v2730, %v2732
        %v2734 = vrot.slane %v2720, %v2733
        %v2735 = vcombine.low %v2679, %v2711
        %v2736 = vcombine.high %v2679, %v2711
        %v2737 = vcombine.low %v2686, %v2718
        %v2738 = vcombine.high %v2686, %v2718
        %v2739 = vcombine.low %v2695, %v2727
        %v2740 = vcombine.high %v2695, %v2727
        %v2741 = vcombine.low %v2702, %v2734
        %v2742 = vcombine.high %v2702, %v2734
        %v2743 = vcombine.low %v2592, %v2596
        %v2744 = vcombine.high %v2592, %v2596
        %v2746 = vunpack.c.l.s4 1983009808
        %v2747 = vunpack.c.0.s8 %v2746
        %v2748 = vlaneseq
        %v2749 = vshrl.u32 %v2748, 7
        %v2750 = vsub.s32 %v2747, %v2749
        %v2751 = vrot.slane %v2743, %v2750
        %v2753 = vunpack.c.l.s4 1983009808
        %v2754 = vunpack.c.0.s8 %v2753
        %v2755 = vlaneseq
        %v2756 = vshrl.u32 %v2755, 7
        %v2757 = vsub.s32 %v2754, %v2756
        %v2758 = vrot.slane %v2744, %v2757
        %v2759 = vcombine.low %v2594, %v2598
        %v2760 = vcombine.high %v2594, %v2598
        %v2762 = vunpack.c.l.s4 1983009808
        %v2763 = vunpack.c.0.s8 %v2762
        %v2764 = vlaneseq
        %v2765 = vshrl.u32 %v2764, 7
        %v2766 = vsub.s32 %v2763, %v2765
        %v2767 = vrot.slane %v2759, %v2766
        %v2769 = vunpack.c.l.s4 1983009808
        %v2770 = vunpack.c.0.s8 %v2769
        %v2771 = vlaneseq
        %v2772 = vshrl.u32 %v2771, 7
        %v2773 = vsub.s32 %v2770, %v2772
        %v2774 = vrot.slane %v2760, %v2773
        %v2775 = vcombine.low %v2600, %v2604
        %v2776 = vcombine.high %v2600, %v2604
        %v2778 = vunpack.c.l.s4 1983009808
        %v2779 = vunpack.c.0.s8 %v2778
        %v2780 = vlaneseq
        %v2781 = vshrl.u32 %v2780, 7
        %v2782 = vsub.s32 %v2779, %v2781
        %v2783 = vrot.slane %v2775, %v2782
        %v2785 = vunpack.c.l.s4 1983009808
        %v2786 = vunpack.c.0.s8 %v2785
        %v2787 = vlaneseq
        %v2788 = vshrl.u32 %v2787, 7
        %v2789 = vsub.s32 %v2786, %v2788
        %v2790 = vrot.slane %v2776, %v2789
        %v2791 = vcombine.low %v2602, %v2606
        %v2792 = vcombine.high %v2602, %v2606
        %v2794 = vunpack.c.l.s4 1983009808
        %v2795 = vunpack.c.0.s8 %v2794
        %v2796 = vlaneseq
        %v2797 = vshrl.u32 %v2796, 7
        %v2798 = vsub.s32 %v2795, %v2797
        %v2799 = vrot.slane %v2791, %v2798
        %v2801 = vunpack.c.l.s4 1983009808
        %v2802 = vunpack.c.0.s8 %v2801
        %v2803 = vlaneseq
        %v2804 = vshrl.u32 %v2803, 7
        %v2805 = vsub.s32 %v2802, %v2804
        %v2806 = vrot.slane %v2792, %v2805
        %v2807 = vcombine.low %v2751, %v2767
        %v2808 = vcombine.high %v2751, %v2767
        %v2810 = vunpack.c.l.s4 1934713408
        %v2811 = vunpack.c.0.s8 %v2810
        %v2812 = vlaneseq
        %v2813 = vshrl.u32 %v2812, 7
        %v2814 = vsub.s32 %v2811, %v2813
        %v2815 = vrot.slane %v2807, %v2814
        %v2817 = vunpack.c.l.s4 1934713408
        %v2818 = vunpack.c.0.s8 %v2817
        %v2819 = vlaneseq
        %v2820 = vshrl.u32 %v2819, 7
        %v2821 = vsub.s32 %v2818, %v2820
        %v2822 = vrot.slane %v2808, %v2821
        %v2823 = vcombine.low %v2758, %v2774
        %v2824 = vcombine.high %v2758, %v2774
        %v2826 = vunpack.c.l.s4 1934713408
        %v2827 = vunpack.c.0.s8 %v2826
        %v2828 = vlaneseq
        %v2829 = vshrl.u32 %v2828, 7
        %v2830 = vsub.s32 %v2827, %v2829
        %v2831 = vrot.slane %v2823, %v2830
        %v2833 = vunpack.c.l.s4 1934713408
        %v2834 = vunpack.c.0.s8 %v2833
        %v2835 = vlaneseq
        %v2836 = vshrl.u32 %v2835, 7
        %v2837 = vsub.s32 %v2834, %v2836
        %v2838 = vrot.slane %v2824, %v2837
        %v2839 = vcombine.low %v2783, %v2799
        %v2840 = vcombine.high %v2783, %v2799
        %v2842 = vunpack.c.l.s4 1934713408
        %v2843 = vunpack.c.0.s8 %v2842
        %v2844 = vlaneseq
        %v2845 = vshrl.u32 %v2844, 7
        %v2846 = vsub.s32 %v2843, %v2845
        %v2847 = vrot.slane %v2839, %v2846
        %v2849 = vunpack.c.l.s4 1934713408
        %v2850 = vunpack.c.0.s8 %v2849
        %v2851 = vlaneseq
        %v2852 = vshrl.u32 %v2851, 7
        %v2853 = vsub.s32 %v2850, %v2852
        %v2854 = vrot.slane %v2840, %v2853
        %v2855 = vcombine.low %v2790, %v2806
        %v2856 = vcombine.high %v2790, %v2806
        %v2858 = vunpack.c.l.s4 1934713408
        %v2859 = vunpack.c.0.s8 %v2858
        %v2860 = vlaneseq
        %v2861 = vshrl.u32 %v2860, 7
        %v2862 = vsub.s32 %v2859, %v2861
        %v2863 = vrot.slane %v2855, %v2862
        %v2865 = vunpack.c.l.s4 1934713408
        %v2866 = vunpack.c.0.s8 %v2865
        %v2867 = vlaneseq
        %v2868 = vshrl.u32 %v2867, 7
        %v2869 = vsub.s32 %v2866, %v2868
        %v2870 = vrot.slane %v2856, %v2869
        %v2871 = vcombine.low %v2815, %v2847
        %v2872 = vcombine.high %v2815, %v2847
        %v2873 = vcombine.low %v2822, %v2854
        %v2874 = vcombine.high %v2822, %v2854
        %v2875 = vcombine.low %v2831, %v2863
        %v2876 = vcombine.high %v2831, %v2863
        %v2877 = vcombine.low %v2838, %v2870
        %v2878 = vcombine.high %v2838, %v2870
        %2880 = vrot.lane.b32.xlu0 %v2736, 8
        %v2881 = vpop.permute.xlu0 %2880
        %2884 = vrot.lane.b32.xlu0 %v2737, 16
        %v2885 = vpop.permute.xlu0 %2884
        %2888 = vrot.lane.b32.xlu0 %v2738, 24
        %v2889 = vpop.permute.xlu0 %2888
        %2892 = vrot.lane.b32.xlu0 %v2739, 32
        %v2893 = vpop.permute.xlu0 %2892
        %2896 = vrot.lane.b32.xlu0 %v2740, 40
        %v2897 = vpop.permute.xlu0 %2896
        %2900 = vrot.lane.b32.xlu0 %v2741, 48
        %v2901 = vpop.permute.xlu0 %2900
        %2904 = vrot.lane.b32.xlu0 %v2742, 56
        %v2905 = vpop.permute.xlu0 %2904
        %2908 = vrot.lane.b32.xlu0 %v2871, 64
        %v2909 = vpop.permute.xlu0 %2908
        %2912 = vrot.lane.b32.xlu0 %v2872, 72
        %v2913 = vpop.permute.xlu0 %2912
        %2916 = vrot.lane.b32.xlu0 %v2873, 80
        %v2917 = vpop.permute.xlu0 %2916
        %2920 = vrot.lane.b32.xlu0 %v2874, 88
        %v2921 = vpop.permute.xlu0 %2920
        %2924 = vrot.lane.b32.xlu0 %v2875, 96
        %v2925 = vpop.permute.xlu0 %2924
        %2928 = vrot.lane.b32.xlu0 %v2876, 104
        %v2929 = vpop.permute.xlu0 %2928
        %2932 = vrot.lane.b32.xlu0 %v2877, 112
        %v2933 = vpop.permute.xlu0 %2932
        %2936 = vrot.lane.b32.xlu0 %v2878, 120
        %v2937 = vpop.permute.xlu0 %2936
        %vm2939 = vcmask 64512
        %v2940 = vsel %vm2939, %v2735, %v2881
        %v2941 = vsel %vm646, %v2940, %v2885
        %vm2942 = vcmask 195584
        %v2943 = vsel %vm2942, %v2941, %v2889
        %v2944 = vsel %vm1632, %v2943, %v2893
        %vm2945 = vcmask 326656
        %v2946 = vsel %vm2945, %v2944, %v2897
        %vm2947 = vcmask 392192
        %v2948 = vsel %vm2947, %v2946, %v2901
        %vm2949 = vcmask 457728
        %v2950 = vsel %vm2949, %v2948, %v2905
        %vm2951 = vcmask 523264
        %v2952 = vsel %vm2951, %v2950, %v2909
        %vm2953 = vcmask 588800
        %v2954 = vsel %vm2953, %v2952, %v2913
        %vm2955 = vcmask 654336
        %v2956 = vsel %vm2955, %v2954, %v2917
        %vm2957 = vcmask 719872
        %v2958 = vsel %vm2957, %v2956, %v2921
        %vm2959 = vcmask 785408
        %v2960 = vsel %vm2959, %v2958, %v2925
        %vm2961 = vcmask 850944
        %v2962 = vsel %vm2961, %v2960, %v2929
        %vm2963 = vcmask 916480
        %v2964 = vsel %vm2963, %v2962, %v2933
        %vm2965 = vcmask 982016
        %v2966 = vsel %vm2965, %v2964, %v2937
        %2967 = vst [vmem:[%s355] sm:$0xff] %v2966
        %v2986 = vrot.slane %v1869, 1
        %v2987 = vrot.slane %v1872, 1
        %v2988 = vsel %vm1987, %v2986, %v2987
        %v2989 = vrot.slane %v1877, 1
        %v2990 = vsel %vm1987, %v2987, %v2989
        %v2991 = vrot.slane %v1880, 1
        %v2992 = vrot.slane %v1885, 1
        %v2993 = vsel %vm1987, %v2991, %v2992
        %v2994 = vrot.slane %v1888, 1
        %v2995 = vsel %vm1987, %v2992, %v2994
        %v2996 = vrot.slane %v1893, 1
        %v2997 = vrot.slane %v1896, 1
        %v2998 = vsel %vm1987, %v2996, %v2997
        %v2999 = vrot.slane %v1901, 1
        %v3000 = vsel %vm1987, %v2997, %v2999
        %v3001 = vrot.slane %v1904, 1
        %v3002 = vrot.slane %v1909, 1
        %v3003 = vsel %vm1987, %v3001, %v3002
        %v3004 = vrot.slane %v1912, 1
        %v3005 = vsel %vm1987, %v3002, %v3004
        %v3006 = vrot.slane %v1917, 1
        %v3007 = vrot.slane %v1920, 1
        %v3008 = vsel %vm1987, %v3006, %v3007
        %v3009 = vrot.slane %v1925, 1
        %v3010 = vsel %vm1987, %v3007, %v3009
        %v3011 = vrot.slane %v1928, 1
        %v3012 = vrot.slane %v1933, 1
        %v3013 = vsel %vm1987, %v3011, %v3012
        %v3014 = vrot.slane %v1936, 1
        %v3015 = vsel %vm1987, %v3012, %v3014
        %3016 = vrot.lane.b32.xlu0 %v2266, 120
        %v3017 = vpop.permute.xlu0 %3016
        %3018 = vrot.lane.b32.xlu0 %v2268, 120
        %v3019 = vpop.permute.xlu0 %3018
        %3020 = vrot.lane.b32.xlu0 %v2471, 120
        %v3021 = vpop.permute.xlu0 %3020
        %3022 = vrot.lane.b32.xlu0 %v2473, 120
        %v3023 = vpop.permute.xlu0 %3022
        %3024 = vrot.lane.b32.xlu0 %v2988, 120
        %v3025 = vpop.permute.xlu0 %3024
        %3026 = vrot.lane.b32.xlu0 %v2990, 120
        %v3027 = vpop.permute.xlu0 %3026
        %3028 = vrot.lane.b32.xlu0 %v2993, 120
        %v3029 = vpop.permute.xlu0 %3028
        %3030 = vrot.lane.b32.xlu0 %v2995, 120
        %v3031 = vpop.permute.xlu0 %3030
        %3032 = vrot.lane.b32.xlu0 %v2998, 120
        %v3033 = vpop.permute.xlu0 %3032
        %3034 = vrot.lane.b32.xlu0 %v3000, 120
        %v3035 = vpop.permute.xlu0 %3034
        %3036 = vrot.lane.b32.xlu0 %v3003, 120
        %v3037 = vpop.permute.xlu0 %3036
        %3038 = vrot.lane.b32.xlu0 %v3005, 120
        %v3039 = vpop.permute.xlu0 %3038
        %3040 = vrot.lane.b32.xlu0 %v3008, 120
        %v3041 = vpop.permute.xlu0 %3040
        %3042 = vrot.lane.b32.xlu0 %v3010, 120
        %v3043 = vpop.permute.xlu0 %3042
        %3044 = vrot.lane.b32.xlu0 %v3013, 120
        %v3045 = vpop.permute.xlu0 %3044
        %3046 = vrot.lane.b32.xlu0 %v3015, 120
        %v3047 = vpop.permute.xlu0 %3046
        %v3064 = vadd.f32 %v1845, %v3017
        %v3065 = vadd.f32 %v1848, %v3019
        %v3066 = vadd.f32 %v1856, %v3021
        %v3067 = vadd.f32 %v1861, %v3023
        %v3068 = vadd.f32 %v1869, %v3025
        %v3069 = vadd.f32 %v1872, %v3027
        %v3070 = vadd.f32 %v1880, %v3029
        %v3071 = vadd.f32 %v1885, %v3031
        %v3072 = vadd.f32 %v1893, %v3033
        %v3073 = vadd.f32 %v1896, %v3035
        %v3074 = vadd.f32 %v1904, %v3037
        %v3075 = vadd.f32 %v1909, %v3039
        %v3076 = vadd.f32 %v1917, %v3041
        %v3077 = vadd.f32 %v1920, %v3043
        %v3078 = vadd.f32 %v1928, %v3045
        %v3079 = vadd.f32 %v1933, %v3047
        %v3080 = vrot.slane %v1869, 2
        %v3081 = vrot.slane %v1872, 2
        %v3082 = vsel %vm2092, %v3080, %v3081
        %v3083 = vrot.slane %v1877, 2
        %v3084 = vsel %vm2092, %v3081, %v3083
        %v3085 = vrot.slane %v1880, 2
        %v3086 = vrot.slane %v1885, 2
        %v3087 = vsel %vm2092, %v3085, %v3086
        %v3088 = vrot.slane %v1888, 2
        %v3089 = vsel %vm2092, %v3086, %v3088
        %v3090 = vrot.slane %v1893, 2
        %v3091 = vrot.slane %v1896, 2
        %v3092 = vsel %vm2092, %v3090, %v3091
        %v3093 = vrot.slane %v1901, 2
        %v3094 = vsel %vm2092, %v3091, %v3093
        %v3095 = vrot.slane %v1904, 2
        %v3096 = vrot.slane %v1909, 2
        %v3097 = vsel %vm2092, %v3095, %v3096
        %v3098 = vrot.slane %v1912, 2
        %v3099 = vsel %vm2092, %v3096, %v3098
        %v3100 = vrot.slane %v1917, 2
        %v3101 = vrot.slane %v1920, 2
        %v3102 = vsel %vm2092, %v3100, %v3101
        %v3103 = vrot.slane %v1925, 2
        %v3104 = vsel %vm2092, %v3101, %v3103
        %v3105 = vrot.slane %v1928, 2
        %v3106 = vrot.slane %v1933, 2
        %v3107 = vsel %vm2092, %v3105, %v3106
        %v3108 = vrot.slane %v1936, 2
        %v3109 = vsel %vm2092, %v3106, %v3108
        %3110 = vrot.lane.b32.xlu0 %v2335, 112
        %v3111 = vpop.permute.xlu0 %3110
        %3112 = vrot.lane.b32.xlu0 %v2337, 112
        %v3113 = vpop.permute.xlu0 %3112
        %3114 = vrot.lane.b32.xlu0 %v2540, 112
        %v3115 = vpop.permute.xlu0 %3114
        %3116 = vrot.lane.b32.xlu0 %v2542, 112
        %v3117 = vpop.permute.xlu0 %3116
        %3118 = vrot.lane.b32.xlu0 %v3082, 112
        %v3119 = vpop.permute.xlu0 %3118
        %3120 = vrot.lane.b32.xlu0 %v3084, 112
        %v3121 = vpop.permute.xlu0 %3120
        %3122 = vrot.lane.b32.xlu0 %v3087, 112
        %v3123 = vpop.permute.xlu0 %3122
        %3124 = vrot.lane.b32.xlu0 %v3089, 112
        %v3125 = vpop.permute.xlu0 %3124
        %3126 = vrot.lane.b32.xlu0 %v3092, 112
        %v3127 = vpop.permute.xlu0 %3126
        %3128 = vrot.lane.b32.xlu0 %v3094, 112
        %v3129 = vpop.permute.xlu0 %3128
        %3130 = vrot.lane.b32.xlu0 %v3097, 112
        %v3131 = vpop.permute.xlu0 %3130
        %3132 = vrot.lane.b32.xlu0 %v3099, 112
        %v3133 = vpop.permute.xlu0 %3132
        %3134 = vrot.lane.b32.xlu0 %v3102, 112
        %v3135 = vpop.permute.xlu0 %3134
        %3136 = vrot.lane.b32.xlu0 %v3104, 112
        %v3137 = vpop.permute.xlu0 %3136
        %3138 = vrot.lane.b32.xlu0 %v3107, 112
        %v3139 = vpop.permute.xlu0 %3138
        %3140 = vrot.lane.b32.xlu0 %v3109, 112
        %v3141 = vpop.permute.xlu0 %3140
        %v3158 = vadd.f32 %v3064, %v3111
        %v3159 = vadd.f32 %v3065, %v3113
        %v3160 = vadd.f32 %v3066, %v3115
        %v3161 = vadd.f32 %v3067, %v3117
        %v3162 = vadd.f32 %v3068, %v3119
        %v3163 = vadd.f32 %v3069, %v3121
        %v3164 = vadd.f32 %v3070, %v3123
        %v3165 = vadd.f32 %v3071, %v3125
        %v3166 = vadd.f32 %v3072, %v3127
        %v3167 = vadd.f32 %v3073, %v3129
        %v3168 = vadd.f32 %v3074, %v3131
        %v3169 = vadd.f32 %v3075, %v3133
        %v3170 = vadd.f32 %v3076, %v3135
        %v3171 = vadd.f32 %v3077, %v3137
        %v3172 = vadd.f32 %v3078, %v3139
        %v3173 = vadd.f32 %v3079, %v3141
        %3176 = vrot.lane.b32.xlu0 %v1856, 104
        %v3177 = vpop.permute.xlu0 %3176
        %3178 = vrot.lane.b32.xlu0 %v1861, 104
        %v3179 = vpop.permute.xlu0 %3178
        %3180 = vrot.lane.b32.xlu0 %v1869, 104
        %v3181 = vpop.permute.xlu0 %3180
        %3182 = vrot.lane.b32.xlu0 %v1872, 104
        %v3183 = vpop.permute.xlu0 %3182
        %3184 = vrot.lane.b32.xlu0 %v1880, 104
        %v3185 = vpop.permute.xlu0 %3184
        %3186 = vrot.lane.b32.xlu0 %v1885, 104
        %v3187 = vpop.permute.xlu0 %3186
        %3188 = vrot.lane.b32.xlu0 %v1893, 104
        %v3189 = vpop.permute.xlu0 %3188
        %3190 = vrot.lane.b32.xlu0 %v1896, 104
        %v3191 = vpop.permute.xlu0 %3190
        %3192 = vrot.lane.b32.xlu0 %v1904, 104
        %v3193 = vpop.permute.xlu0 %3192
        %3194 = vrot.lane.b32.xlu0 %v1909, 104
        %v3195 = vpop.permute.xlu0 %3194
        %3196 = vrot.lane.b32.xlu0 %v1917, 104
        %v3197 = vpop.permute.xlu0 %3196
        %3198 = vrot.lane.b32.xlu0 %v1920, 104
        %v3199 = vpop.permute.xlu0 %3198
        %3200 = vrot.lane.b32.xlu0 %v1928, 104
        %v3201 = vpop.permute.xlu0 %3200
        %3202 = vrot.lane.b32.xlu0 %v1933, 104
        %v3203 = vpop.permute.xlu0 %3202
        %3204 = vrot.lane.b32.xlu0 %v1941, 104
        %v3205 = vpop.permute.xlu0 %3204
        %3206 = vrot.lane.b32.xlu0 %v1944, 104
        %v3207 = vpop.permute.xlu0 %3206
        %v3224 = vadd.f32 %v3158, %v3177
        %v3225 = vadd.f32 %v3159, %v3179
        %v3226 = vadd.f32 %v3160, %v3181
        %v3227 = vadd.f32 %v3161, %v3183
        %v3228 = vadd.f32 %v3162, %v3185
        %v3229 = vadd.f32 %v3163, %v3187
        %v3230 = vadd.f32 %v3164, %v3189
        %v3231 = vadd.f32 %v3165, %v3191
        %v3232 = vadd.f32 %v3166, %v3193
        %v3233 = vadd.f32 %v3167, %v3195
        %v3234 = vadd.f32 %v3168, %v3197
        %v3235 = vadd.f32 %v3169, %v3199
        %v3236 = vadd.f32 %v3170, %v3201
        %v3237 = vadd.f32 %v3171, %v3203
        %v3238 = vadd.f32 %v3172, %v3205
        %v3239 = vadd.f32 %v3173, %v3207
        %v3241 = vrot.slane %v1941, 1
        %v3242 = vrot.slane %v1944, 1
        %v3243 = vsel %vm1987, %v3241, %v3242
        %v3244 = vrot.slane %v1949, 1
        %v3245 = vsel %vm1987, %v3242, %v3244
        %3246 = vrot.lane.b32.xlu0 %v2471, 96
        %v3247 = vpop.permute.xlu0 %3246
        %3248 = vrot.lane.b32.xlu0 %v2473, 96
        %v3249 = vpop.permute.xlu0 %3248
        %3250 = vrot.lane.b32.xlu0 %v2988, 96
        %v3251 = vpop.permute.xlu0 %3250
        %3252 = vrot.lane.b32.xlu0 %v2990, 96
        %v3253 = vpop.permute.xlu0 %3252
        %3254 = vrot.lane.b32.xlu0 %v2993, 96
        %v3255 = vpop.permute.xlu0 %3254
        %3256 = vrot.lane.b32.xlu0 %v2995, 96
        %v3257 = vpop.permute.xlu0 %3256
        %3258 = vrot.lane.b32.xlu0 %v2998, 96
        %v3259 = vpop.permute.xlu0 %3258
        %3260 = vrot.lane.b32.xlu0 %v3000, 96
        %v3261 = vpop.permute.xlu0 %3260
        %3262 = vrot.lane.b32.xlu0 %v3003, 96
        %v3263 = vpop.permute.xlu0 %3262
        %3264 = vrot.lane.b32.xlu0 %v3005, 96
        %v3265 = vpop.permute.xlu0 %3264
        %3266 = vrot.lane.b32.xlu0 %v3008, 96
        %v3267 = vpop.permute.xlu0 %3266
        %3268 = vrot.lane.b32.xlu0 %v3010, 96
        %v3269 = vpop.permute.xlu0 %3268
        %3270 = vrot.lane.b32.xlu0 %v3013, 96
        %v3271 = vpop.permute.xlu0 %3270
        %3272 = vrot.lane.b32.xlu0 %v3015, 96
        %v3273 = vpop.permute.xlu0 %3272
        %3274 = vrot.lane.b32.xlu0 %v3243, 96
        %v3275 = vpop.permute.xlu0 %3274
        %3276 = vrot.lane.b32.xlu0 %v3245, 96
        %v3277 = vpop.permute.xlu0 %3276
        %v3294 = vadd.f32 %v3224, %v3247
        %v3295 = vadd.f32 %v3225, %v3249
        %v3296 = vadd.f32 %v3226, %v3251
        %v3297 = vadd.f32 %v3227, %v3253
        %v3298 = vadd.f32 %v3228, %v3255
        %v3299 = vadd.f32 %v3229, %v3257
        %v3300 = vadd.f32 %v3230, %v3259
        %v3301 = vadd.f32 %v3231, %v3261
        %v3302 = vadd.f32 %v3232, %v3263
        %v3303 = vadd.f32 %v3233, %v3265
        %v3304 = vadd.f32 %v3234, %v3267
        %v3305 = vadd.f32 %v3235, %v3269
        %v3306 = vadd.f32 %v3236, %v3271
        %v3307 = vadd.f32 %v3237, %v3273
        %v3308 = vadd.f32 %v3238, %v3275
        %v3309 = vadd.f32 %v3239, %v3277
        %v3310 = vrot.slane %v1941, 2
        %v3311 = vrot.slane %v1944, 2
        %v3312 = vsel %vm2092, %v3310, %v3311
        %v3313 = vrot.slane %v1949, 2
        %v3314 = vsel %vm2092, %v3311, %v3313
        %3315 = vrot.lane.b32.xlu0 %v2540, 88
        %v3316 = vpop.permute.xlu0 %3315
        %3317 = vrot.lane.b32.xlu0 %v2542, 88
        %v3318 = vpop.permute.xlu0 %3317
        %3319 = vrot.lane.b32.xlu0 %v3082, 88
        %v3320 = vpop.permute.xlu0 %3319
        %3321 = vrot.lane.b32.xlu0 %v3084, 88
        %v3322 = vpop.permute.xlu0 %3321
        %3323 = vrot.lane.b32.xlu0 %v3087, 88
        %v3324 = vpop.permute.xlu0 %3323
        %3325 = vrot.lane.b32.xlu0 %v3089, 88
        %v3326 = vpop.permute.xlu0 %3325
        %3327 = vrot.lane.b32.xlu0 %v3092, 88
        %v3328 = vpop.permute.xlu0 %3327
        %3329 = vrot.lane.b32.xlu0 %v3094, 88
        %v3330 = vpop.permute.xlu0 %3329
        %3331 = vrot.lane.b32.xlu0 %v3097, 88
        %v3332 = vpop.permute.xlu0 %3331
        %3333 = vrot.lane.b32.xlu0 %v3099, 88
        %v3334 = vpop.permute.xlu0 %3333
        %3335 = vrot.lane.b32.xlu0 %v3102, 88
        %v3336 = vpop.permute.xlu0 %3335
        %3337 = vrot.lane.b32.xlu0 %v3104, 88
        %v3338 = vpop.permute.xlu0 %3337
        %3339 = vrot.lane.b32.xlu0 %v3107, 88
        %v3340 = vpop.permute.xlu0 %3339
        %3341 = vrot.lane.b32.xlu0 %v3109, 88
        %v3342 = vpop.permute.xlu0 %3341
        %3343 = vrot.lane.b32.xlu0 %v3312, 88
        %v3344 = vpop.permute.xlu0 %3343
        %3345 = vrot.lane.b32.xlu0 %v3314, 88
        %v3346 = vpop.permute.xlu0 %3345
        %v3363 = vadd.f32 %v3294, %v3316
        %v3364 = vadd.f32 %v3295, %v3318
        %v3365 = vadd.f32 %v3296, %v3320
        %v3366 = vadd.f32 %v3297, %v3322
        %v3367 = vadd.f32 %v3298, %v3324
        %v3368 = vadd.f32 %v3299, %v3326
        %v3369 = vadd.f32 %v3300, %v3328
        %v3370 = vadd.f32 %v3301, %v3330
        %v3371 = vadd.f32 %v3302, %v3332
        %v3372 = vadd.f32 %v3303, %v3334
        %v3373 = vadd.f32 %v3304, %v3336
        %v3374 = vadd.f32 %v3305, %v3338
        %v3375 = vadd.f32 %v3306, %v3340
        %v3376 = vadd.f32 %v3307, %v3342
        %v3377 = vadd.f32 %v3308, %v3344
        %v3378 = vadd.f32 %v3309, %v3346
        %3381 = vrot.lane.b32.xlu0 %v1869, 80
        %v3382 = vpop.permute.xlu0 %3381
        %3383 = vrot.lane.b32.xlu0 %v1872, 80
        %v3384 = vpop.permute.xlu0 %3383
        %3385 = vrot.lane.b32.xlu0 %v1880, 80
        %v3386 = vpop.permute.xlu0 %3385
        %3387 = vrot.lane.b32.xlu0 %v1885, 80
        %v3388 = vpop.permute.xlu0 %3387
        %3389 = vrot.lane.b32.xlu0 %v1893, 80
        %v3390 = vpop.permute.xlu0 %3389
        %3391 = vrot.lane.b32.xlu0 %v1896, 80
        %v3392 = vpop.permute.xlu0 %3391
        %3393 = vrot.lane.b32.xlu0 %v1904, 80
        %v3394 = vpop.permute.xlu0 %3393
        %3395 = vrot.lane.b32.xlu0 %v1909, 80
        %v3396 = vpop.permute.xlu0 %3395
        %3397 = vrot.lane.b32.xlu0 %v1917, 80
        %v3398 = vpop.permute.xlu0 %3397
        %3399 = vrot.lane.b32.xlu0 %v1920, 80
        %v3400 = vpop.permute.xlu0 %3399
        %3401 = vrot.lane.b32.xlu0 %v1928, 80
        %v3402 = vpop.permute.xlu0 %3401
        %3403 = vrot.lane.b32.xlu0 %v1933, 80
        %v3404 = vpop.permute.xlu0 %3403
        %3405 = vrot.lane.b32.xlu0 %v1941, 80
        %v3406 = vpop.permute.xlu0 %3405
        %3407 = vrot.lane.b32.xlu0 %v1944, 80
        %v3408 = vpop.permute.xlu0 %3407
        %3409 = vrot.lane.b32.xlu0 %v1952, 80
        %v3410 = vpop.permute.xlu0 %3409
        %3411 = vrot.lane.b32.xlu0 %v1957, 80
        %v3412 = vpop.permute.xlu0 %3411
        %v3429 = vadd.f32 %v3363, %v3382
        %v3430 = vadd.f32 %v3364, %v3384
        %v3431 = vadd.f32 %v3365, %v3386
        %v3432 = vadd.f32 %v3366, %v3388
        %v3433 = vadd.f32 %v3367, %v3390
        %v3434 = vadd.f32 %v3368, %v3392
        %v3435 = vadd.f32 %v3369, %v3394
        %v3436 = vadd.f32 %v3370, %v3396
        %v3437 = vadd.f32 %v3371, %v3398
        %v3438 = vadd.f32 %v3372, %v3400
        %v3439 = vadd.f32 %v3373, %v3402
        %v3440 = vadd.f32 %v3374, %v3404
        %v3441 = vadd.f32 %v3375, %v3406
        %v3442 = vadd.f32 %v3376, %v3408
        %v3443 = vadd.f32 %v3377, %v3410
        %v3444 = vadd.f32 %v3378, %v3412
        %v3446 = vrot.slane %v1952, 1
        %v3447 = vrot.slane %v1957, 1
        %v3448 = vsel %vm1987, %v3446, %v3447
        %v3449 = vrot.slane %v1960, 1
        %v3450 = vsel %vm1987, %v3447, %v3449
        %3451 = vrot.lane.b32.xlu0 %v2988, 72
        %v3452 = vpop.permute.xlu0 %3451
        %3453 = vrot.lane.b32.xlu0 %v2990, 72
        %v3454 = vpop.permute.xlu0 %3453
        %3455 = vrot.lane.b32.xlu0 %v2993, 72
        %v3456 = vpop.permute.xlu0 %3455
        %3457 = vrot.lane.b32.xlu0 %v2995, 72
        %v3458 = vpop.permute.xlu0 %3457
        %3459 = vrot.lane.b32.xlu0 %v2998, 72
        %v3460 = vpop.permute.xlu0 %3459
        %3461 = vrot.lane.b32.xlu0 %v3000, 72
        %v3462 = vpop.permute.xlu0 %3461
        %3463 = vrot.lane.b32.xlu0 %v3003, 72
        %v3464 = vpop.permute.xlu0 %3463
        %3465 = vrot.lane.b32.xlu0 %v3005, 72
        %v3466 = vpop.permute.xlu0 %3465
        %3467 = vrot.lane.b32.xlu0 %v3008, 72
        %v3468 = vpop.permute.xlu0 %3467
        %3469 = vrot.lane.b32.xlu0 %v3010, 72
        %v3470 = vpop.permute.xlu0 %3469
        %3471 = vrot.lane.b32.xlu0 %v3013, 72
        %v3472 = vpop.permute.xlu0 %3471
        %3473 = vrot.lane.b32.xlu0 %v3015, 72
        %v3474 = vpop.permute.xlu0 %3473
        %3475 = vrot.lane.b32.xlu0 %v3243, 72
        %v3476 = vpop.permute.xlu0 %3475
        %3477 = vrot.lane.b32.xlu0 %v3245, 72
        %v3478 = vpop.permute.xlu0 %3477
        %3479 = vrot.lane.b32.xlu0 %v3448, 72
        %v3480 = vpop.permute.xlu0 %3479
        %3481 = vrot.lane.b32.xlu0 %v3450, 72
        %v3482 = vpop.permute.xlu0 %3481
        %v3499 = vadd.f32 %v3429, %v3452
        %v3500 = vadd.f32 %v3430, %v3454
        %v3501 = vadd.f32 %v3431, %v3456
        %v3502 = vadd.f32 %v3432, %v3458
        %v3503 = vadd.f32 %v3433, %v3460
        %v3504 = vadd.f32 %v3434, %v3462
        %v3505 = vadd.f32 %v3435, %v3464
        %v3506 = vadd.f32 %v3436, %v3466
        %v3507 = vadd.f32 %v3437, %v3468
        %v3508 = vadd.f32 %v3438, %v3470
        %v3509 = vadd.f32 %v3439, %v3472
        %v3510 = vadd.f32 %v3440, %v3474
        %v3511 = vadd.f32 %v3441, %v3476
        %v3512 = vadd.f32 %v3442, %v3478
        %v3513 = vadd.f32 %v3443, %v3480
        %v3514 = vadd.f32 %v3444, %v3482
        %v3515 = vrot.slane %v1952, 2
        %v3516 = vrot.slane %v1957, 2
        %v3517 = vsel %vm2092, %v3515, %v3516
        %v3518 = vrot.slane %v1960, 2
        %v3519 = vsel %vm2092, %v3516, %v3518
        %3520 = vrot.lane.b32.xlu0 %v3082, 64
        %v3521 = vpop.permute.xlu0 %3520
        %3522 = vrot.lane.b32.xlu0 %v3084, 64
        %v3523 = vpop.permute.xlu0 %3522
        %3524 = vrot.lane.b32.xlu0 %v3087, 64
        %v3525 = vpop.permute.xlu0 %3524
        %3526 = vrot.lane.b32.xlu0 %v3089, 64
        %v3527 = vpop.permute.xlu0 %3526
        %3528 = vrot.lane.b32.xlu0 %v3092, 64
        %v3529 = vpop.permute.xlu0 %3528
        %3530 = vrot.lane.b32.xlu0 %v3094, 64
        %v3531 = vpop.permute.xlu0 %3530
        %3532 = vrot.lane.b32.xlu0 %v3097, 64
        %v3533 = vpop.permute.xlu0 %3532
        %3534 = vrot.lane.b32.xlu0 %v3099, 64
        %v3535 = vpop.permute.xlu0 %3534
        %3536 = vrot.lane.b32.xlu0 %v3102, 64
        %v3537 = vpop.permute.xlu0 %3536
        %3538 = vrot.lane.b32.xlu0 %v3104, 64
        %v3539 = vpop.permute.xlu0 %3538
        %3540 = vrot.lane.b32.xlu0 %v3107, 64
        %v3541 = vpop.permute.xlu0 %3540
        %3542 = vrot.lane.b32.xlu0 %v3109, 64
        %v3543 = vpop.permute.xlu0 %3542
        %3544 = vrot.lane.b32.xlu0 %v3312, 64
        %v3545 = vpop.permute.xlu0 %3544
        %3546 = vrot.lane.b32.xlu0 %v3314, 64
        %v3547 = vpop.permute.xlu0 %3546
        %3548 = vrot.lane.b32.xlu0 %v3517, 64
        %v3549 = vpop.permute.xlu0 %3548
        %3550 = vrot.lane.b32.xlu0 %v3519, 64
        %v3551 = vpop.permute.xlu0 %3550
        %v3568 = vadd.f32 %v3499, %v3521
        %v3569 = vadd.f32 %v3500, %v3523
        %v3570 = vadd.f32 %v3501, %v3525
        %v3571 = vadd.f32 %v3502, %v3527
        %v3572 = vadd.f32 %v3503, %v3529
        %v3573 = vadd.f32 %v3504, %v3531
        %v3574 = vadd.f32 %v3505, %v3533
        %v3575 = vadd.f32 %v3506, %v3535
        %v3576 = vadd.f32 %v3507, %v3537
        %v3577 = vadd.f32 %v3508, %v3539
        %v3578 = vadd.f32 %v3509, %v3541
        %v3579 = vadd.f32 %v3510, %v3543
        %v3580 = vadd.f32 %v3511, %v3545
        %v3581 = vadd.f32 %v3512, %v3547
        %v3582 = vadd.f32 %v3513, %v3549
        %v3583 = vadd.f32 %v3514, %v3551
        %v3584 = vcombine.low %v3568, %v3572
        %v3585 = vcombine.high %v3568, %v3572
        %v3587 = vunpack.c.l.s4 1983009808
        %v3588 = vunpack.c.0.s8 %v3587
        %v3589 = vlaneseq
        %v3590 = vshrl.u32 %v3589, 7
        %v3591 = vsub.s32 %v3588, %v3590
        %v3592 = vrot.slane %v3584, %v3591
        %v3594 = vunpack.c.l.s4 1983009808
        %v3595 = vunpack.c.0.s8 %v3594
        %v3596 = vlaneseq
        %v3597 = vshrl.u32 %v3596, 7
        %v3598 = vsub.s32 %v3595, %v3597
        %v3599 = vrot.slane %v3585, %v3598
        %v3600 = vcombine.low %v3570, %v3574
        %v3601 = vcombine.high %v3570, %v3574
        %v3603 = vunpack.c.l.s4 1983009808
        %v3604 = vunpack.c.0.s8 %v3603
        %v3605 = vlaneseq
        %v3606 = vshrl.u32 %v3605, 7
        %v3607 = vsub.s32 %v3604, %v3606
        %v3608 = vrot.slane %v3600, %v3607
        %v3610 = vunpack.c.l.s4 1983009808
        %v3611 = vunpack.c.0.s8 %v3610
        %v3612 = vlaneseq
        %v3613 = vshrl.u32 %v3612, 7
        %v3614 = vsub.s32 %v3611, %v3613
        %v3615 = vrot.slane %v3601, %v3614
        %v3616 = vcombine.low %v3576, %v3580
        %v3617 = vcombine.high %v3576, %v3580
        %v3619 = vunpack.c.l.s4 1983009808
        %v3620 = vunpack.c.0.s8 %v3619
        %v3621 = vlaneseq
        %v3622 = vshrl.u32 %v3621, 7
        %v3623 = vsub.s32 %v3620, %v3622
        %v3624 = vrot.slane %v3616, %v3623
        %v3626 = vunpack.c.l.s4 1983009808
        %v3627 = vunpack.c.0.s8 %v3626
        %v3628 = vlaneseq
        %v3629 = vshrl.u32 %v3628, 7
        %v3630 = vsub.s32 %v3627, %v3629
        %v3631 = vrot.slane %v3617, %v3630
        %v3632 = vcombine.low %v3578, %v3582
        %v3633 = vcombine.high %v3578, %v3582
        %v3635 = vunpack.c.l.s4 1983009808
        %v3636 = vunpack.c.0.s8 %v3635
        %v3637 = vlaneseq
        %v3638 = vshrl.u32 %v3637, 7
        %v3639 = vsub.s32 %v3636, %v3638
        %v3640 = vrot.slane %v3632, %v3639
        %v3642 = vunpack.c.l.s4 1983009808
        %v3643 = vunpack.c.0.s8 %v3642
        %v3644 = vlaneseq
        %v3645 = vshrl.u32 %v3644, 7
        %v3646 = vsub.s32 %v3643, %v3645
        %v3647 = vrot.slane %v3633, %v3646
        %v3648 = vcombine.low %v3592, %v3608
        %v3649 = vcombine.high %v3592, %v3608
        %v3651 = vunpack.c.l.s4 1934713408
        %v3652 = vunpack.c.0.s8 %v3651
        %v3653 = vlaneseq
        %v3654 = vshrl.u32 %v3653, 7
        %v3655 = vsub.s32 %v3652, %v3654
        %v3656 = vrot.slane %v3648, %v3655
        %v3658 = vunpack.c.l.s4 1934713408
        %v3659 = vunpack.c.0.s8 %v3658
        %v3660 = vlaneseq
        %v3661 = vshrl.u32 %v3660, 7
        %v3662 = vsub.s32 %v3659, %v3661
        %v3663 = vrot.slane %v3649, %v3662
        %v3664 = vcombine.low %v3599, %v3615
        %v3665 = vcombine.high %v3599, %v3615
        %v3667 = vunpack.c.l.s4 1934713408
        %v3668 = vunpack.c.0.s8 %v3667
        %v3669 = vlaneseq
        %v3670 = vshrl.u32 %v3669, 7
        %v3671 = vsub.s32 %v3668, %v3670
        %v3672 = vrot.slane %v3664, %v3671
        %v3674 = vunpack.c.l.s4 1934713408
        %v3675 = vunpack.c.0.s8 %v3674
        %v3676 = vlaneseq
        %v3677 = vshrl.u32 %v3676, 7
        %v3678 = vsub.s32 %v3675, %v3677
        %v3679 = vrot.slane %v3665, %v3678
        %v3680 = vcombine.low %v3624, %v3640
        %v3681 = vcombine.high %v3624, %v3640
        %v3683 = vunpack.c.l.s4 1934713408
        %v3684 = vunpack.c.0.s8 %v3683
        %v3685 = vlaneseq
        %v3686 = vshrl.u32 %v3685, 7
        %v3687 = vsub.s32 %v3684, %v3686
        %v3688 = vrot.slane %v3680, %v3687
        %v3690 = vunpack.c.l.s4 1934713408
        %v3691 = vunpack.c.0.s8 %v3690
        %v3692 = vlaneseq
        %v3693 = vshrl.u32 %v3692, 7
        %v3694 = vsub.s32 %v3691, %v3693
        %v3695 = vrot.slane %v3681, %v3694
        %v3696 = vcombine.low %v3631, %v3647
        %v3697 = vcombine.high %v3631, %v3647
        %v3699 = vunpack.c.l.s4 1934713408
        %v3700 = vunpack.c.0.s8 %v3699
        %v3701 = vlaneseq
        %v3702 = vshrl.u32 %v3701, 7
        %v3703 = vsub.s32 %v3700, %v3702
        %v3704 = vrot.slane %v3696, %v3703
        %v3706 = vunpack.c.l.s4 1934713408
        %v3707 = vunpack.c.0.s8 %v3706
        %v3708 = vlaneseq
        %v3709 = vshrl.u32 %v3708, 7
        %v3710 = vsub.s32 %v3707, %v3709
        %v3711 = vrot.slane %v3697, %v3710
        %v3712 = vcombine.low %v3656, %v3688
        %v3713 = vcombine.high %v3656, %v3688
        %v3714 = vcombine.low %v3663, %v3695
        %v3715 = vcombine.high %v3663, %v3695
        %v3716 = vcombine.low %v3672, %v3704
        %v3717 = vcombine.high %v3672, %v3704
        %v3718 = vcombine.low %v3679, %v3711
        %v3719 = vcombine.high %v3679, %v3711
        %v3720 = vcombine.low %v3569, %v3573
        %v3721 = vcombine.high %v3569, %v3573
        %v3723 = vunpack.c.l.s4 1983009808
        %v3724 = vunpack.c.0.s8 %v3723
        %v3725 = vlaneseq
        %v3726 = vshrl.u32 %v3725, 7
        %v3727 = vsub.s32 %v3724, %v3726
        %v3728 = vrot.slane %v3720, %v3727
        %v3730 = vunpack.c.l.s4 1983009808
        %v3731 = vunpack.c.0.s8 %v3730
        %v3732 = vlaneseq
        %v3733 = vshrl.u32 %v3732, 7
        %v3734 = vsub.s32 %v3731, %v3733
        %v3735 = vrot.slane %v3721, %v3734
        %v3736 = vcombine.low %v3571, %v3575
        %v3737 = vcombine.high %v3571, %v3575
        %v3739 = vunpack.c.l.s4 1983009808
        %v3740 = vunpack.c.0.s8 %v3739
        %v3741 = vlaneseq
        %v3742 = vshrl.u32 %v3741, 7
        %v3743 = vsub.s32 %v3740, %v3742
        %v3744 = vrot.slane %v3736, %v3743
        %v3746 = vunpack.c.l.s4 1983009808
        %v3747 = vunpack.c.0.s8 %v3746
        %v3748 = vlaneseq
        %v3749 = vshrl.u32 %v3748, 7
        %v3750 = vsub.s32 %v3747, %v3749
        %v3751 = vrot.slane %v3737, %v3750
        %v3752 = vcombine.low %v3577, %v3581
        %v3753 = vcombine.high %v3577, %v3581
        %v3755 = vunpack.c.l.s4 1983009808
        %v3756 = vunpack.c.0.s8 %v3755
        %v3757 = vlaneseq
        %v3758 = vshrl.u32 %v3757, 7
        %v3759 = vsub.s32 %v3756, %v3758
        %v3760 = vrot.slane %v3752, %v3759
        %v3762 = vunpack.c.l.s4 1983009808
        %v3763 = vunpack.c.0.s8 %v3762
        %v3764 = vlaneseq
        %v3765 = vshrl.u32 %v3764, 7
        %v3766 = vsub.s32 %v3763, %v3765
        %v3767 = vrot.slane %v3753, %v3766
        %v3768 = vcombine.low %v3579, %v3583
        %v3769 = vcombine.high %v3579, %v3583
        %v3771 = vunpack.c.l.s4 1983009808
        %v3772 = vunpack.c.0.s8 %v3771
        %v3773 = vlaneseq
        %v3774 = vshrl.u32 %v3773, 7
        %v3775 = vsub.s32 %v3772, %v3774
        %v3776 = vrot.slane %v3768, %v3775
        %v3778 = vunpack.c.l.s4 1983009808
        %v3779 = vunpack.c.0.s8 %v3778
        %v3780 = vlaneseq
        %v3781 = vshrl.u32 %v3780, 7
        %v3782 = vsub.s32 %v3779, %v3781
        %v3783 = vrot.slane %v3769, %v3782
        %v3784 = vcombine.low %v3728, %v3744
        %v3785 = vcombine.high %v3728, %v3744
        %v3787 = vunpack.c.l.s4 1934713408
        %v3788 = vunpack.c.0.s8 %v3787
        %v3789 = vlaneseq
        %v3790 = vshrl.u32 %v3789, 7
        %v3791 = vsub.s32 %v3788, %v3790
        %v3792 = vrot.slane %v3784, %v3791
        %v3794 = vunpack.c.l.s4 1934713408
        %v3795 = vunpack.c.0.s8 %v3794
        %v3796 = vlaneseq
        %v3797 = vshrl.u32 %v3796, 7
        %v3798 = vsub.s32 %v3795, %v3797
        %v3799 = vrot.slane %v3785, %v3798
        %v3800 = vcombine.low %v3735, %v3751
        %v3801 = vcombine.high %v3735, %v3751
        %v3803 = vunpack.c.l.s4 1934713408
        %v3804 = vunpack.c.0.s8 %v3803
        %v3805 = vlaneseq
        %v3806 = vshrl.u32 %v3805, 7
        %v3807 = vsub.s32 %v3804, %v3806
        %v3808 = vrot.slane %v3800, %v3807
        %v3810 = vunpack.c.l.s4 1934713408
        %v3811 = vunpack.c.0.s8 %v3810
        %v3812 = vlaneseq
        %v3813 = vshrl.u32 %v3812, 7
        %v3814 = vsub.s32 %v3811, %v3813
        %v3815 = vrot.slane %v3801, %v3814
        %v3816 = vcombine.low %v3760, %v3776
        %v3817 = vcombine.high %v3760, %v3776
        %v3819 = vunpack.c.l.s4 1934713408
        %v3820 = vunpack.c.0.s8 %v3819
        %v3821 = vlaneseq
        %v3822 = vshrl.u32 %v3821, 7
        %v3823 = vsub.s32 %v3820, %v3822
        %v3824 = vrot.slane %v3816, %v3823
        %v3826 = vunpack.c.l.s4 1934713408
        %v3827 = vunpack.c.0.s8 %v3826
        %v3828 = vlaneseq
        %v3829 = vshrl.u32 %v3828, 7
        %v3830 = vsub.s32 %v3827, %v3829
        %v3831 = vrot.slane %v3817, %v3830
        %v3832 = vcombine.low %v3767, %v3783
        %v3833 = vcombine.high %v3767, %v3783
        %v3835 = vunpack.c.l.s4 1934713408
        %v3836 = vunpack.c.0.s8 %v3835
        %v3837 = vlaneseq
        %v3838 = vshrl.u32 %v3837, 7
        %v3839 = vsub.s32 %v3836, %v3838
        %v3840 = vrot.slane %v3832, %v3839
        %v3842 = vunpack.c.l.s4 1934713408
        %v3843 = vunpack.c.0.s8 %v3842
        %v3844 = vlaneseq
        %v3845 = vshrl.u32 %v3844, 7
        %v3846 = vsub.s32 %v3843, %v3845
        %v3847 = vrot.slane %v3833, %v3846
        %v3848 = vcombine.low %v3792, %v3824
        %v3849 = vcombine.high %v3792, %v3824
        %v3850 = vcombine.low %v3799, %v3831
        %v3851 = vcombine.high %v3799, %v3831
        %v3852 = vcombine.low %v3808, %v3840
        %v3853 = vcombine.high %v3808, %v3840
        %v3854 = vcombine.low %v3815, %v3847
        %v3855 = vcombine.high %v3815, %v3847
        %3857 = vrot.lane.b32.xlu0 %v3713, 8
        %v3858 = vpop.permute.xlu0 %3857
        %3861 = vrot.lane.b32.xlu0 %v3714, 16
        %v3862 = vpop.permute.xlu0 %3861
        %3865 = vrot.lane.b32.xlu0 %v3715, 24
        %v3866 = vpop.permute.xlu0 %3865
        %3869 = vrot.lane.b32.xlu0 %v3716, 32
        %v3870 = vpop.permute.xlu0 %3869
        %3873 = vrot.lane.b32.xlu0 %v3717, 40
        %v3874 = vpop.permute.xlu0 %3873
        %3877 = vrot.lane.b32.xlu0 %v3718, 48
        %v3878 = vpop.permute.xlu0 %3877
        %3881 = vrot.lane.b32.xlu0 %v3719, 56
        %v3882 = vpop.permute.xlu0 %3881
        %3885 = vrot.lane.b32.xlu0 %v3848, 64
        %v3886 = vpop.permute.xlu0 %3885
        %3889 = vrot.lane.b32.xlu0 %v3849, 72
        %v3890 = vpop.permute.xlu0 %3889
        %3893 = vrot.lane.b32.xlu0 %v3850, 80
        %v3894 = vpop.permute.xlu0 %3893
        %3897 = vrot.lane.b32.xlu0 %v3851, 88
        %v3898 = vpop.permute.xlu0 %3897
        %3901 = vrot.lane.b32.xlu0 %v3852, 96
        %v3902 = vpop.permute.xlu0 %3901
        %3905 = vrot.lane.b32.xlu0 %v3853, 104
        %v3906 = vpop.permute.xlu0 %3905
        %3909 = vrot.lane.b32.xlu0 %v3854, 112
        %v3910 = vpop.permute.xlu0 %3909
        %3913 = vrot.lane.b32.xlu0 %v3855, 120
        %v3914 = vpop.permute.xlu0 %3913
        %v3916 = vsel %vm2939, %v3712, %v3858
        %v3917 = vsel %vm646, %v3916, %v3862
        %v3918 = vsel %vm2942, %v3917, %v3866
        %v3919 = vsel %vm1632, %v3918, %v3870
        %v3920 = vsel %vm2945, %v3919, %v3874
        %v3921 = vsel %vm2947, %v3920, %v3878
        %v3922 = vsel %vm2949, %v3921, %v3882
        %v3923 = vsel %vm2951, %v3922, %v3886
        %v3924 = vsel %vm2953, %v3923, %v3890
        %v3925 = vsel %vm2955, %v3924, %v3894
        %v3926 = vsel %vm2957, %v3925, %v3898
        %v3927 = vsel %vm2959, %v3926, %v3902
        %v3928 = vsel %vm2961, %v3927, %v3906
        %v3929 = vsel %vm2963, %v3928, %v3910
        %v3930 = vsel %vm2965, %v3929, %v3914
        %3931 = vst [vmem:[%s355 + $0x8] sm:$0xff] %v3930
        %s3932 = sand.u32 %s181, 1
        %s3933 = scalar_lea.sflag [#allocation5], %s3932
        %s3934 = sand.u32 %s181, 1
        %s3935 = smul.addr %s3934, 16
        %s3936 = scalar_lea.vmem [#allocation14], %s3935
        // Predicated region
        $region69: #{tpu_custom_call.1} parent=43 // pred_check
          %p3937 = pneg %p191
        $region70: #{tpu_custom_call.1} parent=43 // pred_check_branch
          %3939 = sbr.rel (%p3937) target = $region72
        $region71: #{tpu_custom_call.1} parent=43 // pred_region
          %s3940 = smul.u32 2, %s31
          %s3942 = ssub.s32 256, 256
          %3943 = vsyncadd %s3933, %s3942
          %s3944 = smul.addr %s30, 2
          %s3945 = sadd.s32 %s3940, %s3944
          %s3946 = smul.addr %s3945, 128
          %s3947 = scalar_lea.hbm %s6, %s3946
          %s3948 = sshll.u32 %s3936, 4
          %s3949 = int_to_ptr.vmem [resolvable:$true] %s3948
          %3954 = dma.vmem_to_hbm [thread:$0]  %s3949, 256, %s3947, %s3933, 128, 128, 8
        $region72: #{tpu_custom_call.1} parent=43 // pred_fallthru
          _
      $region44: #{tpu_custom_call.1} parent=5 // pred_fallthru
        _
      %p3955 = scmp.le.s32.totalorder 2, %s21
      // Predicated region
      $region73: #{tpu_custom_call.1} parent=5 // pred_check
        %p3956 = pneg %p3955
      $region74: #{tpu_custom_call.1} parent=5 // pred_check_branch
        %3958 = sbr.rel (%p3956) target = $region76
      $region75: #{tpu_custom_call.1} parent=5 // pred_region
        %s3959 = ssub.s32 %s21, 2
        // Predicated region
        $region77: #{tpu_custom_call.1} parent=75 // pred_check
          %p3960 = pneg %p197
        $region78: #{tpu_custom_call.1} parent=75 // pred_check_branch
          %3962 = sbr.rel (%p3960) target = $region80
        $region79: #{tpu_custom_call.1} parent=75 // pred_region
          %s3963 = sand.u32 %s182, 1
          %s3964 = scalar_lea.sflag [#allocation5], %s3963
          %s3965 = sand.u32 %s182, 1
          %s3966 = smul.addr %s3965, 16
          %s3967 = scalar_lea.vmem [#allocation14], %s3966
          %3968 = dma.done %s3964, 256
        $region80: #{tpu_custom_call.1} parent=75 // pred_fallthru
          _
      $region76: #{tpu_custom_call.1} parent=5 // pred_fallthru
        _
    $region6: #{tpu_custom_call.1} parent=1 // loop_footer
      %s25 = sadd.s32 1, %s21
    $region7: #{tpu_custom_call.1} parent=1 // loop_footer_branch
      %20 = sbr.rel target = $region3
    $region8: #{tpu_custom_call.1} parent=1 // loop_exit
      _
    %3969 = vsyncpa [#allocation4], 1
    %s3970 = scalar_lea.sflag [#allocation4], 1
    %3971 = vsyncpa %s3970, 1
    %3972 = vsyncpa [#allocation7], 1
    %3973 = vsyncpa [#allocation10], 1
    %3974 = vsyncpa [#allocation13], 1
    %3975 = vsyncpa [#allocation5], 1
    %s3976 = scalar_lea.sflag [#allocation5], 1
    %3977 = vsyncpa %s3976, 1

</llo_original>
